<compile_context>
chip_gen: v6e
topology: v6e:2x2x1
jax: 0.10.0
libtpu: 0.0.40
codegen_flags: <defaults>
</compile_context>

<pallas_src>
import functools

import jax
import jax.numpy as jnp
from jax.experimental import pallas as pl
from jax.experimental.pallas import tpu as pltpu


KS = (3, 4, 5)     # conv kernel heights (torch: Ks)
CO = 1000          # torch: self.Co
CO_PAD = 1024      # lane-dense padding for Co (8 x 128)
C_PAD = 128        # lane-dense padding for the fc1 output

_VMEM = pl.BlockSpec(memory_space=pltpu.MemorySpace.VMEM)


# ----------------------------------------------------------------------------
# Pallas kernels (single fused kernel; two variants: feats-only / feats+fc1)
# ----------------------------------------------------------------------------
def _conv_relu_max(x_ref, w_ref, b_ref, Ks):
    """Fused conv (sum_k of flat MXU matmuls) + max-over-time + bias + ReLU.

    x_ref: (B, L, D)  f32 embeddings (VMEM)
    w_ref: (sum(Ks), D, Co_pad) bf16 conv weights, [branch-major, k-minor]
    b_ref: (len(Ks), Co_pad)    f32  conv biases (zero-padded past Co)
    returns: list of (B, Co_pad) f32, one per branch.
    """
    L = x_ref.shape[1]
    feats = []
    off = 0
    for i, K in enumerate(Ks):
        T = L - K + 1
        s = None
        for k in range(K):
            # in-kernel im2col: static slice of the VMEM block along time.
            xk = x_ref[:, k:k + T, :].astype(jnp.bfloat16)        # (B, T, D)
            wk = w_ref[off + k]                                    # (D, Co_pad) bf16
            # Single (B*T, D) @ (D, Co_pad) MXU stream (no batch dims), f32 accumulate.
            p = jnp.einsum("btd,dc->btc", xk, wk,
                           preferred_element_type=jnp.float32)     # (B, T, Co_pad)
            s = p if s is None else s + p
        off += K
        m = jnp.max(s, axis=1)                                     # (B, Co_pad), XLU reduce
        # bias + ReLU AFTER the max: exact (bias const over t, both monotone), T-x cheaper.
        feats.append(jnp.maximum(m + b_ref[i:i + 1, :], 0.0))
    return feats


def textcnn_feats_kernel(x_ref, w_ref, b_ref, o_ref, *, Ks):
    """o_ref: (B, len(Ks)*Co_pad) f32 -- pooled features, lane-dense layout."""
    co_pad = b_ref.shape[1]
    for i, f in enumerate(_conv_relu_max(x_ref, w_ref, b_ref, Ks)):
        o_ref[:, i * co_pad:(i + 1) * co_pad] = f


def textcnn_logits_kernel(x_ref, w_ref, b_ref, fcw_ref, fcb_ref, o_ref, feat_sc, *, Ks):
    """Fused conv branches + fc1.  feat_sc: (B, len(Ks)*Co_pad) f32 VMEM scratch."""
    co_pad = b_ref.shape[1]
    for i, f in enumerate(_conv_relu_max(x_ref, w_ref, b_ref, Ks)):
        feat_sc[:, i * co_pad:(i + 1) * co_pad] = f
    o_ref[...] = (
        jnp.dot(feat_sc[...].astype(jnp.bfloat16), fcw_ref[...],
                preferred_element_type=jnp.float32)
        + fcb_ref[...]
    )


# ----------------------------------------------------------------------------
# Wrapper (embedding gather is glue; everything else is one pallas_call)
# ----------------------------------------------------------------------------
@functools.partial(jax.jit, static_argnames=("fc", "n_classes"))
def textcnn_forward(token_ids, params, n_classes, fc=False):
    """token_ids: (B, L) int32.  Returns (B, 3*Co) or (B, n_classes) if fc=True."""
    x_emb = jnp.take(params["embed"], token_ids, axis=0).astype(jnp.float32)  # (B, L, D)
    B = x_emb.shape[0]
    nK = len(KS)
    if fc:
        out = pl.pallas_call(
            functools.partial(textcnn_logits_kernel, Ks=KS),
            out_shape=jax.ShapeDtypeStruct((B, C_PAD), jnp.float32),
            in_specs=[_VMEM] * 5,
            out_specs=_VMEM,
            scratch_shapes=[pltpu.VMEM((B, nK * CO_PAD), jnp.float32)],
        )(x_emb, params["conv_w"], params["conv_b"], params["fc1_w"], params["fc1_b"])
        return out[:, :n_classes]
    out = pl.pallas_call(
        functools.partial(textcnn_feats_kernel, Ks=KS),
        out_shape=jax.ShapeDtypeStruct((B, nK * CO_PAD), jnp.float32),
        in_specs=[_VMEM] * 3,
        out_specs=_VMEM,
    )(x_emb, params["conv_w"], params["conv_b"])
    # drop the zero padding: (B, 3, Co_pad)[:, :, :Co] -> (B, 3*Co)   (dropout p=0.0 == identity)
    return out.reshape(B, nK, CO_PAD)[:, :, :CO].reshape(B, nK * CO)


# ----------------------------------------------------------------------------
# Parameter initialization: raw (torch-layout, f32) + kernel-ready (padded, bf16)
# ----------------------------------------------------------------------------
def init_params(key, V, D, C, Ks=KS):
    keys = jax.random.split(key, 2 + 2 * len(Ks) + 2)
    raw = {"embed": jax.random.normal(keys[0], (V, D), jnp.float32) * 0.1}
    for i, K in enumerate(Ks):
        raw[f"conv{K}_w"] = jax.random.normal(keys[1 + 2 * i], (CO, 1, K, D), jnp.float32) * 0.05
        raw[f"conv{K}_b"] = jax.random.normal(keys[2 + 2 * i], (CO,), jnp.float32) * 0.05
    raw["fc1_w"] = jax.random.normal(keys[-2], (len(Ks) * CO, C), jnp.float32) * 0.05
    raw["fc1_b"] = jax.random.normal(keys[-1], (C,), jnp.float32) * 0.05

    # Kernel-ready, lane-dense padded, bf16 matmul operands.
    p = {"embed": raw["embed"]}
    w_stack, b_stack = [], []
    for K in Ks:
        w = jnp.transpose(raw[f"conv{K}_w"][:, 0], (1, 2, 0))          # (K, D, Co)
        w_stack.append(jnp.pad(w, ((0, 0), (0, 0), (0, CO_PAD - CO))))  # zero-pad Co -> Co_pad
        b_stack.append(jnp.pad(raw[f"conv{K}_b"], (0, CO_PAD - CO)))
    p["conv_w"] = jnp.concatenate(w_stack, axis=0).astype(jnp.bfloat16)  # (sum(Ks), D, Co_pad)
    p["conv_b"] = jnp.stack(b_stack, axis=0)                             # (len(Ks), Co_pad) f32
    fcw = jnp.pad(raw["fc1_w"].reshape(len(Ks), CO, C),
                  ((0, 0), (0, CO_PAD - CO), (0, C_PAD - C)))
    p["fc1_w"] = fcw.reshape(len(Ks) * CO_PAD, C_PAD).astype(jnp.bfloat16)
    p["fc1_b"] = jnp.pad(raw["fc1_b"], (0, C_PAD - C))[None, :]          # (1, C_PAD) f32
    return p, raw


# ----------------------------------------------------------------------------
# Pure-JAX reference (torch op order: ReLU then max-pool), bf16 MXU operands to
# match the kernel's precision choice.
# ----------------------------------------------------------------------------
def reference_forward(token_ids, raw, fc=False, Ks=KS):
    x_emb = jnp.take(raw["embed"], token_ids, axis=0)  # (B, L, D)
    L = x_emb.shape[1]
    feats = []
    for K in Ks:
        T = L - K + 1
        x_unf = jnp.stack([x_emb[:, k:k + T, :] for k in range(K)], axis=2)  # (B, T, K, D)
        w = raw[f"conv{K}_w"][:, 0]                                           # (Co, K, D)
        s = jnp.einsum("btkd,ckd->btc", x_unf.astype(jnp.bfloat16),
                       w.astype(jnp.bfloat16), preferred_element_type=jnp.float32)
        s = jnp.maximum(s + raw[f"conv{K}_b"][None, None, :], 0.0)            # ReLU before max
        feats.append(jnp.max(s, axis=1))                                      # (B, Co)
    x = jnp.concatenate(feats, axis=1)                                        # (B, 3*Co)
    if fc:
        x = jnp.dot(x.astype(jnp.bfloat16), raw["fc1_w"].astype(jnp.bfloat16),
                    preferred_element_type=jnp.float32) + raw["fc1_b"][None, :]
    return x


if __name__ == "__main__":
    # Small deterministic example: vocab V=50, embed D=16, n_classes C=5, Co=1000 (padded
    # to 1024 inside), batch B=2, sequence length L=12 (>= max kernel size 5).
    V, D, C = 50, 16, 5
    B, L = 2, 12

    key = jax.random.PRNGKey(0)
    k_params, k_tokens = jax.random.split(key)
    params, raw = init_params(k_params, V, D, C)
    token_ids = jax.random.randint(k_tokens, (B, L), 0, V, dtype=jnp.int32)

    feats = textcnn_forward(token_ids, params, n_classes=C, fc=False)   # (B, 3*Co)
    logits = textcnn_forward(token_ids, params, n_classes=C, fc=True)   # (B, C)
    jax.block_until_ready((feats, logits))

    ref_feats = reference_forward(token_ids, raw, fc=False)
    ref_logits = reference_forward(token_ids, raw, fc=True)

    assert feats.shape == (B, 3 * CO) and logits.shape == (B, C)
    assert jnp.allclose(feats, ref_feats, atol=1e-3, rtol=1e-3), float(
        jnp.max(jnp.abs(feats - ref_feats)))
    assert jnp.allclose(logits, ref_logits, atol=1e-3, rtol=1e-3), float(
        jnp.max(jnp.abs(logits - ref_logits)))

    print("KERNEL_OK")
</pallas_src>

<mosaic_0001>
module attributes {stable_mosaic.version = 11 : i64} {
  func.func @textcnn_feats_kernel(%arg0: memref<2x12x16xf32, #tpu.memory_space<vmem>>, %arg1: memref<12x16x1024xbf16, #tpu.memory_space<vmem>>, %arg2: memref<3x1024xf32, #tpu.memory_space<vmem>>, %arg3: memref<2x3072xf32, #tpu.memory_space<vmem>>) attributes {dimension_semantics = [], scalar_prefetch = 0 : i64, scratch_operands = 0 : i64, tpu.core_type = #tpu.core_type<tc>} {
    %c0 = arith.constant 0 : index
    %c0_0 = arith.constant 0 : index
    %c0_1 = arith.constant 0 : index
    %0 = vector.load %arg0[%c0, %c0_0, %c0_1] : memref<2x12x16xf32, #tpu.memory_space<vmem>>, vector<2x10x16xf32>
    %1 = arith.truncf %0 : vector<2x10x16xf32> to vector<2x10x16xbf16>
    %c0_2 = arith.constant 0 : index
    %c0_3 = arith.constant 0 : index
    %c0_4 = arith.constant 0 : index
    %2 = vector.load %arg1[%c0_2, %c0_3, %c0_4] : memref<12x16x1024xbf16, #tpu.memory_space<vmem>>, vector<1x16x1024xbf16>
    %3 = vector.shape_cast %2 : vector<1x16x1024xbf16> to vector<16x1024xbf16>
    "tpu.trace_start"() <{level = 10 : i32, message = "btd,dc->btc"}> : () -> ()
    %cst = arith.constant dense<0.000000e+00> : vector<2x10x1024xf32>
    %4 = tpu.matmul %1, %3, %cst {dimension_numbers = #tpu.dot_dimension_numbers<[2], [0], [0, 1], [1], [0, 0, 0, 1, 1, 1], [], []>} : vector<2x10x16xbf16>, vector<16x1024xbf16>, vector<2x10x1024xf32> -> vector<2x10x1024xf32>
    "tpu.trace_stop"() : () -> ()
    %c0_5 = arith.constant 0 : index
    %c1 = arith.constant 1 : index
    %c0_6 = arith.constant 0 : index
    %5 = vector.load %arg0[%c0_5, %c1, %c0_6] : memref<2x12x16xf32, #tpu.memory_space<vmem>>, vector<2x10x16xf32>
    %6 = arith.truncf %5 : vector<2x10x16xf32> to vector<2x10x16xbf16>
    %c1_7 = arith.constant 1 : index
    %c0_8 = arith.constant 0 : index
    %c0_9 = arith.constant 0 : index
    %7 = vector.load %arg1[%c1_7, %c0_8, %c0_9] : memref<12x16x1024xbf16, #tpu.memory_space<vmem>>, vector<1x16x1024xbf16>
    %8 = vector.shape_cast %7 : vector<1x16x1024xbf16> to vector<16x1024xbf16>
    "tpu.trace_start"() <{level = 10 : i32, message = "btd,dc->btc"}> : () -> ()
    %cst_10 = arith.constant dense<0.000000e+00> : vector<2x10x1024xf32>
    %9 = tpu.matmul %6, %8, %cst_10 {dimension_numbers = #tpu.dot_dimension_numbers<[2], [0], [0, 1], [1], [0, 0, 0, 1, 1, 1], [], []>} : vector<2x10x16xbf16>, vector<16x1024xbf16>, vector<2x10x1024xf32> -> vector<2x10x1024xf32>
    "tpu.trace_stop"() : () -> ()
    %10 = arith.addf %4, %9 : vector<2x10x1024xf32>
    %c0_11 = arith.constant 0 : index
    %c2 = arith.constant 2 : index
    %c0_12 = arith.constant 0 : index
    %11 = vector.load %arg0[%c0_11, %c2, %c0_12] : memref<2x12x16xf32, #tpu.memory_space<vmem>>, vector<2x10x16xf32>
    %12 = arith.truncf %11 : vector<2x10x16xf32> to vector<2x10x16xbf16>
    %c2_13 = arith.constant 2 : index
    %c0_14 = arith.constant 0 : index
    %c0_15 = arith.constant 0 : index
    %13 = vector.load %arg1[%c2_13, %c0_14, %c0_15] : memref<12x16x1024xbf16, #tpu.memory_space<vmem>>, vector<1x16x1024xbf16>
    %14 = vector.shape_cast %13 : vector<1x16x1024xbf16> to vector<16x1024xbf16>
    "tpu.trace_start"() <{level = 10 : i32, message = "btd,dc->btc"}> : () -> ()
    %cst_16 = arith.constant dense<0.000000e+00> : vector<2x10x1024xf32>
    %15 = tpu.matmul %12, %14, %cst_16 {dimension_numbers = #tpu.dot_dimension_numbers<[2], [0], [0, 1], [1], [0, 0, 0, 1, 1, 1], [], []>} : vector<2x10x16xbf16>, vector<16x1024xbf16>, vector<2x10x1024xf32> -> vector<2x10x1024xf32>
    "tpu.trace_stop"() : () -> ()
    %16 = arith.addf %10, %15 : vector<2x10x1024xf32>
    %cst_17 = arith.constant dense<0xFF800000> : vector<2x1024xf32>
    %17 = vector.multi_reduction <maximumf>, %16, %cst_17 [1] : vector<2x10x1024xf32> to vector<2x1024xf32>
    %c0_18 = arith.constant 0 : index
    %c0_19 = arith.constant 0 : index
    %18 = vector.load %arg2[%c0_18, %c0_19] : memref<3x1024xf32, #tpu.memory_space<vmem>>, vector<1x1024xf32>
    %19 = vector.broadcast %18 : vector<1x1024xf32> to vector<2x1024xf32>
    %20 = arith.addf %17, %19 : vector<2x1024xf32>
    %cst_20 = arith.constant 0.000000e+00 : f32
    %21 = vector.broadcast %cst_20 : f32 to vector<2x1024xf32>
    %22 = arith.maximumf %20, %21 : vector<2x1024xf32>
    %c0_21 = arith.constant 0 : index
    %c0_22 = arith.constant 0 : index
    %c0_23 = arith.constant 0 : index
    %23 = vector.load %arg0[%c0_21, %c0_22, %c0_23] : memref<2x12x16xf32, #tpu.memory_space<vmem>>, vector<2x9x16xf32>
    %24 = arith.truncf %23 : vector<2x9x16xf32> to vector<2x9x16xbf16>
    %c3 = arith.constant 3 : index
    %c0_24 = arith.constant 0 : index
    %c0_25 = arith.constant 0 : index
    %25 = vector.load %arg1[%c3, %c0_24, %c0_25] : memref<12x16x1024xbf16, #tpu.memory_space<vmem>>, vector<1x16x1024xbf16>
    %26 = vector.shape_cast %25 : vector<1x16x1024xbf16> to vector<16x1024xbf16>
    "tpu.trace_start"() <{level = 10 : i32, message = "btd,dc->btc"}> : () -> ()
    %cst_26 = arith.constant dense<0.000000e+00> : vector<2x9x1024xf32>
    %27 = tpu.matmul %24, %26, %cst_26 {dimension_numbers = #tpu.dot_dimension_numbers<[2], [0], [0, 1], [1], [0, 0, 0, 1, 1, 1], [], []>} : vector<2x9x16xbf16>, vector<16x1024xbf16>, vector<2x9x1024xf32> -> vector<2x9x1024xf32>
    "tpu.trace_stop"() : () -> ()
    %c0_27 = arith.constant 0 : index
    %c1_28 = arith.constant 1 : index
    %c0_29 = arith.constant 0 : index
    %28 = vector.load %arg0[%c0_27, %c1_28, %c0_29] : memref<2x12x16xf32, #tpu.memory_space<vmem>>, vector<2x9x16xf32>
    %29 = arith.truncf %28 : vector<2x9x16xf32> to vector<2x9x16xbf16>
    %c4 = arith.constant 4 : index
    %c0_30 = arith.constant 0 : index
    %c0_31 = arith.constant 0 : index
    %30 = vector.load %arg1[%c4, %c0_30, %c0_31] : memref<12x16x1024xbf16, #tpu.memory_space<vmem>>, vector<1x16x1024xbf16>
    %31 = vector.shape_cast %30 : vector<1x16x1024xbf16> to vector<16x1024xbf16>
    "tpu.trace_start"() <{level = 10 : i32, message = "btd,dc->btc"}> : () -> ()
    %cst_32 = arith.constant dense<0.000000e+00> : vector<2x9x1024xf32>
    %32 = tpu.matmul %29, %31, %cst_32 {dimension_numbers = #tpu.dot_dimension_numbers<[2], [0], [0, 1], [1], [0, 0, 0, 1, 1, 1], [], []>} : vector<2x9x16xbf16>, vector<16x1024xbf16>, vector<2x9x1024xf32> -> vector<2x9x1024xf32>
    "tpu.trace_stop"() : () -> ()
    %33 = arith.addf %27, %32 : vector<2x9x1024xf32>
    %c0_33 = arith.constant 0 : index
    %c2_34 = arith.constant 2 : index
    %c0_35 = arith.constant 0 : index
    %34 = vector.load %arg0[%c0_33, %c2_34, %c0_35] : memref<2x12x16xf32, #tpu.memory_space<vmem>>, vector<2x9x16xf32>
    %35 = arith.truncf %34 : vector<2x9x16xf32> to vector<2x9x16xbf16>
    %c5 = arith.constant 5 : index
    %c0_36 = arith.constant 0 : index
    %c0_37 = arith.constant 0 : index
    %36 = vector.load %arg1[%c5, %c0_36, %c0_37] : memref<12x16x1024xbf16, #tpu.memory_space<vmem>>, vector<1x16x1024xbf16>
    %37 = vector.shape_cast %36 : vector<1x16x1024xbf16> to vector<16x1024xbf16>
    "tpu.trace_start"() <{level = 10 : i32, message = "btd,dc->btc"}> : () -> ()
    %cst_38 = arith.constant dense<0.000000e+00> : vector<2x9x1024xf32>
    %38 = tpu.matmul %35, %37, %cst_38 {dimension_numbers = #tpu.dot_dimension_numbers<[2], [0], [0, 1], [1], [0, 0, 0, 1, 1, 1], [], []>} : vector<2x9x16xbf16>, vector<16x1024xbf16>, vector<2x9x1024xf32> -> vector<2x9x1024xf32>
    "tpu.trace_stop"() : () -> ()
    %39 = arith.addf %33, %38 : vector<2x9x1024xf32>
    %c0_39 = arith.constant 0 : index
    %c3_40 = arith.constant 3 : index
    %c0_41 = arith.constant 0 : index
    %40 = vector.load %arg0[%c0_39, %c3_40, %c0_41] : memref<2x12x16xf32, #tpu.memory_space<vmem>>, vector<2x9x16xf32>
    %41 = arith.truncf %40 : vector<2x9x16xf32> to vector<2x9x16xbf16>
    %c6 = arith.constant 6 : index
    %c0_42 = arith.constant 0 : index
    %c0_43 = arith.constant 0 : index
    %42 = vector.load %arg1[%c6, %c0_42, %c0_43] : memref<12x16x1024xbf16, #tpu.memory_space<vmem>>, vector<1x16x1024xbf16>
    %43 = vector.shape_cast %42 : vector<1x16x1024xbf16> to vector<16x1024xbf16>
    "tpu.trace_start"() <{level = 10 : i32, message = "btd,dc->btc"}> : () -> ()
    %cst_44 = arith.constant dense<0.000000e+00> : vector<2x9x1024xf32>
    %44 = tpu.matmul %41, %43, %cst_44 {dimension_numbers = #tpu.dot_dimension_numbers<[2], [0], [0, 1], [1], [0, 0, 0, 1, 1, 1], [], []>} : vector<2x9x16xbf16>, vector<16x1024xbf16>, vector<2x9x1024xf32> -> vector<2x9x1024xf32>
    "tpu.trace_stop"() : () -> ()
    %45 = arith.addf %39, %44 : vector<2x9x1024xf32>
    %cst_45 = arith.constant dense<0xFF800000> : vector<2x1024xf32>
    %46 = vector.multi_reduction <maximumf>, %45, %cst_45 [1] : vector<2x9x1024xf32> to vector<2x1024xf32>
    %c1_46 = arith.constant 1 : index
    %c0_47 = arith.constant 0 : index
    %47 = vector.load %arg2[%c1_46, %c0_47] : memref<3x1024xf32, #tpu.memory_space<vmem>>, vector<1x1024xf32>
    %48 = vector.broadcast %47 : vector<1x1024xf32> to vector<2x1024xf32>
    %49 = arith.addf %46, %48 : vector<2x1024xf32>
    %cst_48 = arith.constant 0.000000e+00 : f32
    %50 = vector.broadcast %cst_48 : f32 to vector<2x1024xf32>
    %51 = arith.maximumf %49, %50 : vector<2x1024xf32>
    %c0_49 = arith.constant 0 : index
    %c0_50 = arith.constant 0 : index
    %c0_51 = arith.constant 0 : index
    %52 = vector.load %arg0[%c0_49, %c0_50, %c0_51] : memref<2x12x16xf32, #tpu.memory_space<vmem>>, vector<2x8x16xf32>
    %53 = arith.truncf %52 : vector<2x8x16xf32> to vector<2x8x16xbf16>
    %c7 = arith.constant 7 : index
    %c0_52 = arith.constant 0 : index
    %c0_53 = arith.constant 0 : index
    %54 = vector.load %arg1[%c7, %c0_52, %c0_53] : memref<12x16x1024xbf16, #tpu.memory_space<vmem>>, vector<1x16x1024xbf16>
    %55 = vector.shape_cast %54 : vector<1x16x1024xbf16> to vector<16x1024xbf16>
    "tpu.trace_start"() <{level = 10 : i32, message = "btd,dc->btc"}> : () -> ()
    %cst_54 = arith.constant dense<0.000000e+00> : vector<2x8x1024xf32>
    %56 = tpu.matmul %53, %55, %cst_54 {dimension_numbers = #tpu.dot_dimension_numbers<[2], [0], [0, 1], [1], [0, 0, 0, 1, 1, 1], [], []>} : vector<2x8x16xbf16>, vector<16x1024xbf16>, vector<2x8x1024xf32> -> vector<2x8x1024xf32>
    "tpu.trace_stop"() : () -> ()
    %c0_55 = arith.constant 0 : index
    %c1_56 = arith.constant 1 : index
    %c0_57 = arith.constant 0 : index
    %57 = vector.load %arg0[%c0_55, %c1_56, %c0_57] : memref<2x12x16xf32, #tpu.memory_space<vmem>>, vector<2x8x16xf32>
    %58 = arith.truncf %57 : vector<2x8x16xf32> to vector<2x8x16xbf16>
    %c8 = arith.constant 8 : index
    %c0_58 = arith.constant 0 : index
    %c0_59 = arith.constant 0 : index
    %59 = vector.load %arg1[%c8, %c0_58, %c0_59] : memref<12x16x1024xbf16, #tpu.memory_space<vmem>>, vector<1x16x1024xbf16>
    %60 = vector.shape_cast %59 : vector<1x16x1024xbf16> to vector<16x1024xbf16>
    "tpu.trace_start"() <{level = 10 : i32, message = "btd,dc->btc"}> : () -> ()
    %cst_60 = arith.constant dense<0.000000e+00> : vector<2x8x1024xf32>
    %61 = tpu.matmul %58, %60, %cst_60 {dimension_numbers = #tpu.dot_dimension_numbers<[2], [0], [0, 1], [1], [0, 0, 0, 1, 1, 1], [], []>} : vector<2x8x16xbf16>, vector<16x1024xbf16>, vector<2x8x1024xf32> -> vector<2x8x1024xf32>
    "tpu.trace_stop"() : () -> ()
    %62 = arith.addf %56, %61 : vector<2x8x1024xf32>
    %c0_61 = arith.constant 0 : index
    %c2_62 = arith.constant 2 : index
    %c0_63 = arith.constant 0 : index
    %63 = vector.load %arg0[%c0_61, %c2_62, %c0_63] : memref<2x12x16xf32, #tpu.memory_space<vmem>>, vector<2x8x16xf32>
    %64 = arith.truncf %63 : vector<2x8x16xf32> to vector<2x8x16xbf16>
    %c9 = arith.constant 9 : index
    %c0_64 = arith.constant 0 : index
    %c0_65 = arith.constant 0 : index
    %65 = vector.load %arg1[%c9, %c0_64, %c0_65] : memref<12x16x1024xbf16, #tpu.memory_space<vmem>>, vector<1x16x1024xbf16>
    %66 = vector.shape_cast %65 : vector<1x16x1024xbf16> to vector<16x1024xbf16>
    "tpu.trace_start"() <{level = 10 : i32, message = "btd,dc->btc"}> : () -> ()
    %cst_66 = arith.constant dense<0.000000e+00> : vector<2x8x1024xf32>
    %67 = tpu.matmul %64, %66, %cst_66 {dimension_numbers = #tpu.dot_dimension_numbers<[2], [0], [0, 1], [1], [0, 0, 0, 1, 1, 1], [], []>} : vector<2x8x16xbf16>, vector<16x1024xbf16>, vector<2x8x1024xf32> -> vector<2x8x1024xf32>
    "tpu.trace_stop"() : () -> ()
    %68 = arith.addf %62, %67 : vector<2x8x1024xf32>
    %c0_67 = arith.constant 0 : index
    %c3_68 = arith.constant 3 : index
    %c0_69 = arith.constant 0 : index
    %69 = vector.load %arg0[%c0_67, %c3_68, %c0_69] : memref<2x12x16xf32, #tpu.memory_space<vmem>>, vector<2x8x16xf32>
    %70 = arith.truncf %69 : vector<2x8x16xf32> to vector<2x8x16xbf16>
    %c10 = arith.constant 10 : index
    %c0_70 = arith.constant 0 : index
    %c0_71 = arith.constant 0 : index
    %71 = vector.load %arg1[%c10, %c0_70, %c0_71] : memref<12x16x1024xbf16, #tpu.memory_space<vmem>>, vector<1x16x1024xbf16>
    %72 = vector.shape_cast %71 : vector<1x16x1024xbf16> to vector<16x1024xbf16>
    "tpu.trace_start"() <{level = 10 : i32, message = "btd,dc->btc"}> : () -> ()
    %cst_72 = arith.constant dense<0.000000e+00> : vector<2x8x1024xf32>
    %73 = tpu.matmul %70, %72, %cst_72 {dimension_numbers = #tpu.dot_dimension_numbers<[2], [0], [0, 1], [1], [0, 0, 0, 1, 1, 1], [], []>} : vector<2x8x16xbf16>, vector<16x1024xbf16>, vector<2x8x1024xf32> -> vector<2x8x1024xf32>
    "tpu.trace_stop"() : () -> ()
    %74 = arith.addf %68, %73 : vector<2x8x1024xf32>
    %c0_73 = arith.constant 0 : index
    %c4_74 = arith.constant 4 : index
    %c0_75 = arith.constant 0 : index
    %75 = vector.load %arg0[%c0_73, %c4_74, %c0_75] : memref<2x12x16xf32, #tpu.memory_space<vmem>>, vector<2x8x16xf32>
    %76 = arith.truncf %75 : vector<2x8x16xf32> to vector<2x8x16xbf16>
    %c11 = arith.constant 11 : index
    %c0_76 = arith.constant 0 : index
    %c0_77 = arith.constant 0 : index
    %77 = vector.load %arg1[%c11, %c0_76, %c0_77] : memref<12x16x1024xbf16, #tpu.memory_space<vmem>>, vector<1x16x1024xbf16>
    %78 = vector.shape_cast %77 : vector<1x16x1024xbf16> to vector<16x1024xbf16>
    "tpu.trace_start"() <{level = 10 : i32, message = "btd,dc->btc"}> : () -> ()
    %cst_78 = arith.constant dense<0.000000e+00> : vector<2x8x1024xf32>
    %79 = tpu.matmul %76, %78, %cst_78 {dimension_numbers = #tpu.dot_dimension_numbers<[2], [0], [0, 1], [1], [0, 0, 0, 1, 1, 1], [], []>} : vector<2x8x16xbf16>, vector<16x1024xbf16>, vector<2x8x1024xf32> -> vector<2x8x1024xf32>
    "tpu.trace_stop"() : () -> ()
    %80 = arith.addf %74, %79 : vector<2x8x1024xf32>
    %cst_79 = arith.constant dense<0xFF800000> : vector<2x1024xf32>
    %81 = vector.multi_reduction <maximumf>, %80, %cst_79 [1] : vector<2x8x1024xf32> to vector<2x1024xf32>
    %c2_80 = arith.constant 2 : index
    %c0_81 = arith.constant 0 : index
    %82 = vector.load %arg2[%c2_80, %c0_81] : memref<3x1024xf32, #tpu.memory_space<vmem>>, vector<1x1024xf32>
    %83 = vector.broadcast %82 : vector<1x1024xf32> to vector<2x1024xf32>
    %84 = arith.addf %81, %83 : vector<2x1024xf32>
    %cst_82 = arith.constant 0.000000e+00 : f32
    %85 = vector.broadcast %cst_82 : f32 to vector<2x1024xf32>
    %86 = arith.maximumf %84, %85 : vector<2x1024xf32>
    %c0_83 = arith.constant 0 : index
    %c0_84 = arith.constant 0 : index
    %87 = vector.load %arg3[%c0_83, %c0_84] : memref<2x3072xf32, #tpu.memory_space<vmem>>, vector<2x1024xf32>
    tpu.vector_store %arg3[%c0_83, %c0_84], %22 {strides = array<i32>} : memref<2x3072xf32, #tpu.memory_space<vmem>>, vector<2x1024xf32>,
    %c0_85 = arith.constant 0 : index
    %c1024 = arith.constant 1024 : index
    %88 = vector.load %arg3[%c0_85, %c1024] : memref<2x3072xf32, #tpu.memory_space<vmem>>, vector<2x1024xf32>
    tpu.vector_store %arg3[%c0_85, %c1024], %51 {strides = array<i32>} : memref<2x3072xf32, #tpu.memory_space<vmem>>, vector<2x1024xf32>,
    %c0_86 = arith.constant 0 : index
    %c2048 = arith.constant 2048 : index
    %89 = vector.load %arg3[%c0_86, %c2048] : memref<2x3072xf32, #tpu.memory_space<vmem>>, vector<2x1024xf32>
    tpu.vector_store %arg3[%c0_86, %c2048], %86 {strides = array<i32>} : memref<2x3072xf32, #tpu.memory_space<vmem>>, vector<2x1024xf32>,
    return
  }
}

</mosaic_0001>

<llo_original>
// kernel: textcnn_forward.1
$region0: #{textcnn_forward.1}
  #allocation0 [shape = 'u32[]', space=smem, size = 0x4, offset = 0x4, fixed_abs, tag = 'smem constant byte address 0x4 - core index']
  #allocation1 [shape = 'u32[144,128]{1,0:T(1,128)}', space=vmem, size = 0x12000, scoped, tag = 'internal scratch']
  %s0 = inlined_call_operand.vmem [shape: f32[2,12,16], index: 0, kind: input, shape index: {}]
  %s1 = inlined_call_operand.hbm [shape: bf16[12,16,1024], index: 1, kind: input, shape index: {}]
  %s2 = inlined_call_operand.vmem [shape: f32[3,1024], index: 2, kind: input, shape index: {}]
  %s3 = inlined_call_operand.vmem [shape: f32[2,3072], index: 3, kind: output, shape index: {}]
  %s4 = sld [smem:[#allocation0]]
  $region26: #{textcnn_forward.1} parent=0
    _
  %s6 = ssub.s32 1, %s4
  %s7 = scalar_select 0, %s6, %s4
  $region1: #{textcnn_forward.1} parent=0
    #allocation2 [shape = 'u8[393216]{0}', space=vmem, size = 0x60000, scoped, tag = 'input window, operand 1, single buffered']
    #allocation3 [shape = 's32[1]{0}', space=sflag, size = 0x4, scoped, tag = 'scoped memory for textcnn_forward.1']
    %8 = vsyncpa [#allocation3], 0
    // Predicated region
    $region2: #{textcnn_forward.1} parent=1 // pred_check
      _
    $region3: #{textcnn_forward.1} parent=1 // pred_check_branch
      %10 = sbr.rel (0) target = $region5
    $region4: #{textcnn_forward.1} parent=1 // pred_region
      _
    $region5: #{textcnn_forward.1} parent=1 // pred_fallthru
      _
    // Predicated region
    $region6: #{textcnn_forward.1} parent=1 // pred_check
      _
    $region7: #{textcnn_forward.1} parent=1 // pred_check_branch
      %12 = sbr.rel (0) target = $region9
    $region8: #{textcnn_forward.1} parent=1 // pred_region
      %s14 = ssub.s32 12288, 12288
      %15 = vsyncadd [#allocation3], %s14
      %s16 = sshll.u32 [#allocation2], 4
      %s17 = int_to_ptr.vmem [resolvable:$true] %s16
      %22 = dma.hbm_to_vmem [thread:$0]  %s1, 12288, %s17, [#allocation3], 512, 512, 32
    $region9: #{textcnn_forward.1} parent=1 // pred_fallthru
      _
    // Predicated region
    $region10: #{textcnn_forward.1} parent=1 // pred_check
      _
    $region11: #{textcnn_forward.1} parent=1 // pred_check_branch
      %24 = sbr.rel (0) target = $region13
    $region12: #{textcnn_forward.1} parent=1 // pred_region
      _
    $region13: #{textcnn_forward.1} parent=1 // pred_fallthru
      _
    // Predicated region
    $region14: #{textcnn_forward.1} parent=1 // pred_check
      _
    $region15: #{textcnn_forward.1} parent=1 // pred_check_branch
      %26 = sbr.rel (0) target = $region17
    $region16: #{textcnn_forward.1} parent=1 // pred_region
      %27 = dma.done [#allocation3], 12288
    $region17: #{textcnn_forward.1} parent=1 // pred_fallthru
      _
    %v29 = vld [vmem:[%s0] sm:$0xff]
    %v30 = vld [vmem:[%s0 + $0x8] sm:$0x3]
    %v31 = vld [vmem:[%s0 + $0x10] sm:$0xff]
    %v32 = vld [vmem:[%s0 + $0x18] sm:$0x3]
    %v33 = vpack.c.bf16 %v30, %v29
    %v34 = vpack.c.bf16 %v32, %v31
    %v35 = vld [vmem:[#allocation2] sm:$0xff]
    %v36 = vld [vmem:[#allocation2 + $0x8] sm:$0xff]
    %v37 = vld [vmem:[#allocation2 + $0x10] sm:$0xff]
    %v38 = vld [vmem:[#allocation2 + $0x18] sm:$0xff]
    %v39 = vld [vmem:[#allocation2 + $0x20] sm:$0xff]
    %v40 = vld [vmem:[#allocation2 + $0x28] sm:$0xff]
    %v41 = vld [vmem:[#allocation2 + $0x30] sm:$0xff]
    %v42 = vld [vmem:[#allocation2 + $0x38] sm:$0xff]
    %v43 = vld [vmem:[%s0 + $0x1] sm:$0xff]
    %v44 = vld [vmem:[%s0 + $0x9] sm:$0x3]
    %v45 = vld [vmem:[%s0 + $0x11] sm:$0xff]
    %v46 = vld [vmem:[%s0 + $0x19] sm:$0x3]
    %v47 = vpack.c.bf16 %v44, %v43
    %v48 = vpack.c.bf16 %v46, %v45
    %s49 = scalar_lea.vmem [#allocation2], 64
    %v50 = vld [vmem:[%s49] sm:$0xff]
    %v51 = vld [vmem:[%s49 + $0x8] sm:$0xff]
    %v52 = vld [vmem:[%s49 + $0x10] sm:$0xff]
    %v53 = vld [vmem:[%s49 + $0x18] sm:$0xff]
    %v54 = vld [vmem:[%s49 + $0x20] sm:$0xff]
    %v55 = vld [vmem:[%s49 + $0x28] sm:$0xff]
    %v56 = vld [vmem:[%s49 + $0x30] sm:$0xff]
    %v57 = vld [vmem:[%s49 + $0x38] sm:$0xff]
    %v60 = vcombine.high %v47, %v47
    %v62 = vunpack.c.l.s4 1966171168
    %v63 = vunpack.c.0.s8 %v62
    %v64 = vlaneseq
    %v65 = vshrl.u32 %v64, 7
    %v66 = vsub.s32 %v63, %v65
    %v67 = vrot.slane %v47, %v66
    %v69 = vunpack.c.l.s4 1966171168
    %v70 = vunpack.c.0.s8 %v69
    %v71 = vlaneseq
    %v72 = vshrl.u32 %v71, 7
    %v73 = vsub.s32 %v70, %v72
    %v74 = vrot.slane %v60, %v73
    %v75 = vcombine.high %v67, %v67
    %v77 = vunpack.c.l.s4 1966171168
    %v78 = vunpack.c.0.s8 %v77
    %v79 = vlaneseq
    %v80 = vshrl.u32 %v79, 7
    %v81 = vsub.s32 %v78, %v80
    %v82 = vrot.slane %v67, %v81
    %v84 = vunpack.c.l.s4 1966171168
    %v85 = vunpack.c.0.s8 %v84
    %v86 = vlaneseq
    %v87 = vshrl.u32 %v86, 7
    %v88 = vsub.s32 %v85, %v87
    %v89 = vrot.slane %v74, %v88
    %v91 = vunpack.c.l.s4 1966171168
    %v92 = vunpack.c.0.s8 %v91
    %v93 = vlaneseq
    %v94 = vshrl.u32 %v93, 7
    %v95 = vsub.s32 %v92, %v94
    %v96 = vrot.slane %v75, %v95
    %v97 = vcombine.high %v82, %v82
    %v98 = vcombine.high %v96, %v96
    %v99 = vcombine.high %v48, %v48
    %v101 = vunpack.c.l.s4 1966171168
    %v102 = vunpack.c.0.s8 %v101
    %v103 = vlaneseq
    %v104 = vshrl.u32 %v103, 7
    %v105 = vsub.s32 %v102, %v104
    %v106 = vrot.slane %v48, %v105
    %v108 = vunpack.c.l.s4 1966171168
    %v109 = vunpack.c.0.s8 %v108
    %v110 = vlaneseq
    %v111 = vshrl.u32 %v110, 7
    %v112 = vsub.s32 %v109, %v111
    %v113 = vrot.slane %v99, %v112
    %v114 = vcombine.high %v106, %v106
    %v116 = vunpack.c.l.s4 1966171168
    %v117 = vunpack.c.0.s8 %v116
    %v118 = vlaneseq
    %v119 = vshrl.u32 %v118, 7
    %v120 = vsub.s32 %v117, %v119
    %v121 = vrot.slane %v106, %v120
    %v123 = vunpack.c.l.s4 1966171168
    %v124 = vunpack.c.0.s8 %v123
    %v125 = vlaneseq
    %v126 = vshrl.u32 %v125, 7
    %v127 = vsub.s32 %v124, %v126
    %v128 = vrot.slane %v113, %v127
    %v130 = vunpack.c.l.s4 1966171168
    %v131 = vunpack.c.0.s8 %v130
    %v132 = vlaneseq
    %v133 = vshrl.u32 %v132, 7
    %v134 = vsub.s32 %v131, %v133
    %v135 = vrot.slane %v114, %v134
    %v136 = vcombine.high %v121, %v121
    %v137 = vcombine.high %v135, %v135
    %v138 = vcombine.low %v82, %v96
    %v139 = vcombine.low %v97, %v98
    %v140 = vcombine.low %v89, %v121
    %v141 = vcombine.low %v135, %v136
    %v143 = vunpack.c.l.s4 1966171168
    %v144 = vunpack.c.0.s8 %v143
    %v145 = vlaneseq
    %v146 = vshrl.u32 %v145, 7
    %v147 = vsub.s32 %v144, %v146
    %v148 = vrot.slane %v138, %v147
    %v150 = vunpack.c.l.s4 1966171168
    %v151 = vunpack.c.0.s8 %v150
    %v152 = vlaneseq
    %v153 = vshrl.u32 %v152, 7
    %v154 = vsub.s32 %v151, %v153
    %v155 = vrot.slane %v139, %v154
    %v157 = vunpack.c.l.s4 1966171168
    %v158 = vunpack.c.0.s8 %v157
    %v159 = vlaneseq
    %v160 = vshrl.u32 %v159, 7
    %v161 = vsub.s32 %v158, %v160
    %v162 = vrot.slane %v140, %v161
    %v164 = vunpack.c.l.s4 1966171168
    %v165 = vunpack.c.0.s8 %v164
    %v166 = vlaneseq
    %v167 = vshrl.u32 %v166, 7
    %v168 = vsub.s32 %v165, %v167
    %v169 = vrot.slane %v141, %v168
    %v170 = vcombine.low %v148, %v155
    %v171 = vcombine.low %v162, %v169
    %v173 = vunpack.c.l.s4 1966171168
    %v174 = vunpack.c.0.s8 %v173
    %v175 = vlaneseq
    %v176 = vshrl.u32 %v175, 7
    %v177 = vsub.s32 %v174, %v176
    %v178 = vrot.slane %v170, %v177
    %v180 = vunpack.c.l.s4 1966171168
    %v181 = vunpack.c.0.s8 %v180
    %v182 = vlaneseq
    %v183 = vshrl.u32 %v182, 7
    %v184 = vsub.s32 %v181, %v183
    %v185 = vrot.slane %v171, %v184
    %v186 = vcombine.low %v178, %v185
    %v187 = vcombine.low %v137, %v128
    %v189 = vunpack.c.l.s4 1966171168
    %v190 = vunpack.c.0.s8 %v189
    %v191 = vlaneseq
    %v192 = vshrl.u32 %v191, 7
    %v193 = vsub.s32 %v190, %v192
    %v194 = vrot.slane %v187, %v193
    %v196 = vunpack.c.l.s4 1966171168
    %v197 = vunpack.c.0.s8 %v196
    %v198 = vlaneseq
    %v199 = vshrl.u32 %v198, 7
    %v200 = vsub.s32 %v197, %v199
    %v201 = vrot.slane %v194, %v200
    %v210 = vunpack.c.l.b16 %v50
    %v211 = vunpack.c.h.b16 %v50
    %v212 = vunpack.c.l.b16 %v51
    %v213 = vunpack.c.h.b16 %v51
    %v214 = vunpack.c.l.b16 %v52
    %v215 = vunpack.c.h.b16 %v52
    %v216 = vunpack.c.l.b16 %v53
    %v217 = vunpack.c.h.b16 %v53
    %v218 = vunpack.c.l.b16 %v54
    %v219 = vunpack.c.h.b16 %v54
    %v220 = vunpack.c.l.b16 %v55
    %v221 = vunpack.c.h.b16 %v55
    %v222 = vunpack.c.l.b16 %v56
    %v223 = vunpack.c.h.b16 %v56
    %v224 = vunpack.c.l.b16 %v57
    %v225 = vunpack.c.h.b16 %v57
    %v226 = vpack.c.b16 %v218, %v210
    %v227 = vpack.c.b16 %v219, %v211
    %v228 = vpack.c.b16 %v220, %v212
    %v229 = vpack.c.b16 %v221, %v213
    %v230 = vpack.c.b16 %v222, %v214
    %v231 = vpack.c.b16 %v223, %v215
    %v232 = vpack.c.b16 %v224, %v216
    %v233 = vpack.c.b16 %v225, %v217
    %vm242 = vcmask 130048
    %v244 = vsel %vm242, %v186, 0
    %v247 = vsel %vm242, %v201, 0
    %249 = vmatprep.subr.bf16.mxu0 0
    %250 = vmatpush1.bf16.msra.mxu0 0
    %251 = vmatprep.subr.bf16.mxu0 0
    %252 = vmatpush1.bf16.msra.mxu0 0
    %253 = vmatprep.subr.bf16.mxu0 0
    %254 = vmatpush1.bf16.msra.mxu0 0
    %255 = vmatprep.subr.bf16.mxu0 0
    %256 = vmatpush1.bf16.msra.mxu0 0
    %257 = vmatprep.subr.bf16.mxu0 0
    %258 = vmatpush1.bf16.msra.mxu0 0
    %259 = vmatprep.subr.bf16.mxu0 0
    %260 = vmatpush1.bf16.msra.mxu0 0
    %261 = vmatprep.subr.bf16.mxu0 0
    %262 = vmatpush1.bf16.msra.mxu0 0
    %263 = vmatprep.subr.bf16.mxu0 %v227
    %264 = vmatpush1.bf16.msra.mxu0 %v226
    %265 = vmatprep.subr.bf16.mxu0 0
    %266 = vmatpush2.bf16.msra.mxu0 0
    %267 = vmatprep.subr.bf16.mxu0 0
    %268 = vmatpush2.bf16.msra.mxu0 0
    %269 = vmatprep.subr.bf16.mxu0 0
    %270 = vmatpush2.bf16.msra.mxu0 0
    %271 = vmatprep.subr.bf16.mxu0 0
    %272 = vmatpush2.bf16.msra.mxu0 0
    %273 = vmatprep.subr.bf16.mxu0 0
    %274 = vmatpush2.bf16.msra.mxu0 0
    %275 = vmatprep.subr.bf16.mxu0 0
    %276 = vmatpush2.bf16.msra.mxu0 0
    %277 = vmatprep.subr.bf16.mxu0 0
    %278 = vmatpush2.bf16.msra.mxu0 0
    %279 = vmatprep.subr.bf16.mxu0 0
    %280 = vmatpush2.bf16.msra.mxu0 0
    %281 = vmatprep.mubr.bf16.mxu0 0
    %282 = vmatmul.mubr.bf16.gmra.mxu0 %v244
    %v283 = vpop.f32.mrf.mxu0
    %v284 = vadd.f32 0.0, %v283
    %v285 = vpop.f32.mrf.mxu0
    %v286 = vadd.f32 0.0, %v285
    %v287 = vpop.f32.mrf.mxu0
    %v288 = vadd.f32 0.0, %v287
    %v289 = vpop.f32.mrf.mxu0
    %v290 = vadd.f32 0.0, %v289
    %291 = vmatprep.mubr.bf16.mxu0 0
    %292 = vmatmul.mubr.bf16.gmra.mxu0 %v247
    %v293 = vpop.f32.mrf.mxu0
    %v294 = vadd.f32 0.0, %v293
    %v295 = vpop.f32.mrf.mxu0
    %v296 = vadd.f32 0.0, %v295
    %v297 = vpop.f32.mrf.mxu0
    %v298 = vpop.f32.mrf.mxu0
    %299 = vdwg.mxu0
    %300 = vmatprep.subr.bf16.mxu0 0
    %301 = vmatpush1.bf16.msra.mxu0 0
    %302 = vmatprep.subr.bf16.mxu0 0
    %303 = vmatpush1.bf16.msra.mxu0 0
    %304 = vmatprep.subr.bf16.mxu0 0
    %305 = vmatpush1.bf16.msra.mxu0 0
    %306 = vmatprep.subr.bf16.mxu0 0
    %307 = vmatpush1.bf16.msra.mxu0 0
    %308 = vmatprep.subr.bf16.mxu0 0
    %309 = vmatpush1.bf16.msra.mxu0 0
    %310 = vmatprep.subr.bf16.mxu0 0
    %311 = vmatpush1.bf16.msra.mxu0 0
    %312 = vmatprep.subr.bf16.mxu0 0
    %313 = vmatpush1.bf16.msra.mxu0 0
    %314 = vmatprep.subr.bf16.mxu0 %v229
    %315 = vmatpush1.bf16.msra.mxu0 %v228
    %316 = vmatprep.subr.bf16.mxu0 0
    %317 = vmatpush2.bf16.msra.mxu0 0
    %318 = vmatprep.subr.bf16.mxu0 0
    %319 = vmatpush2.bf16.msra.mxu0 0
    %320 = vmatprep.subr.bf16.mxu0 0
    %321 = vmatpush2.bf16.msra.mxu0 0
    %322 = vmatprep.subr.bf16.mxu0 0
    %323 = vmatpush2.bf16.msra.mxu0 0
    %324 = vmatprep.subr.bf16.mxu0 0
    %325 = vmatpush2.bf16.msra.mxu0 0
    %326 = vmatprep.subr.bf16.mxu0 0
    %327 = vmatpush2.bf16.msra.mxu0 0
    %328 = vmatprep.subr.bf16.mxu0 0
    %329 = vmatpush2.bf16.msra.mxu0 0
    %330 = vmatprep.subr.bf16.mxu0 0
    %331 = vmatpush2.bf16.msra.mxu0 0
    %332 = vmatprep.mubr.bf16.mxu0 0
    %333 = vmatmul.mubr.bf16.gmra.mxu0 %v244
    %v334 = vpop.f32.mrf.mxu0
    %v335 = vadd.f32 0.0, %v334
    %v336 = vpop.f32.mrf.mxu0
    %v337 = vadd.f32 0.0, %v336
    %v338 = vpop.f32.mrf.mxu0
    %v339 = vadd.f32 0.0, %v338
    %v340 = vpop.f32.mrf.mxu0
    %v341 = vadd.f32 0.0, %v340
    %342 = vmatprep.mubr.bf16.mxu0 0
    %343 = vmatmul.mubr.bf16.gmra.mxu0 %v247
    %v344 = vpop.f32.mrf.mxu0
    %v345 = vadd.f32 0.0, %v344
    %v346 = vpop.f32.mrf.mxu0
    %v347 = vadd.f32 0.0, %v346
    %v348 = vpop.f32.mrf.mxu0
    %v349 = vpop.f32.mrf.mxu0
    %350 = vdwg.mxu0
    %351 = vmatprep.subr.bf16.mxu0 0
    %352 = vmatpush1.bf16.msra.mxu0 0
    %353 = vmatprep.subr.bf16.mxu0 0
    %354 = vmatpush1.bf16.msra.mxu0 0
    %355 = vmatprep.subr.bf16.mxu0 0
    %356 = vmatpush1.bf16.msra.mxu0 0
    %357 = vmatprep.subr.bf16.mxu0 0
    %358 = vmatpush1.bf16.msra.mxu0 0
    %359 = vmatprep.subr.bf16.mxu0 0
    %360 = vmatpush1.bf16.msra.mxu0 0
    %361 = vmatprep.subr.bf16.mxu0 0
    %362 = vmatpush1.bf16.msra.mxu0 0
    %363 = vmatprep.subr.bf16.mxu0 0
    %364 = vmatpush1.bf16.msra.mxu0 0
    %365 = vmatprep.subr.bf16.mxu0 %v231
    %366 = vmatpush1.bf16.msra.mxu0 %v230
    %367 = vmatprep.subr.bf16.mxu0 0
    %368 = vmatpush2.bf16.msra.mxu0 0
    %369 = vmatprep.subr.bf16.mxu0 0
    %370 = vmatpush2.bf16.msra.mxu0 0
    %371 = vmatprep.subr.bf16.mxu0 0
    %372 = vmatpush2.bf16.msra.mxu0 0
    %373 = vmatprep.subr.bf16.mxu0 0
    %374 = vmatpush2.bf16.msra.mxu0 0
    %375 = vmatprep.subr.bf16.mxu0 0
    %376 = vmatpush2.bf16.msra.mxu0 0
    %377 = vmatprep.subr.bf16.mxu0 0
    %378 = vmatpush2.bf16.msra.mxu0 0
    %379 = vmatprep.subr.bf16.mxu0 0
    %380 = vmatpush2.bf16.msra.mxu0 0
    %381 = vmatprep.subr.bf16.mxu0 0
    %382 = vmatpush2.bf16.msra.mxu0 0
    %383 = vmatprep.mubr.bf16.mxu0 0
    %384 = vmatmul.mubr.bf16.gmra.mxu0 %v244
    %v385 = vpop.f32.mrf.mxu0
    %v386 = vadd.f32 0.0, %v385
    %v387 = vpop.f32.mrf.mxu0
    %v388 = vadd.f32 0.0, %v387
    %v389 = vpop.f32.mrf.mxu0
    %v390 = vadd.f32 0.0, %v389
    %v391 = vpop.f32.mrf.mxu0
    %v392 = vadd.f32 0.0, %v391
    %393 = vmatprep.mubr.bf16.mxu0 0
    %394 = vmatmul.mubr.bf16.gmra.mxu0 %v247
    %v395 = vpop.f32.mrf.mxu0
    %v396 = vadd.f32 0.0, %v395
    %v397 = vpop.f32.mrf.mxu0
    %v398 = vadd.f32 0.0, %v397
    %v399 = vpop.f32.mrf.mxu0
    %v400 = vpop.f32.mrf.mxu0
    %401 = vdwg.mxu0
    %402 = vmatprep.subr.bf16.mxu0 0
    %403 = vmatpush1.bf16.msra.mxu0 0
    %404 = vmatprep.subr.bf16.mxu0 0
    %405 = vmatpush1.bf16.msra.mxu0 0
    %406 = vmatprep.subr.bf16.mxu0 0
    %407 = vmatpush1.bf16.msra.mxu0 0
    %408 = vmatprep.subr.bf16.mxu0 0
    %409 = vmatpush1.bf16.msra.mxu0 0
    %410 = vmatprep.subr.bf16.mxu0 0
    %411 = vmatpush1.bf16.msra.mxu0 0
    %412 = vmatprep.subr.bf16.mxu0 0
    %413 = vmatpush1.bf16.msra.mxu0 0
    %414 = vmatprep.subr.bf16.mxu0 0
    %415 = vmatpush1.bf16.msra.mxu0 0
    %416 = vmatprep.subr.bf16.mxu0 %v233
    %417 = vmatpush1.bf16.msra.mxu0 %v232
    %418 = vmatprep.subr.bf16.mxu0 0
    %419 = vmatpush2.bf16.msra.mxu0 0
    %420 = vmatprep.subr.bf16.mxu0 0
    %421 = vmatpush2.bf16.msra.mxu0 0
    %422 = vmatprep.subr.bf16.mxu0 0
    %423 = vmatpush2.bf16.msra.mxu0 0
    %424 = vmatprep.subr.bf16.mxu0 0
    %425 = vmatpush2.bf16.msra.mxu0 0
    %426 = vmatprep.subr.bf16.mxu0 0
    %427 = vmatpush2.bf16.msra.mxu0 0
    %428 = vmatprep.subr.bf16.mxu0 0
    %429 = vmatpush2.bf16.msra.mxu0 0
    %430 = vmatprep.subr.bf16.mxu0 0
    %431 = vmatpush2.bf16.msra.mxu0 0
    %432 = vmatprep.subr.bf16.mxu0 0
    %433 = vmatpush2.bf16.msra.mxu0 0
    %434 = vmatprep.mubr.bf16.mxu0 0
    %435 = vmatmul.mubr.bf16.gmra.mxu0 %v244
    %v436 = vpop.f32.mrf.mxu0
    %v437 = vadd.f32 0.0, %v436
    %v438 = vpop.f32.mrf.mxu0
    %v439 = vadd.f32 0.0, %v438
    %v440 = vpop.f32.mrf.mxu0
    %v441 = vadd.f32 0.0, %v440
    %v442 = vpop.f32.mrf.mxu0
    %v443 = vadd.f32 0.0, %v442
    %444 = vmatprep.mubr.bf16.mxu0 0
    %445 = vmatmul.mubr.bf16.gmra.mxu0 %v247
    %v446 = vpop.f32.mrf.mxu0
    %v447 = vadd.f32 0.0, %v446
    %v448 = vpop.f32.mrf.mxu0
    %v449 = vadd.f32 0.0, %v448
    %v450 = vpop.f32.mrf.mxu0
    %v451 = vpop.f32.mrf.mxu0
    %452 = vdwg.mxu0
    %v455 = vcombine.high %v33, %v33
    %v457 = vunpack.c.l.s4 1966171168
    %v458 = vunpack.c.0.s8 %v457
    %v459 = vlaneseq
    %v460 = vshrl.u32 %v459, 7
    %v461 = vsub.s32 %v458, %v460
    %v462 = vrot.slane %v33, %v461
    %v464 = vunpack.c.l.s4 1966171168
    %v465 = vunpack.c.0.s8 %v464
    %v466 = vlaneseq
    %v467 = vshrl.u32 %v466, 7
    %v468 = vsub.s32 %v465, %v467
    %v469 = vrot.slane %v455, %v468
    %v470 = vcombine.high %v462, %v462
    %v472 = vunpack.c.l.s4 1966171168
    %v473 = vunpack.c.0.s8 %v472
    %v474 = vlaneseq
    %v475 = vshrl.u32 %v474, 7
    %v476 = vsub.s32 %v473, %v475
    %v477 = vrot.slane %v462, %v476
    %v479 = vunpack.c.l.s4 1966171168
    %v480 = vunpack.c.0.s8 %v479
    %v481 = vlaneseq
    %v482 = vshrl.u32 %v481, 7
    %v483 = vsub.s32 %v480, %v482
    %v484 = vrot.slane %v469, %v483
    %v486 = vunpack.c.l.s4 1966171168
    %v487 = vunpack.c.0.s8 %v486
    %v488 = vlaneseq
    %v489 = vshrl.u32 %v488, 7
    %v490 = vsub.s32 %v487, %v489
    %v491 = vrot.slane %v470, %v490
    %v492 = vcombine.high %v477, %v477
    %v493 = vcombine.high %v491, %v491
    %v494 = vcombine.high %v34, %v34
    %v496 = vunpack.c.l.s4 1966171168
    %v497 = vunpack.c.0.s8 %v496
    %v498 = vlaneseq
    %v499 = vshrl.u32 %v498, 7
    %v500 = vsub.s32 %v497, %v499
    %v501 = vrot.slane %v34, %v500
    %v503 = vunpack.c.l.s4 1966171168
    %v504 = vunpack.c.0.s8 %v503
    %v505 = vlaneseq
    %v506 = vshrl.u32 %v505, 7
    %v507 = vsub.s32 %v504, %v506
    %v508 = vrot.slane %v494, %v507
    %v509 = vcombine.high %v501, %v501
    %v511 = vunpack.c.l.s4 1966171168
    %v512 = vunpack.c.0.s8 %v511
    %v513 = vlaneseq
    %v514 = vshrl.u32 %v513, 7
    %v515 = vsub.s32 %v512, %v514
    %v516 = vrot.slane %v501, %v515
    %v518 = vunpack.c.l.s4 1966171168
    %v519 = vunpack.c.0.s8 %v518
    %v520 = vlaneseq
    %v521 = vshrl.u32 %v520, 7
    %v522 = vsub.s32 %v519, %v521
    %v523 = vrot.slane %v508, %v522
    %v525 = vunpack.c.l.s4 1966171168
    %v526 = vunpack.c.0.s8 %v525
    %v527 = vlaneseq
    %v528 = vshrl.u32 %v527, 7
    %v529 = vsub.s32 %v526, %v528
    %v530 = vrot.slane %v509, %v529
    %v531 = vcombine.high %v516, %v516
    %v532 = vcombine.high %v530, %v530
    %v533 = vcombine.low %v477, %v491
    %v534 = vcombine.low %v492, %v493
    %v535 = vcombine.low %v484, %v516
    %v536 = vcombine.low %v530, %v531
    %v538 = vunpack.c.l.s4 1966171168
    %v539 = vunpack.c.0.s8 %v538
    %v540 = vlaneseq
    %v541 = vshrl.u32 %v540, 7
    %v542 = vsub.s32 %v539, %v541
    %v543 = vrot.slane %v533, %v542
    %v545 = vunpack.c.l.s4 1966171168
    %v546 = vunpack.c.0.s8 %v545
    %v547 = vlaneseq
    %v548 = vshrl.u32 %v547, 7
    %v549 = vsub.s32 %v546, %v548
    %v550 = vrot.slane %v534, %v549
    %v552 = vunpack.c.l.s4 1966171168
    %v553 = vunpack.c.0.s8 %v552
    %v554 = vlaneseq
    %v555 = vshrl.u32 %v554, 7
    %v556 = vsub.s32 %v553, %v555
    %v557 = vrot.slane %v535, %v556
    %v559 = vunpack.c.l.s4 1966171168
    %v560 = vunpack.c.0.s8 %v559
    %v561 = vlaneseq
    %v562 = vshrl.u32 %v561, 7
    %v563 = vsub.s32 %v560, %v562
    %v564 = vrot.slane %v536, %v563
    %v565 = vcombine.low %v543, %v550
    %v566 = vcombine.low %v557, %v564
    %v568 = vunpack.c.l.s4 1966171168
    %v569 = vunpack.c.0.s8 %v568
    %v570 = vlaneseq
    %v571 = vshrl.u32 %v570, 7
    %v572 = vsub.s32 %v569, %v571
    %v573 = vrot.slane %v565, %v572
    %v575 = vunpack.c.l.s4 1966171168
    %v576 = vunpack.c.0.s8 %v575
    %v577 = vlaneseq
    %v578 = vshrl.u32 %v577, 7
    %v579 = vsub.s32 %v576, %v578
    %v580 = vrot.slane %v566, %v579
    %v581 = vcombine.low %v573, %v580
    %v582 = vcombine.low %v532, %v523
    %v584 = vunpack.c.l.s4 1966171168
    %v585 = vunpack.c.0.s8 %v584
    %v586 = vlaneseq
    %v587 = vshrl.u32 %v586, 7
    %v588 = vsub.s32 %v585, %v587
    %v589 = vrot.slane %v582, %v588
    %v591 = vunpack.c.l.s4 1966171168
    %v592 = vunpack.c.0.s8 %v591
    %v593 = vlaneseq
    %v594 = vshrl.u32 %v593, 7
    %v595 = vsub.s32 %v592, %v594
    %v596 = vrot.slane %v589, %v595
    %v605 = vunpack.c.l.b16 %v35
    %v606 = vunpack.c.h.b16 %v35
    %v607 = vunpack.c.l.b16 %v36
    %v608 = vunpack.c.h.b16 %v36
    %v609 = vunpack.c.l.b16 %v37
    %v610 = vunpack.c.h.b16 %v37
    %v611 = vunpack.c.l.b16 %v38
    %v612 = vunpack.c.h.b16 %v38
    %v613 = vunpack.c.l.b16 %v39
    %v614 = vunpack.c.h.b16 %v39
    %v615 = vunpack.c.l.b16 %v40
    %v616 = vunpack.c.h.b16 %v40
    %v617 = vunpack.c.l.b16 %v41
    %v618 = vunpack.c.h.b16 %v41
    %v619 = vunpack.c.l.b16 %v42
    %v620 = vunpack.c.h.b16 %v42
    %v621 = vpack.c.b16 %v613, %v605
    %v622 = vpack.c.b16 %v614, %v606
    %v623 = vpack.c.b16 %v615, %v607
    %v624 = vpack.c.b16 %v616, %v608
    %v625 = vpack.c.b16 %v617, %v609
    %v626 = vpack.c.b16 %v618, %v610
    %v627 = vpack.c.b16 %v619, %v611
    %v628 = vpack.c.b16 %v620, %v612
    %v638 = vsel %vm242, %v581, 0
    %v641 = vsel %vm242, %v596, 0
    %643 = vmatprep.subr.bf16.mxu0 0
    %644 = vmatpush1.bf16.msra.mxu0 0
    %645 = vmatprep.subr.bf16.mxu0 0
    %646 = vmatpush1.bf16.msra.mxu0 0
    %647 = vmatprep.subr.bf16.mxu0 0
    %648 = vmatpush1.bf16.msra.mxu0 0
    %649 = vmatprep.subr.bf16.mxu0 0
    %650 = vmatpush1.bf16.msra.mxu0 0
    %651 = vmatprep.subr.bf16.mxu0 0
    %652 = vmatpush1.bf16.msra.mxu0 0
    %653 = vmatprep.subr.bf16.mxu0 0
    %654 = vmatpush1.bf16.msra.mxu0 0
    %655 = vmatprep.subr.bf16.mxu0 0
    %656 = vmatpush1.bf16.msra.mxu0 0
    %657 = vmatprep.subr.bf16.mxu0 %v622
    %658 = vmatpush1.bf16.msra.mxu0 %v621
    %659 = vmatprep.subr.bf16.mxu0 0
    %660 = vmatpush2.bf16.msra.mxu0 0
    %661 = vmatprep.subr.bf16.mxu0 0
    %662 = vmatpush2.bf16.msra.mxu0 0
    %663 = vmatprep.subr.bf16.mxu0 0
    %664 = vmatpush2.bf16.msra.mxu0 0
    %665 = vmatprep.subr.bf16.mxu0 0
    %666 = vmatpush2.bf16.msra.mxu0 0
    %667 = vmatprep.subr.bf16.mxu0 0
    %668 = vmatpush2.bf16.msra.mxu0 0
    %669 = vmatprep.subr.bf16.mxu0 0
    %670 = vmatpush2.bf16.msra.mxu0 0
    %671 = vmatprep.subr.bf16.mxu0 0
    %672 = vmatpush2.bf16.msra.mxu0 0
    %673 = vmatprep.subr.bf16.mxu0 0
    %674 = vmatpush2.bf16.msra.mxu0 0
    %675 = vmatprep.mubr.bf16.mxu0 0
    %676 = vmatmul.mubr.bf16.gmra.mxu0 %v638
    %v677 = vpop.f32.mrf.mxu0
    %v678 = vadd.f32 %v284, %v677
    %v679 = vpop.f32.mrf.mxu0
    %v680 = vadd.f32 %v286, %v679
    %v681 = vpop.f32.mrf.mxu0
    %v682 = vadd.f32 %v288, %v681
    %v683 = vpop.f32.mrf.mxu0
    %v684 = vadd.f32 %v290, %v683
    %685 = vmatprep.mubr.bf16.mxu0 0
    %686 = vmatmul.mubr.bf16.gmra.mxu0 %v641
    %v687 = vpop.f32.mrf.mxu0
    %v688 = vadd.f32 %v294, %v687
    %v689 = vpop.f32.mrf.mxu0
    %v690 = vadd.f32 %v296, %v689
    %v691 = vpop.f32.mrf.mxu0
    %v692 = vpop.f32.mrf.mxu0
    %693 = vdwg.mxu0
    %694 = vmatprep.subr.bf16.mxu0 0
    %695 = vmatpush1.bf16.msra.mxu0 0
    %696 = vmatprep.subr.bf16.mxu0 0
    %697 = vmatpush1.bf16.msra.mxu0 0
    %698 = vmatprep.subr.bf16.mxu0 0
    %699 = vmatpush1.bf16.msra.mxu0 0
    %700 = vmatprep.subr.bf16.mxu0 0
    %701 = vmatpush1.bf16.msra.mxu0 0
    %702 = vmatprep.subr.bf16.mxu0 0
    %703 = vmatpush1.bf16.msra.mxu0 0
    %704 = vmatprep.subr.bf16.mxu0 0
    %705 = vmatpush1.bf16.msra.mxu0 0
    %706 = vmatprep.subr.bf16.mxu0 0
    %707 = vmatpush1.bf16.msra.mxu0 0
    %708 = vmatprep.subr.bf16.mxu0 %v624
    %709 = vmatpush1.bf16.msra.mxu0 %v623
    %710 = vmatprep.subr.bf16.mxu0 0
    %711 = vmatpush2.bf16.msra.mxu0 0
    %712 = vmatprep.subr.bf16.mxu0 0
    %713 = vmatpush2.bf16.msra.mxu0 0
    %714 = vmatprep.subr.bf16.mxu0 0
    %715 = vmatpush2.bf16.msra.mxu0 0
    %716 = vmatprep.subr.bf16.mxu0 0
    %717 = vmatpush2.bf16.msra.mxu0 0
    %718 = vmatprep.subr.bf16.mxu0 0
    %719 = vmatpush2.bf16.msra.mxu0 0
    %720 = vmatprep.subr.bf16.mxu0 0
    %721 = vmatpush2.bf16.msra.mxu0 0
    %722 = vmatprep.subr.bf16.mxu0 0
    %723 = vmatpush2.bf16.msra.mxu0 0
    %724 = vmatprep.subr.bf16.mxu0 0
    %725 = vmatpush2.bf16.msra.mxu0 0
    %726 = vmatprep.mubr.bf16.mxu0 0
    %727 = vmatmul.mubr.bf16.gmra.mxu0 %v638
    %v728 = vpop.f32.mrf.mxu0
    %v729 = vadd.f32 %v335, %v728
    %v730 = vpop.f32.mrf.mxu0
    %v731 = vadd.f32 %v337, %v730
    %v732 = vpop.f32.mrf.mxu0
    %v733 = vadd.f32 %v339, %v732
    %v734 = vpop.f32.mrf.mxu0
    %v735 = vadd.f32 %v341, %v734
    %736 = vmatprep.mubr.bf16.mxu0 0
    %737 = vmatmul.mubr.bf16.gmra.mxu0 %v641
    %v738 = vpop.f32.mrf.mxu0
    %v739 = vadd.f32 %v345, %v738
    %v740 = vpop.f32.mrf.mxu0
    %v741 = vadd.f32 %v347, %v740
    %v742 = vpop.f32.mrf.mxu0
    %v743 = vpop.f32.mrf.mxu0
    %744 = vdwg.mxu0
    %745 = vmatprep.subr.bf16.mxu0 0
    %746 = vmatpush1.bf16.msra.mxu0 0
    %747 = vmatprep.subr.bf16.mxu0 0
    %748 = vmatpush1.bf16.msra.mxu0 0
    %749 = vmatprep.subr.bf16.mxu0 0
    %750 = vmatpush1.bf16.msra.mxu0 0
    %751 = vmatprep.subr.bf16.mxu0 0
    %752 = vmatpush1.bf16.msra.mxu0 0
    %753 = vmatprep.subr.bf16.mxu0 0
    %754 = vmatpush1.bf16.msra.mxu0 0
    %755 = vmatprep.subr.bf16.mxu0 0
    %756 = vmatpush1.bf16.msra.mxu0 0
    %757 = vmatprep.subr.bf16.mxu0 0
    %758 = vmatpush1.bf16.msra.mxu0 0
    %759 = vmatprep.subr.bf16.mxu0 %v626
    %760 = vmatpush1.bf16.msra.mxu0 %v625
    %761 = vmatprep.subr.bf16.mxu0 0
    %762 = vmatpush2.bf16.msra.mxu0 0
    %763 = vmatprep.subr.bf16.mxu0 0
    %764 = vmatpush2.bf16.msra.mxu0 0
    %765 = vmatprep.subr.bf16.mxu0 0
    %766 = vmatpush2.bf16.msra.mxu0 0
    %767 = vmatprep.subr.bf16.mxu0 0
    %768 = vmatpush2.bf16.msra.mxu0 0
    %769 = vmatprep.subr.bf16.mxu0 0
    %770 = vmatpush2.bf16.msra.mxu0 0
    %771 = vmatprep.subr.bf16.mxu0 0
    %772 = vmatpush2.bf16.msra.mxu0 0
    %773 = vmatprep.subr.bf16.mxu0 0
    %774 = vmatpush2.bf16.msra.mxu0 0
    %775 = vmatprep.subr.bf16.mxu0 0
    %776 = vmatpush2.bf16.msra.mxu0 0
    %777 = vmatprep.mubr.bf16.mxu0 0
    %778 = vmatmul.mubr.bf16.gmra.mxu0 %v638
    %v779 = vpop.f32.mrf.mxu0
    %v780 = vadd.f32 %v386, %v779
    %v781 = vpop.f32.mrf.mxu0
    %v782 = vadd.f32 %v388, %v781
    %v783 = vpop.f32.mrf.mxu0
    %v784 = vadd.f32 %v390, %v783
    %v785 = vpop.f32.mrf.mxu0
    %v786 = vadd.f32 %v392, %v785
    %787 = vmatprep.mubr.bf16.mxu0 0
    %788 = vmatmul.mubr.bf16.gmra.mxu0 %v641
    %v789 = vpop.f32.mrf.mxu0
    %v790 = vadd.f32 %v396, %v789
    %v791 = vpop.f32.mrf.mxu0
    %v792 = vadd.f32 %v398, %v791
    %v793 = vpop.f32.mrf.mxu0
    %v794 = vpop.f32.mrf.mxu0
    %795 = vdwg.mxu0
    %796 = vmatprep.subr.bf16.mxu0 0
    %797 = vmatpush1.bf16.msra.mxu0 0
    %798 = vmatprep.subr.bf16.mxu0 0
    %799 = vmatpush1.bf16.msra.mxu0 0
    %800 = vmatprep.subr.bf16.mxu0 0
    %801 = vmatpush1.bf16.msra.mxu0 0
    %802 = vmatprep.subr.bf16.mxu0 0
    %803 = vmatpush1.bf16.msra.mxu0 0
    %804 = vmatprep.subr.bf16.mxu0 0
    %805 = vmatpush1.bf16.msra.mxu0 0
    %806 = vmatprep.subr.bf16.mxu0 0
    %807 = vmatpush1.bf16.msra.mxu0 0
    %808 = vmatprep.subr.bf16.mxu0 0
    %809 = vmatpush1.bf16.msra.mxu0 0
    %810 = vmatprep.subr.bf16.mxu0 %v628
    %811 = vmatpush1.bf16.msra.mxu0 %v627
    %812 = vmatprep.subr.bf16.mxu0 0
    %813 = vmatpush2.bf16.msra.mxu0 0
    %814 = vmatprep.subr.bf16.mxu0 0
    %815 = vmatpush2.bf16.msra.mxu0 0
    %816 = vmatprep.subr.bf16.mxu0 0
    %817 = vmatpush2.bf16.msra.mxu0 0
    %818 = vmatprep.subr.bf16.mxu0 0
    %819 = vmatpush2.bf16.msra.mxu0 0
    %820 = vmatprep.subr.bf16.mxu0 0
    %821 = vmatpush2.bf16.msra.mxu0 0
    %822 = vmatprep.subr.bf16.mxu0 0
    %823 = vmatpush2.bf16.msra.mxu0 0
    %824 = vmatprep.subr.bf16.mxu0 0
    %825 = vmatpush2.bf16.msra.mxu0 0
    %826 = vmatprep.subr.bf16.mxu0 0
    %827 = vmatpush2.bf16.msra.mxu0 0
    %828 = vmatprep.mubr.bf16.mxu0 0
    %829 = vmatmul.mubr.bf16.gmra.mxu0 %v638
    %v830 = vpop.f32.mrf.mxu0
    %v831 = vadd.f32 %v437, %v830
    %v832 = vpop.f32.mrf.mxu0
    %v833 = vadd.f32 %v439, %v832
    %v834 = vpop.f32.mrf.mxu0
    %v835 = vadd.f32 %v441, %v834
    %v836 = vpop.f32.mrf.mxu0
    %v837 = vadd.f32 %v443, %v836
    %838 = vmatprep.mubr.bf16.mxu0 0
    %839 = vmatmul.mubr.bf16.gmra.mxu0 %v641
    %v840 = vpop.f32.mrf.mxu0
    %v841 = vadd.f32 %v447, %v840
    %v842 = vpop.f32.mrf.mxu0
    %v843 = vadd.f32 %v449, %v842
    %v844 = vpop.f32.mrf.mxu0
    %v845 = vpop.f32.mrf.mxu0
    %846 = vdwg.mxu0
    %v871 = vcombine.low %v678, %v680
    %v872 = vcombine.high %v678, %v680
    %v873 = vcombine.low %v729, %v731
    %v874 = vcombine.high %v729, %v731
    %v876 = vunpack.c.l.s4 1983009808
    %v877 = vunpack.c.0.s8 %v876
    %v878 = vlaneseq
    %v879 = vshrl.u32 %v878, 7
    %v880 = vsub.s32 %v877, %v879
    %v881 = vrot.slane %v871, %v880
    %v883 = vunpack.c.l.s4 1983009808
    %v884 = vunpack.c.0.s8 %v883
    %v885 = vlaneseq
    %v886 = vshrl.u32 %v885, 7
    %v887 = vsub.s32 %v884, %v886
    %v888 = vrot.slane %v872, %v887
    %v890 = vunpack.c.l.s4 1983009808
    %v891 = vunpack.c.0.s8 %v890
    %v892 = vlaneseq
    %v893 = vshrl.u32 %v892, 7
    %v894 = vsub.s32 %v891, %v893
    %v895 = vrot.slane %v873, %v894
    %v897 = vunpack.c.l.s4 1983009808
    %v898 = vunpack.c.0.s8 %v897
    %v899 = vlaneseq
    %v900 = vshrl.u32 %v899, 7
    %v901 = vsub.s32 %v898, %v900
    %v902 = vrot.slane %v874, %v901
    %v903 = vcombine.low %v881, %v895
    %v904 = vcombine.high %v881, %v895
    %v905 = vcombine.low %v888, %v902
    %v906 = vcombine.high %v888, %v902
    %v907 = vcombine.low %v780, %v782
    %v908 = vcombine.high %v780, %v782
    %v909 = vcombine.low %v831, %v833
    %v910 = vcombine.high %v831, %v833
    %v912 = vunpack.c.l.s4 1983009808
    %v913 = vunpack.c.0.s8 %v912
    %v914 = vlaneseq
    %v915 = vshrl.u32 %v914, 7
    %v916 = vsub.s32 %v913, %v915
    %v917 = vrot.slane %v907, %v916
    %v919 = vunpack.c.l.s4 1983009808
    %v920 = vunpack.c.0.s8 %v919
    %v921 = vlaneseq
    %v922 = vshrl.u32 %v921, 7
    %v923 = vsub.s32 %v920, %v922
    %v924 = vrot.slane %v908, %v923
    %v926 = vunpack.c.l.s4 1983009808
    %v927 = vunpack.c.0.s8 %v926
    %v928 = vlaneseq
    %v929 = vshrl.u32 %v928, 7
    %v930 = vsub.s32 %v927, %v929
    %v931 = vrot.slane %v909, %v930
    %v933 = vunpack.c.l.s4 1983009808
    %v934 = vunpack.c.0.s8 %v933
    %v935 = vlaneseq
    %v936 = vshrl.u32 %v935, 7
    %v937 = vsub.s32 %v934, %v936
    %v938 = vrot.slane %v910, %v937
    %v939 = vcombine.low %v917, %v931
    %v940 = vcombine.high %v917, %v931
    %v941 = vcombine.low %v924, %v938
    %v942 = vcombine.high %v924, %v938
    %v943 = vcombine.low %v682, %v684
    %v944 = vcombine.high %v682, %v684
    %v945 = vcombine.low %v733, %v735
    %v946 = vcombine.high %v733, %v735
    %v948 = vunpack.c.l.s4 1983009808
    %v949 = vunpack.c.0.s8 %v948
    %v950 = vlaneseq
    %v951 = vshrl.u32 %v950, 7
    %v952 = vsub.s32 %v949, %v951
    %v953 = vrot.slane %v943, %v952
    %v955 = vunpack.c.l.s4 1983009808
    %v956 = vunpack.c.0.s8 %v955
    %v957 = vlaneseq
    %v958 = vshrl.u32 %v957, 7
    %v959 = vsub.s32 %v956, %v958
    %v960 = vrot.slane %v944, %v959
    %v962 = vunpack.c.l.s4 1983009808
    %v963 = vunpack.c.0.s8 %v962
    %v964 = vlaneseq
    %v965 = vshrl.u32 %v964, 7
    %v966 = vsub.s32 %v963, %v965
    %v967 = vrot.slane %v945, %v966
    %v969 = vunpack.c.l.s4 1983009808
    %v970 = vunpack.c.0.s8 %v969
    %v971 = vlaneseq
    %v972 = vshrl.u32 %v971, 7
    %v973 = vsub.s32 %v970, %v972
    %v974 = vrot.slane %v946, %v973
    %v975 = vcombine.low %v953, %v967
    %v976 = vcombine.high %v953, %v967
    %v977 = vcombine.low %v960, %v974
    %v978 = vcombine.high %v960, %v974
    %v979 = vcombine.low %v784, %v786
    %v980 = vcombine.high %v784, %v786
    %v981 = vcombine.low %v835, %v837
    %v982 = vcombine.high %v835, %v837
    %v984 = vunpack.c.l.s4 1983009808
    %v985 = vunpack.c.0.s8 %v984
    %v986 = vlaneseq
    %v987 = vshrl.u32 %v986, 7
    %v988 = vsub.s32 %v985, %v987
    %v989 = vrot.slane %v979, %v988
    %v991 = vunpack.c.l.s4 1983009808
    %v992 = vunpack.c.0.s8 %v991
    %v993 = vlaneseq
    %v994 = vshrl.u32 %v993, 7
    %v995 = vsub.s32 %v992, %v994
    %v996 = vrot.slane %v980, %v995
    %v998 = vunpack.c.l.s4 1983009808
    %v999 = vunpack.c.0.s8 %v998
    %v1000 = vlaneseq
    %v1001 = vshrl.u32 %v1000, 7
    %v1002 = vsub.s32 %v999, %v1001
    %v1003 = vrot.slane %v981, %v1002
    %v1005 = vunpack.c.l.s4 1983009808
    %v1006 = vunpack.c.0.s8 %v1005
    %v1007 = vlaneseq
    %v1008 = vshrl.u32 %v1007, 7
    %v1009 = vsub.s32 %v1006, %v1008
    %v1010 = vrot.slane %v982, %v1009
    %v1011 = vcombine.low %v989, %v1003
    %v1012 = vcombine.high %v989, %v1003
    %v1013 = vcombine.low %v996, %v1010
    %v1014 = vcombine.high %v996, %v1010
    %v1015 = vcombine.low %v688, %v690
    %v1016 = vcombine.low %v739, %v741
    %v1018 = vunpack.c.l.s4 1983009808
    %v1019 = vunpack.c.0.s8 %v1018
    %v1020 = vlaneseq
    %v1021 = vshrl.u32 %v1020, 7
    %v1022 = vsub.s32 %v1019, %v1021
    %v1023 = vrot.slane %v1015, %v1022
    %v1025 = vunpack.c.l.s4 1983009808
    %v1026 = vunpack.c.0.s8 %v1025
    %v1027 = vlaneseq
    %v1028 = vshrl.u32 %v1027, 7
    %v1029 = vsub.s32 %v1026, %v1028
    %v1030 = vrot.slane %v1016, %v1029
    %v1031 = vcombine.low %v1023, %v1030
    %v1032 = vcombine.high %v1023, %v1030
    %v1033 = vcombine.low %v790, %v792
    %v1034 = vcombine.low %v841, %v843
    %v1036 = vunpack.c.l.s4 1983009808
    %v1037 = vunpack.c.0.s8 %v1036
    %v1038 = vlaneseq
    %v1039 = vshrl.u32 %v1038, 7
    %v1040 = vsub.s32 %v1037, %v1039
    %v1041 = vrot.slane %v1033, %v1040
    %v1043 = vunpack.c.l.s4 1983009808
    %v1044 = vunpack.c.0.s8 %v1043
    %v1045 = vlaneseq
    %v1046 = vshrl.u32 %v1045, 7
    %v1047 = vsub.s32 %v1044, %v1046
    %v1048 = vrot.slane %v1034, %v1047
    %v1049 = vcombine.low %v1041, %v1048
    %v1050 = vcombine.high %v1041, %v1048
    %v1071 = vld [vmem:[%s0 + $0x2] sm:$0xff]
    %v1072 = vld [vmem:[%s0 + $0xa] sm:$0x3]
    %v1073 = vld [vmem:[%s0 + $0x12] sm:$0xff]
    %v1074 = vld [vmem:[%s0 + $0x1a] sm:$0x3]
    %v1075 = vpack.c.bf16 %v1072, %v1071
    %v1076 = vpack.c.bf16 %v1074, %v1073
    %s1077 = scalar_lea.vmem [#allocation2], 128
    %v1078 = vld [vmem:[%s1077] sm:$0xff]
    %v1079 = vld [vmem:[%s1077 + $0x8] sm:$0xff]
    %v1080 = vld [vmem:[%s1077 + $0x10] sm:$0xff]
    %v1081 = vld [vmem:[%s1077 + $0x18] sm:$0xff]
    %v1082 = vld [vmem:[%s1077 + $0x20] sm:$0xff]
    %v1083 = vld [vmem:[%s1077 + $0x28] sm:$0xff]
    %v1084 = vld [vmem:[%s1077 + $0x30] sm:$0xff]
    %v1085 = vld [vmem:[%s1077 + $0x38] sm:$0xff]
    %v1088 = vcombine.high %v1075, %v1075
    %v1090 = vunpack.c.l.s4 1966171168
    %v1091 = vunpack.c.0.s8 %v1090
    %v1092 = vlaneseq
    %v1093 = vshrl.u32 %v1092, 7
    %v1094 = vsub.s32 %v1091, %v1093
    %v1095 = vrot.slane %v1075, %v1094
    %v1097 = vunpack.c.l.s4 1966171168
    %v1098 = vunpack.c.0.s8 %v1097
    %v1099 = vlaneseq
    %v1100 = vshrl.u32 %v1099, 7
    %v1101 = vsub.s32 %v1098, %v1100
    %v1102 = vrot.slane %v1088, %v1101
    %v1103 = vcombine.high %v1095, %v1095
    %v1105 = vunpack.c.l.s4 1966171168
    %v1106 = vunpack.c.0.s8 %v1105
    %v1107 = vlaneseq
    %v1108 = vshrl.u32 %v1107, 7
    %v1109 = vsub.s32 %v1106, %v1108
    %v1110 = vrot.slane %v1095, %v1109
    %v1112 = vunpack.c.l.s4 1966171168
    %v1113 = vunpack.c.0.s8 %v1112
    %v1114 = vlaneseq
    %v1115 = vshrl.u32 %v1114, 7
    %v1116 = vsub.s32 %v1113, %v1115
    %v1117 = vrot.slane %v1102, %v1116
    %v1119 = vunpack.c.l.s4 1966171168
    %v1120 = vunpack.c.0.s8 %v1119
    %v1121 = vlaneseq
    %v1122 = vshrl.u32 %v1121, 7
    %v1123 = vsub.s32 %v1120, %v1122
    %v1124 = vrot.slane %v1103, %v1123
    %v1125 = vcombine.high %v1110, %v1110
    %v1126 = vcombine.high %v1124, %v1124
    %v1127 = vcombine.high %v1076, %v1076
    %v1129 = vunpack.c.l.s4 1966171168
    %v1130 = vunpack.c.0.s8 %v1129
    %v1131 = vlaneseq
    %v1132 = vshrl.u32 %v1131, 7
    %v1133 = vsub.s32 %v1130, %v1132
    %v1134 = vrot.slane %v1076, %v1133
    %v1136 = vunpack.c.l.s4 1966171168
    %v1137 = vunpack.c.0.s8 %v1136
    %v1138 = vlaneseq
    %v1139 = vshrl.u32 %v1138, 7
    %v1140 = vsub.s32 %v1137, %v1139
    %v1141 = vrot.slane %v1127, %v1140
    %v1142 = vcombine.high %v1134, %v1134
    %v1144 = vunpack.c.l.s4 1966171168
    %v1145 = vunpack.c.0.s8 %v1144
    %v1146 = vlaneseq
    %v1147 = vshrl.u32 %v1146, 7
    %v1148 = vsub.s32 %v1145, %v1147
    %v1149 = vrot.slane %v1134, %v1148
    %v1151 = vunpack.c.l.s4 1966171168
    %v1152 = vunpack.c.0.s8 %v1151
    %v1153 = vlaneseq
    %v1154 = vshrl.u32 %v1153, 7
    %v1155 = vsub.s32 %v1152, %v1154
    %v1156 = vrot.slane %v1141, %v1155
    %v1158 = vunpack.c.l.s4 1966171168
    %v1159 = vunpack.c.0.s8 %v1158
    %v1160 = vlaneseq
    %v1161 = vshrl.u32 %v1160, 7
    %v1162 = vsub.s32 %v1159, %v1161
    %v1163 = vrot.slane %v1142, %v1162
    %v1164 = vcombine.high %v1149, %v1149
    %v1165 = vcombine.high %v1163, %v1163
    %v1166 = vcombine.low %v1110, %v1124
    %v1167 = vcombine.low %v1125, %v1126
    %v1168 = vcombine.low %v1117, %v1149
    %v1169 = vcombine.low %v1163, %v1164
    %v1171 = vunpack.c.l.s4 1966171168
    %v1172 = vunpack.c.0.s8 %v1171
    %v1173 = vlaneseq
    %v1174 = vshrl.u32 %v1173, 7
    %v1175 = vsub.s32 %v1172, %v1174
    %v1176 = vrot.slane %v1166, %v1175
    %v1178 = vunpack.c.l.s4 1966171168
    %v1179 = vunpack.c.0.s8 %v1178
    %v1180 = vlaneseq
    %v1181 = vshrl.u32 %v1180, 7
    %v1182 = vsub.s32 %v1179, %v1181
    %v1183 = vrot.slane %v1167, %v1182
    %v1185 = vunpack.c.l.s4 1966171168
    %v1186 = vunpack.c.0.s8 %v1185
    %v1187 = vlaneseq
    %v1188 = vshrl.u32 %v1187, 7
    %v1189 = vsub.s32 %v1186, %v1188
    %v1190 = vrot.slane %v1168, %v1189
    %v1192 = vunpack.c.l.s4 1966171168
    %v1193 = vunpack.c.0.s8 %v1192
    %v1194 = vlaneseq
    %v1195 = vshrl.u32 %v1194, 7
    %v1196 = vsub.s32 %v1193, %v1195
    %v1197 = vrot.slane %v1169, %v1196
    %v1198 = vcombine.low %v1176, %v1183
    %v1199 = vcombine.low %v1190, %v1197
    %v1201 = vunpack.c.l.s4 1966171168
    %v1202 = vunpack.c.0.s8 %v1201
    %v1203 = vlaneseq
    %v1204 = vshrl.u32 %v1203, 7
    %v1205 = vsub.s32 %v1202, %v1204
    %v1206 = vrot.slane %v1198, %v1205
    %v1208 = vunpack.c.l.s4 1966171168
    %v1209 = vunpack.c.0.s8 %v1208
    %v1210 = vlaneseq
    %v1211 = vshrl.u32 %v1210, 7
    %v1212 = vsub.s32 %v1209, %v1211
    %v1213 = vrot.slane %v1199, %v1212
    %v1214 = vcombine.low %v1206, %v1213
    %v1215 = vcombine.low %v1165, %v1156
    %v1217 = vunpack.c.l.s4 1966171168
    %v1218 = vunpack.c.0.s8 %v1217
    %v1219 = vlaneseq
    %v1220 = vshrl.u32 %v1219, 7
    %v1221 = vsub.s32 %v1218, %v1220
    %v1222 = vrot.slane %v1215, %v1221
    %v1224 = vunpack.c.l.s4 1966171168
    %v1225 = vunpack.c.0.s8 %v1224
    %v1226 = vlaneseq
    %v1227 = vshrl.u32 %v1226, 7
    %v1228 = vsub.s32 %v1225, %v1227
    %v1229 = vrot.slane %v1222, %v1228
    %v1238 = vunpack.c.l.b16 %v1078
    %v1239 = vunpack.c.h.b16 %v1078
    %v1240 = vunpack.c.l.b16 %v1079
    %v1241 = vunpack.c.h.b16 %v1079
    %v1242 = vunpack.c.l.b16 %v1080
    %v1243 = vunpack.c.h.b16 %v1080
    %v1244 = vunpack.c.l.b16 %v1081
    %v1245 = vunpack.c.h.b16 %v1081
    %v1246 = vunpack.c.l.b16 %v1082
    %v1247 = vunpack.c.h.b16 %v1082
    %v1248 = vunpack.c.l.b16 %v1083
    %v1249 = vunpack.c.h.b16 %v1083
    %v1250 = vunpack.c.l.b16 %v1084
    %v1251 = vunpack.c.h.b16 %v1084
    %v1252 = vunpack.c.l.b16 %v1085
    %v1253 = vunpack.c.h.b16 %v1085
    %v1254 = vpack.c.b16 %v1246, %v1238
    %v1255 = vpack.c.b16 %v1247, %v1239
    %v1256 = vpack.c.b16 %v1248, %v1240
    %v1257 = vpack.c.b16 %v1249, %v1241
    %v1258 = vpack.c.b16 %v1250, %v1242
    %v1259 = vpack.c.b16 %v1251, %v1243
    %v1260 = vpack.c.b16 %v1252, %v1244
    %v1261 = vpack.c.b16 %v1253, %v1245
    %v1271 = vsel %vm242, %v1214, 0
    %v1274 = vsel %vm242, %v1229, 0
    %1276 = vmatprep.subr.bf16.mxu0 0
    %1277 = vmatpush1.bf16.msra.mxu0 0
    %1278 = vmatprep.subr.bf16.mxu0 0
    %1279 = vmatpush1.bf16.msra.mxu0 0
    %1280 = vmatprep.subr.bf16.mxu0 0
    %1281 = vmatpush1.bf16.msra.mxu0 0
    %1282 = vmatprep.subr.bf16.mxu0 0
    %1283 = vmatpush1.bf16.msra.mxu0 0
    %1284 = vmatprep.subr.bf16.mxu0 0
    %1285 = vmatpush1.bf16.msra.mxu0 0
    %1286 = vmatprep.subr.bf16.mxu0 0
    %1287 = vmatpush1.bf16.msra.mxu0 0
    %1288 = vmatprep.subr.bf16.mxu0 0
    %1289 = vmatpush1.bf16.msra.mxu0 0
    %1290 = vmatprep.subr.bf16.mxu0 %v1255
    %1291 = vmatpush1.bf16.msra.mxu0 %v1254
    %1292 = vmatprep.subr.bf16.mxu0 0
    %1293 = vmatpush2.bf16.msra.mxu0 0
    %1294 = vmatprep.subr.bf16.mxu0 0
    %1295 = vmatpush2.bf16.msra.mxu0 0
    %1296 = vmatprep.subr.bf16.mxu0 0
    %1297 = vmatpush2.bf16.msra.mxu0 0
    %1298 = vmatprep.subr.bf16.mxu0 0
    %1299 = vmatpush2.bf16.msra.mxu0 0
    %1300 = vmatprep.subr.bf16.mxu0 0
    %1301 = vmatpush2.bf16.msra.mxu0 0
    %1302 = vmatprep.subr.bf16.mxu0 0
    %1303 = vmatpush2.bf16.msra.mxu0 0
    %1304 = vmatprep.subr.bf16.mxu0 0
    %1305 = vmatpush2.bf16.msra.mxu0 0
    %1306 = vmatprep.subr.bf16.mxu0 0
    %1307 = vmatpush2.bf16.msra.mxu0 0
    %1308 = vmatprep.mubr.bf16.mxu0 0
    %1309 = vmatmul.mubr.bf16.gmra.mxu0 %v1271
    %v1310 = vpop.f32.mrf.mxu0
    %v1311 = vadd.f32 0.0, %v1310
    %v1312 = vpop.f32.mrf.mxu0
    %v1313 = vadd.f32 0.0, %v1312
    %v1314 = vpop.f32.mrf.mxu0
    %v1315 = vadd.f32 0.0, %v1314
    %v1316 = vpop.f32.mrf.mxu0
    %v1317 = vadd.f32 0.0, %v1316
    %1318 = vmatprep.mubr.bf16.mxu0 0
    %1319 = vmatmul.mubr.bf16.gmra.mxu0 %v1274
    %v1320 = vpop.f32.mrf.mxu0
    %v1321 = vadd.f32 0.0, %v1320
    %v1322 = vpop.f32.mrf.mxu0
    %v1323 = vadd.f32 0.0, %v1322
    %v1324 = vpop.f32.mrf.mxu0
    %v1325 = vpop.f32.mrf.mxu0
    %1326 = vdwg.mxu0
    %1327 = vmatprep.subr.bf16.mxu0 0
    %1328 = vmatpush1.bf16.msra.mxu0 0
    %1329 = vmatprep.subr.bf16.mxu0 0
    %1330 = vmatpush1.bf16.msra.mxu0 0
    %1331 = vmatprep.subr.bf16.mxu0 0
    %1332 = vmatpush1.bf16.msra.mxu0 0
    %1333 = vmatprep.subr.bf16.mxu0 0
    %1334 = vmatpush1.bf16.msra.mxu0 0
    %1335 = vmatprep.subr.bf16.mxu0 0
    %1336 = vmatpush1.bf16.msra.mxu0 0
    %1337 = vmatprep.subr.bf16.mxu0 0
    %1338 = vmatpush1.bf16.msra.mxu0 0
    %1339 = vmatprep.subr.bf16.mxu0 0
    %1340 = vmatpush1.bf16.msra.mxu0 0
    %1341 = vmatprep.subr.bf16.mxu0 %v1257
    %1342 = vmatpush1.bf16.msra.mxu0 %v1256
    %1343 = vmatprep.subr.bf16.mxu0 0
    %1344 = vmatpush2.bf16.msra.mxu0 0
    %1345 = vmatprep.subr.bf16.mxu0 0
    %1346 = vmatpush2.bf16.msra.mxu0 0
    %1347 = vmatprep.subr.bf16.mxu0 0
    %1348 = vmatpush2.bf16.msra.mxu0 0
    %1349 = vmatprep.subr.bf16.mxu0 0
    %1350 = vmatpush2.bf16.msra.mxu0 0
    %1351 = vmatprep.subr.bf16.mxu0 0
    %1352 = vmatpush2.bf16.msra.mxu0 0
    %1353 = vmatprep.subr.bf16.mxu0 0
    %1354 = vmatpush2.bf16.msra.mxu0 0
    %1355 = vmatprep.subr.bf16.mxu0 0
    %1356 = vmatpush2.bf16.msra.mxu0 0
    %1357 = vmatprep.subr.bf16.mxu0 0
    %1358 = vmatpush2.bf16.msra.mxu0 0
    %1359 = vmatprep.mubr.bf16.mxu0 0
    %1360 = vmatmul.mubr.bf16.gmra.mxu0 %v1271
    %v1361 = vpop.f32.mrf.mxu0
    %v1362 = vadd.f32 0.0, %v1361
    %v1363 = vpop.f32.mrf.mxu0
    %v1364 = vadd.f32 0.0, %v1363
    %v1365 = vpop.f32.mrf.mxu0
    %v1366 = vadd.f32 0.0, %v1365
    %v1367 = vpop.f32.mrf.mxu0
    %v1368 = vadd.f32 0.0, %v1367
    %1369 = vmatprep.mubr.bf16.mxu0 0
    %1370 = vmatmul.mubr.bf16.gmra.mxu0 %v1274
    %v1371 = vpop.f32.mrf.mxu0
    %v1372 = vadd.f32 0.0, %v1371
    %v1373 = vpop.f32.mrf.mxu0
    %v1374 = vadd.f32 0.0, %v1373
    %v1375 = vpop.f32.mrf.mxu0
    %v1376 = vpop.f32.mrf.mxu0
    %1377 = vdwg.mxu0
    %1378 = vmatprep.subr.bf16.mxu0 0
    %1379 = vmatpush1.bf16.msra.mxu0 0
    %1380 = vmatprep.subr.bf16.mxu0 0
    %1381 = vmatpush1.bf16.msra.mxu0 0
    %1382 = vmatprep.subr.bf16.mxu0 0
    %1383 = vmatpush1.bf16.msra.mxu0 0
    %1384 = vmatprep.subr.bf16.mxu0 0
    %1385 = vmatpush1.bf16.msra.mxu0 0
    %1386 = vmatprep.subr.bf16.mxu0 0
    %1387 = vmatpush1.bf16.msra.mxu0 0
    %1388 = vmatprep.subr.bf16.mxu0 0
    %1389 = vmatpush1.bf16.msra.mxu0 0
    %1390 = vmatprep.subr.bf16.mxu0 0
    %1391 = vmatpush1.bf16.msra.mxu0 0
    %1392 = vmatprep.subr.bf16.mxu0 %v1259
    %1393 = vmatpush1.bf16.msra.mxu0 %v1258
    %1394 = vmatprep.subr.bf16.mxu0 0
    %1395 = vmatpush2.bf16.msra.mxu0 0
    %1396 = vmatprep.subr.bf16.mxu0 0
    %1397 = vmatpush2.bf16.msra.mxu0 0
    %1398 = vmatprep.subr.bf16.mxu0 0
    %1399 = vmatpush2.bf16.msra.mxu0 0
    %1400 = vmatprep.subr.bf16.mxu0 0
    %1401 = vmatpush2.bf16.msra.mxu0 0
    %1402 = vmatprep.subr.bf16.mxu0 0
    %1403 = vmatpush2.bf16.msra.mxu0 0
    %1404 = vmatprep.subr.bf16.mxu0 0
    %1405 = vmatpush2.bf16.msra.mxu0 0
    %1406 = vmatprep.subr.bf16.mxu0 0
    %1407 = vmatpush2.bf16.msra.mxu0 0
    %1408 = vmatprep.subr.bf16.mxu0 0
    %1409 = vmatpush2.bf16.msra.mxu0 0
    %1410 = vmatprep.mubr.bf16.mxu0 0
    %1411 = vmatmul.mubr.bf16.gmra.mxu0 %v1271
    %v1412 = vpop.f32.mrf.mxu0
    %v1413 = vadd.f32 0.0, %v1412
    %v1414 = vpop.f32.mrf.mxu0
    %v1415 = vadd.f32 0.0, %v1414
    %v1416 = vpop.f32.mrf.mxu0
    %v1417 = vadd.f32 0.0, %v1416
    %v1418 = vpop.f32.mrf.mxu0
    %v1419 = vadd.f32 0.0, %v1418
    %1420 = vmatprep.mubr.bf16.mxu0 0
    %1421 = vmatmul.mubr.bf16.gmra.mxu0 %v1274
    %v1422 = vpop.f32.mrf.mxu0
    %v1423 = vadd.f32 0.0, %v1422
    %v1424 = vpop.f32.mrf.mxu0
    %v1425 = vadd.f32 0.0, %v1424
    %v1426 = vpop.f32.mrf.mxu0
    %v1427 = vpop.f32.mrf.mxu0
    %1428 = vdwg.mxu0
    %1429 = vmatprep.subr.bf16.mxu0 0
    %1430 = vmatpush1.bf16.msra.mxu0 0
    %1431 = vmatprep.subr.bf16.mxu0 0
    %1432 = vmatpush1.bf16.msra.mxu0 0
    %1433 = vmatprep.subr.bf16.mxu0 0
    %1434 = vmatpush1.bf16.msra.mxu0 0
    %1435 = vmatprep.subr.bf16.mxu0 0
    %1436 = vmatpush1.bf16.msra.mxu0 0
    %1437 = vmatprep.subr.bf16.mxu0 0
    %1438 = vmatpush1.bf16.msra.mxu0 0
    %1439 = vmatprep.subr.bf16.mxu0 0
    %1440 = vmatpush1.bf16.msra.mxu0 0
    %1441 = vmatprep.subr.bf16.mxu0 0
    %1442 = vmatpush1.bf16.msra.mxu0 0
    %1443 = vmatprep.subr.bf16.mxu0 %v1261
    %1444 = vmatpush1.bf16.msra.mxu0 %v1260
    %1445 = vmatprep.subr.bf16.mxu0 0
    %1446 = vmatpush2.bf16.msra.mxu0 0
    %1447 = vmatprep.subr.bf16.mxu0 0
    %1448 = vmatpush2.bf16.msra.mxu0 0
    %1449 = vmatprep.subr.bf16.mxu0 0
    %1450 = vmatpush2.bf16.msra.mxu0 0
    %1451 = vmatprep.subr.bf16.mxu0 0
    %1452 = vmatpush2.bf16.msra.mxu0 0
    %1453 = vmatprep.subr.bf16.mxu0 0
    %1454 = vmatpush2.bf16.msra.mxu0 0
    %1455 = vmatprep.subr.bf16.mxu0 0
    %1456 = vmatpush2.bf16.msra.mxu0 0
    %1457 = vmatprep.subr.bf16.mxu0 0
    %1458 = vmatpush2.bf16.msra.mxu0 0
    %1459 = vmatprep.subr.bf16.mxu0 0
    %1460 = vmatpush2.bf16.msra.mxu0 0
    %1461 = vmatprep.mubr.bf16.mxu0 0
    %1462 = vmatmul.mubr.bf16.gmra.mxu0 %v1271
    %v1463 = vpop.f32.mrf.mxu0
    %v1464 = vadd.f32 0.0, %v1463
    %v1465 = vpop.f32.mrf.mxu0
    %v1466 = vadd.f32 0.0, %v1465
    %v1467 = vpop.f32.mrf.mxu0
    %v1468 = vadd.f32 0.0, %v1467
    %v1469 = vpop.f32.mrf.mxu0
    %v1470 = vadd.f32 0.0, %v1469
    %1471 = vmatprep.mubr.bf16.mxu0 0
    %1472 = vmatmul.mubr.bf16.gmra.mxu0 %v1274
    %v1473 = vpop.f32.mrf.mxu0
    %v1474 = vadd.f32 0.0, %v1473
    %v1475 = vpop.f32.mrf.mxu0
    %v1476 = vadd.f32 0.0, %v1475
    %v1477 = vpop.f32.mrf.mxu0
    %v1478 = vpop.f32.mrf.mxu0
    %1479 = vdwg.mxu0
    %v1504 = vcombine.low %v1311, %v1313
    %v1505 = vcombine.high %v1311, %v1313
    %v1506 = vcombine.low %v1362, %v1364
    %v1507 = vcombine.high %v1362, %v1364
    %v1509 = vunpack.c.l.s4 1983009808
    %v1510 = vunpack.c.0.s8 %v1509
    %v1511 = vlaneseq
    %v1512 = vshrl.u32 %v1511, 7
    %v1513 = vsub.s32 %v1510, %v1512
    %v1514 = vrot.slane %v1504, %v1513
    %v1516 = vunpack.c.l.s4 1983009808
    %v1517 = vunpack.c.0.s8 %v1516
    %v1518 = vlaneseq
    %v1519 = vshrl.u32 %v1518, 7
    %v1520 = vsub.s32 %v1517, %v1519
    %v1521 = vrot.slane %v1505, %v1520
    %v1523 = vunpack.c.l.s4 1983009808
    %v1524 = vunpack.c.0.s8 %v1523
    %v1525 = vlaneseq
    %v1526 = vshrl.u32 %v1525, 7
    %v1527 = vsub.s32 %v1524, %v1526
    %v1528 = vrot.slane %v1506, %v1527
    %v1530 = vunpack.c.l.s4 1983009808
    %v1531 = vunpack.c.0.s8 %v1530
    %v1532 = vlaneseq
    %v1533 = vshrl.u32 %v1532, 7
    %v1534 = vsub.s32 %v1531, %v1533
    %v1535 = vrot.slane %v1507, %v1534
    %v1536 = vcombine.low %v1514, %v1528
    %v1537 = vcombine.high %v1514, %v1528
    %v1538 = vcombine.low %v1521, %v1535
    %v1539 = vcombine.high %v1521, %v1535
    %v1540 = vcombine.low %v1413, %v1415
    %v1541 = vcombine.high %v1413, %v1415
    %v1542 = vcombine.low %v1464, %v1466
    %v1543 = vcombine.high %v1464, %v1466
    %v1545 = vunpack.c.l.s4 1983009808
    %v1546 = vunpack.c.0.s8 %v1545
    %v1547 = vlaneseq
    %v1548 = vshrl.u32 %v1547, 7
    %v1549 = vsub.s32 %v1546, %v1548
    %v1550 = vrot.slane %v1540, %v1549
    %v1552 = vunpack.c.l.s4 1983009808
    %v1553 = vunpack.c.0.s8 %v1552
    %v1554 = vlaneseq
    %v1555 = vshrl.u32 %v1554, 7
    %v1556 = vsub.s32 %v1553, %v1555
    %v1557 = vrot.slane %v1541, %v1556
    %v1559 = vunpack.c.l.s4 1983009808
    %v1560 = vunpack.c.0.s8 %v1559
    %v1561 = vlaneseq
    %v1562 = vshrl.u32 %v1561, 7
    %v1563 = vsub.s32 %v1560, %v1562
    %v1564 = vrot.slane %v1542, %v1563
    %v1566 = vunpack.c.l.s4 1983009808
    %v1567 = vunpack.c.0.s8 %v1566
    %v1568 = vlaneseq
    %v1569 = vshrl.u32 %v1568, 7
    %v1570 = vsub.s32 %v1567, %v1569
    %v1571 = vrot.slane %v1543, %v1570
    %v1572 = vcombine.low %v1550, %v1564
    %v1573 = vcombine.high %v1550, %v1564
    %v1574 = vcombine.low %v1557, %v1571
    %v1575 = vcombine.high %v1557, %v1571
    %v1576 = vcombine.low %v1315, %v1317
    %v1577 = vcombine.high %v1315, %v1317
    %v1578 = vcombine.low %v1366, %v1368
    %v1579 = vcombine.high %v1366, %v1368
    %v1581 = vunpack.c.l.s4 1983009808
    %v1582 = vunpack.c.0.s8 %v1581
    %v1583 = vlaneseq
    %v1584 = vshrl.u32 %v1583, 7
    %v1585 = vsub.s32 %v1582, %v1584
    %v1586 = vrot.slane %v1576, %v1585
    %v1588 = vunpack.c.l.s4 1983009808
    %v1589 = vunpack.c.0.s8 %v1588
    %v1590 = vlaneseq
    %v1591 = vshrl.u32 %v1590, 7
    %v1592 = vsub.s32 %v1589, %v1591
    %v1593 = vrot.slane %v1577, %v1592
    %v1595 = vunpack.c.l.s4 1983009808
    %v1596 = vunpack.c.0.s8 %v1595
    %v1597 = vlaneseq
    %v1598 = vshrl.u32 %v1597, 7
    %v1599 = vsub.s32 %v1596, %v1598
    %v1600 = vrot.slane %v1578, %v1599
    %v1602 = vunpack.c.l.s4 1983009808
    %v1603 = vunpack.c.0.s8 %v1602
    %v1604 = vlaneseq
    %v1605 = vshrl.u32 %v1604, 7
    %v1606 = vsub.s32 %v1603, %v1605
    %v1607 = vrot.slane %v1579, %v1606
    %v1608 = vcombine.low %v1586, %v1600
    %v1609 = vcombine.high %v1586, %v1600
    %v1610 = vcombine.low %v1593, %v1607
    %v1611 = vcombine.high %v1593, %v1607
    %v1612 = vcombine.low %v1417, %v1419
    %v1613 = vcombine.high %v1417, %v1419
    %v1614 = vcombine.low %v1468, %v1470
    %v1615 = vcombine.high %v1468, %v1470
    %v1617 = vunpack.c.l.s4 1983009808
    %v1618 = vunpack.c.0.s8 %v1617
    %v1619 = vlaneseq
    %v1620 = vshrl.u32 %v1619, 7
    %v1621 = vsub.s32 %v1618, %v1620
    %v1622 = vrot.slane %v1612, %v1621
    %v1624 = vunpack.c.l.s4 1983009808
    %v1625 = vunpack.c.0.s8 %v1624
    %v1626 = vlaneseq
    %v1627 = vshrl.u32 %v1626, 7
    %v1628 = vsub.s32 %v1625, %v1627
    %v1629 = vrot.slane %v1613, %v1628
    %v1631 = vunpack.c.l.s4 1983009808
    %v1632 = vunpack.c.0.s8 %v1631
    %v1633 = vlaneseq
    %v1634 = vshrl.u32 %v1633, 7
    %v1635 = vsub.s32 %v1632, %v1634
    %v1636 = vrot.slane %v1614, %v1635
    %v1638 = vunpack.c.l.s4 1983009808
    %v1639 = vunpack.c.0.s8 %v1638
    %v1640 = vlaneseq
    %v1641 = vshrl.u32 %v1640, 7
    %v1642 = vsub.s32 %v1639, %v1641
    %v1643 = vrot.slane %v1615, %v1642
    %v1644 = vcombine.low %v1622, %v1636
    %v1645 = vcombine.high %v1622, %v1636
    %v1646 = vcombine.low %v1629, %v1643
    %v1647 = vcombine.high %v1629, %v1643
    %v1648 = vcombine.low %v1321, %v1323
    %v1649 = vcombine.low %v1372, %v1374
    %v1651 = vunpack.c.l.s4 1983009808
    %v1652 = vunpack.c.0.s8 %v1651
    %v1653 = vlaneseq
    %v1654 = vshrl.u32 %v1653, 7
    %v1655 = vsub.s32 %v1652, %v1654
    %v1656 = vrot.slane %v1648, %v1655
    %v1658 = vunpack.c.l.s4 1983009808
    %v1659 = vunpack.c.0.s8 %v1658
    %v1660 = vlaneseq
    %v1661 = vshrl.u32 %v1660, 7
    %v1662 = vsub.s32 %v1659, %v1661
    %v1663 = vrot.slane %v1649, %v1662
    %v1664 = vcombine.low %v1656, %v1663
    %v1665 = vcombine.high %v1656, %v1663
    %v1666 = vcombine.low %v1423, %v1425
    %v1667 = vcombine.low %v1474, %v1476
    %v1669 = vunpack.c.l.s4 1983009808
    %v1670 = vunpack.c.0.s8 %v1669
    %v1671 = vlaneseq
    %v1672 = vshrl.u32 %v1671, 7
    %v1673 = vsub.s32 %v1670, %v1672
    %v1674 = vrot.slane %v1666, %v1673
    %v1676 = vunpack.c.l.s4 1983009808
    %v1677 = vunpack.c.0.s8 %v1676
    %v1678 = vlaneseq
    %v1679 = vshrl.u32 %v1678, 7
    %v1680 = vsub.s32 %v1677, %v1679
    %v1681 = vrot.slane %v1667, %v1680
    %v1682 = vcombine.low %v1674, %v1681
    %v1683 = vcombine.high %v1674, %v1681
    %v1704 = vadd.f32 %v903, %v1536
    %v1705 = vadd.f32 %v939, %v1572
    %v1706 = vadd.f32 %v904, %v1537
    %v1707 = vadd.f32 %v940, %v1573
    %v1708 = vadd.f32 %v905, %v1538
    %v1709 = vadd.f32 %v941, %v1574
    %v1710 = vadd.f32 %v906, %v1539
    %v1711 = vadd.f32 %v942, %v1575
    %v1712 = vadd.f32 %v975, %v1608
    %v1713 = vadd.f32 %v1011, %v1644
    %v1714 = vadd.f32 %v976, %v1609
    %v1715 = vadd.f32 %v1012, %v1645
    %v1716 = vadd.f32 %v977, %v1610
    %v1717 = vadd.f32 %v1013, %v1646
    %v1718 = vadd.f32 %v978, %v1611
    %v1719 = vadd.f32 %v1014, %v1647
    %v1720 = vadd.f32 %v1031, %v1664
    %v1721 = vadd.f32 %v1049, %v1682
    %v1722 = vadd.f32 %v1032, %v1665
    %v1723 = vadd.f32 %v1050, %v1683
    %v1744 = vcombine.low %v1704, %v1706
    %v1745 = vcombine.high %v1704, %v1706
    %v1746 = vcombine.low %v1708, %v1710
    %v1747 = vcombine.high %v1708, %v1710
    %v1749 = vunpack.c.l.s4 1983009808
    %v1750 = vunpack.c.0.s8 %v1749
    %v1751 = vlaneseq
    %v1752 = vshrl.u32 %v1751, 7
    %v1753 = vsub.s32 %v1750, %v1752
    %v1754 = vrot.slane %v1744, %v1753
    %v1756 = vunpack.c.l.s4 1983009808
    %v1757 = vunpack.c.0.s8 %v1756
    %v1758 = vlaneseq
    %v1759 = vshrl.u32 %v1758, 7
    %v1760 = vsub.s32 %v1757, %v1759
    %v1761 = vrot.slane %v1745, %v1760
    %v1763 = vunpack.c.l.s4 1983009808
    %v1764 = vunpack.c.0.s8 %v1763
    %v1765 = vlaneseq
    %v1766 = vshrl.u32 %v1765, 7
    %v1767 = vsub.s32 %v1764, %v1766
    %v1768 = vrot.slane %v1746, %v1767
    %v1770 = vunpack.c.l.s4 1983009808
    %v1771 = vunpack.c.0.s8 %v1770
    %v1772 = vlaneseq
    %v1773 = vshrl.u32 %v1772, 7
    %v1774 = vsub.s32 %v1771, %v1773
    %v1775 = vrot.slane %v1747, %v1774
    %v1776 = vcombine.low %v1754, %v1768
    %v1777 = vcombine.high %v1754, %v1768
    %v1778 = vcombine.low %v1761, %v1775
    %v1779 = vcombine.high %v1761, %v1775
    %v1780 = vcombine.low %v1705, %v1707
    %v1781 = vcombine.high %v1705, %v1707
    %v1782 = vcombine.low %v1709, %v1711
    %v1783 = vcombine.high %v1709, %v1711
    %v1785 = vunpack.c.l.s4 1983009808
    %v1786 = vunpack.c.0.s8 %v1785
    %v1787 = vlaneseq
    %v1788 = vshrl.u32 %v1787, 7
    %v1789 = vsub.s32 %v1786, %v1788
    %v1790 = vrot.slane %v1780, %v1789
    %v1792 = vunpack.c.l.s4 1983009808
    %v1793 = vunpack.c.0.s8 %v1792
    %v1794 = vlaneseq
    %v1795 = vshrl.u32 %v1794, 7
    %v1796 = vsub.s32 %v1793, %v1795
    %v1797 = vrot.slane %v1781, %v1796
    %v1799 = vunpack.c.l.s4 1983009808
    %v1800 = vunpack.c.0.s8 %v1799
    %v1801 = vlaneseq
    %v1802 = vshrl.u32 %v1801, 7
    %v1803 = vsub.s32 %v1800, %v1802
    %v1804 = vrot.slane %v1782, %v1803
    %v1806 = vunpack.c.l.s4 1983009808
    %v1807 = vunpack.c.0.s8 %v1806
    %v1808 = vlaneseq
    %v1809 = vshrl.u32 %v1808, 7
    %v1810 = vsub.s32 %v1807, %v1809
    %v1811 = vrot.slane %v1783, %v1810
    %v1812 = vcombine.low %v1790, %v1804
    %v1813 = vcombine.high %v1790, %v1804
    %v1814 = vcombine.low %v1797, %v1811
    %v1815 = vcombine.high %v1797, %v1811
    %v1816 = vcombine.high %v1712, %v1712
    %v1818 = vunpack.c.l.s4 1983009808
    %v1819 = vunpack.c.0.s8 %v1818
    %v1820 = vlaneseq
    %v1821 = vshrl.u32 %v1820, 7
    %v1822 = vsub.s32 %v1819, %v1821
    %v1823 = vrot.slane %v1712, %v1822
    %v1825 = vunpack.c.l.s4 1983009808
    %v1826 = vunpack.c.0.s8 %v1825
    %v1827 = vlaneseq
    %v1828 = vshrl.u32 %v1827, 7
    %v1829 = vsub.s32 %v1826, %v1828
    %v1830 = vrot.slane %v1816, %v1829
    %v1831 = vcombine.high %v1823, %v1823
    %v1832 = vcombine.high %v1830, %v1830
    %v1833 = vcombine.high %v1713, %v1713
    %v1835 = vunpack.c.l.s4 1983009808
    %v1836 = vunpack.c.0.s8 %v1835
    %v1837 = vlaneseq
    %v1838 = vshrl.u32 %v1837, 7
    %v1839 = vsub.s32 %v1836, %v1838
    %v1840 = vrot.slane %v1713, %v1839
    %v1842 = vunpack.c.l.s4 1983009808
    %v1843 = vunpack.c.0.s8 %v1842
    %v1844 = vlaneseq
    %v1845 = vshrl.u32 %v1844, 7
    %v1846 = vsub.s32 %v1843, %v1845
    %v1847 = vrot.slane %v1833, %v1846
    %v1848 = vcombine.high %v1840, %v1840
    %v1849 = vcombine.high %v1847, %v1847
    %v1850 = vcombine.low %v1714, %v1716
    %v1851 = vcombine.high %v1714, %v1716
    %v1852 = vcombine.low %v1718, %v1720
    %v1853 = vcombine.high %v1718, %v1720
    %v1855 = vunpack.c.l.s4 1983009808
    %v1856 = vunpack.c.0.s8 %v1855
    %v1857 = vlaneseq
    %v1858 = vshrl.u32 %v1857, 7
    %v1859 = vsub.s32 %v1856, %v1858
    %v1860 = vrot.slane %v1850, %v1859
    %v1862 = vunpack.c.l.s4 1983009808
    %v1863 = vunpack.c.0.s8 %v1862
    %v1864 = vlaneseq
    %v1865 = vshrl.u32 %v1864, 7
    %v1866 = vsub.s32 %v1863, %v1865
    %v1867 = vrot.slane %v1851, %v1866
    %v1869 = vunpack.c.l.s4 1983009808
    %v1870 = vunpack.c.0.s8 %v1869
    %v1871 = vlaneseq
    %v1872 = vshrl.u32 %v1871, 7
    %v1873 = vsub.s32 %v1870, %v1872
    %v1874 = vrot.slane %v1852, %v1873
    %v1876 = vunpack.c.l.s4 1983009808
    %v1877 = vunpack.c.0.s8 %v1876
    %v1878 = vlaneseq
    %v1879 = vshrl.u32 %v1878, 7
    %v1880 = vsub.s32 %v1877, %v1879
    %v1881 = vrot.slane %v1853, %v1880
    %v1882 = vcombine.low %v1860, %v1874
    %v1883 = vcombine.high %v1860, %v1874
    %v1884 = vcombine.low %v1867, %v1881
    %v1885 = vcombine.high %v1867, %v1881
    %v1886 = vcombine.low %v1715, %v1717
    %v1887 = vcombine.high %v1715, %v1717
    %v1888 = vcombine.low %v1719, %v1721
    %v1889 = vcombine.high %v1719, %v1721
    %v1891 = vunpack.c.l.s4 1983009808
    %v1892 = vunpack.c.0.s8 %v1891
    %v1893 = vlaneseq
    %v1894 = vshrl.u32 %v1893, 7
    %v1895 = vsub.s32 %v1892, %v1894
    %v1896 = vrot.slane %v1886, %v1895
    %v1898 = vunpack.c.l.s4 1983009808
    %v1899 = vunpack.c.0.s8 %v1898
    %v1900 = vlaneseq
    %v1901 = vshrl.u32 %v1900, 7
    %v1902 = vsub.s32 %v1899, %v1901
    %v1903 = vrot.slane %v1887, %v1902
    %v1905 = vunpack.c.l.s4 1983009808
    %v1906 = vunpack.c.0.s8 %v1905
    %v1907 = vlaneseq
    %v1908 = vshrl.u32 %v1907, 7
    %v1909 = vsub.s32 %v1906, %v1908
    %v1910 = vrot.slane %v1888, %v1909
    %v1912 = vunpack.c.l.s4 1983009808
    %v1913 = vunpack.c.0.s8 %v1912
    %v1914 = vlaneseq
    %v1915 = vshrl.u32 %v1914, 7
    %v1916 = vsub.s32 %v1913, %v1915
    %v1917 = vrot.slane %v1889, %v1916
    %v1918 = vcombine.low %v1896, %v1910
    %v1919 = vcombine.high %v1896, %v1910
    %v1920 = vcombine.low %v1903, %v1917
    %v1921 = vcombine.high %v1903, %v1917
    %v1922 = vcombine.high %v1722, %v1722
    %v1924 = vunpack.c.l.s4 1983009808
    %v1925 = vunpack.c.0.s8 %v1924
    %v1926 = vlaneseq
    %v1927 = vshrl.u32 %v1926, 7
    %v1928 = vsub.s32 %v1925, %v1927
    %v1929 = vrot.slane %v1722, %v1928
    %v1931 = vunpack.c.l.s4 1983009808
    %v1932 = vunpack.c.0.s8 %v1931
    %v1933 = vlaneseq
    %v1934 = vshrl.u32 %v1933, 7
    %v1935 = vsub.s32 %v1932, %v1934
    %v1936 = vrot.slane %v1922, %v1935
    %v1937 = vcombine.high %v1929, %v1929
    %v1938 = vcombine.high %v1936, %v1936
    %v1939 = vcombine.high %v1723, %v1723
    %v1941 = vunpack.c.l.s4 1983009808
    %v1942 = vunpack.c.0.s8 %v1941
    %v1943 = vlaneseq
    %v1944 = vshrl.u32 %v1943, 7
    %v1945 = vsub.s32 %v1942, %v1944
    %v1946 = vrot.slane %v1723, %v1945
    %v1948 = vunpack.c.l.s4 1983009808
    %v1949 = vunpack.c.0.s8 %v1948
    %v1950 = vlaneseq
    %v1951 = vshrl.u32 %v1950, 7
    %v1952 = vsub.s32 %v1949, %v1951
    %v1953 = vrot.slane %v1939, %v1952
    %v1954 = vcombine.high %v1946, %v1946
    %v1955 = vcombine.high %v1953, %v1953
    %vm1988 = vcmask 1041408
    %v1989 = vsel %vm1988, %v1823, -inf
    %v1990 = vmax.f32 %v1776, %v1989
    %v1991 = vrot.slane %v1990, 4
    %v1992 = vmax.f32 %v1990, %v1991
    %v1993 = vrot.slane %v1992, 2
    %v1994 = vmax.f32 %v1992, %v1993
    %v1995 = vrot.slane %v1994, 1
    %v1996 = vmax.f32 %v1994, %v1995
    %v1997 = vsel %vm1988, %v1831, -inf
    %v1998 = vmax.f32 %v1777, %v1997
    %v1999 = vrot.slane %v1998, 4
    %v2000 = vmax.f32 %v1998, %v1999
    %v2001 = vrot.slane %v2000, 2
    %v2002 = vmax.f32 %v2000, %v2001
    %v2003 = vrot.slane %v2002, 1
    %v2004 = vmax.f32 %v2002, %v2003
    %v2005 = vsel %vm1988, %v1830, -inf
    %v2006 = vmax.f32 %v1778, %v2005
    %v2007 = vrot.slane %v2006, 4
    %v2008 = vmax.f32 %v2006, %v2007
    %v2009 = vrot.slane %v2008, 2
    %v2010 = vmax.f32 %v2008, %v2009
    %v2011 = vrot.slane %v2010, 1
    %v2012 = vmax.f32 %v2010, %v2011
    %v2013 = vsel %vm1988, %v1832, -inf
    %v2014 = vmax.f32 %v1779, %v2013
    %v2015 = vrot.slane %v2014, 4
    %v2016 = vmax.f32 %v2014, %v2015
    %v2017 = vrot.slane %v2016, 2
    %v2018 = vmax.f32 %v2016, %v2017
    %v2019 = vrot.slane %v2018, 1
    %v2020 = vmax.f32 %v2018, %v2019
    %v2021 = vsel %vm1988, %v1840, -inf
    %v2022 = vmax.f32 %v1812, %v2021
    %v2023 = vrot.slane %v2022, 4
    %v2024 = vmax.f32 %v2022, %v2023
    %v2025 = vrot.slane %v2024, 2
    %v2026 = vmax.f32 %v2024, %v2025
    %v2027 = vrot.slane %v2026, 1
    %v2028 = vmax.f32 %v2026, %v2027
    %v2029 = vsel %vm1988, %v1848, -inf
    %v2030 = vmax.f32 %v1813, %v2029
    %v2031 = vrot.slane %v2030, 4
    %v2032 = vmax.f32 %v2030, %v2031
    %v2033 = vrot.slane %v2032, 2
    %v2034 = vmax.f32 %v2032, %v2033
    %v2035 = vrot.slane %v2034, 1
    %v2036 = vmax.f32 %v2034, %v2035
    %v2037 = vsel %vm1988, %v1847, -inf
    %v2038 = vmax.f32 %v1814, %v2037
    %v2039 = vrot.slane %v2038, 4
    %v2040 = vmax.f32 %v2038, %v2039
    %v2041 = vrot.slane %v2040, 2
    %v2042 = vmax.f32 %v2040, %v2041
    %v2043 = vrot.slane %v2042, 1
    %v2044 = vmax.f32 %v2042, %v2043
    %v2045 = vsel %vm1988, %v1849, -inf
    %v2046 = vmax.f32 %v1815, %v2045
    %v2047 = vrot.slane %v2046, 4
    %v2048 = vmax.f32 %v2046, %v2047
    %v2049 = vrot.slane %v2048, 2
    %v2050 = vmax.f32 %v2048, %v2049
    %v2051 = vrot.slane %v2050, 1
    %v2052 = vmax.f32 %v2050, %v2051
    %v2053 = vsel %vm1988, %v1929, -inf
    %v2054 = vmax.f32 %v1882, %v2053
    %v2055 = vrot.slane %v2054, 4
    %v2056 = vmax.f32 %v2054, %v2055
    %v2057 = vrot.slane %v2056, 2
    %v2058 = vmax.f32 %v2056, %v2057
    %v2059 = vrot.slane %v2058, 1
    %v2060 = vmax.f32 %v2058, %v2059
    %v2061 = vsel %vm1988, %v1937, -inf
    %v2062 = vmax.f32 %v1883, %v2061
    %v2063 = vrot.slane %v2062, 4
    %v2064 = vmax.f32 %v2062, %v2063
    %v2065 = vrot.slane %v2064, 2
    %v2066 = vmax.f32 %v2064, %v2065
    %v2067 = vrot.slane %v2066, 1
    %v2068 = vmax.f32 %v2066, %v2067
    %v2069 = vsel %vm1988, %v1936, -inf
    %v2070 = vmax.f32 %v1884, %v2069
    %v2071 = vrot.slane %v2070, 4
    %v2072 = vmax.f32 %v2070, %v2071
    %v2073 = vrot.slane %v2072, 2
    %v2074 = vmax.f32 %v2072, %v2073
    %v2075 = vrot.slane %v2074, 1
    %v2076 = vmax.f32 %v2074, %v2075
    %v2077 = vsel %vm1988, %v1938, -inf
    %v2078 = vmax.f32 %v1885, %v2077
    %v2079 = vrot.slane %v2078, 4
    %v2080 = vmax.f32 %v2078, %v2079
    %v2081 = vrot.slane %v2080, 2
    %v2082 = vmax.f32 %v2080, %v2081
    %v2083 = vrot.slane %v2082, 1
    %v2084 = vmax.f32 %v2082, %v2083
    %v2085 = vsel %vm1988, %v1946, -inf
    %v2086 = vmax.f32 %v1918, %v2085
    %v2087 = vrot.slane %v2086, 4
    %v2088 = vmax.f32 %v2086, %v2087
    %v2089 = vrot.slane %v2088, 2
    %v2090 = vmax.f32 %v2088, %v2089
    %v2091 = vrot.slane %v2090, 1
    %v2092 = vmax.f32 %v2090, %v2091
    %v2093 = vsel %vm1988, %v1954, -inf
    %v2094 = vmax.f32 %v1919, %v2093
    %v2095 = vrot.slane %v2094, 4
    %v2096 = vmax.f32 %v2094, %v2095
    %v2097 = vrot.slane %v2096, 2
    %v2098 = vmax.f32 %v2096, %v2097
    %v2099 = vrot.slane %v2098, 1
    %v2100 = vmax.f32 %v2098, %v2099
    %v2101 = vsel %vm1988, %v1953, -inf
    %v2102 = vmax.f32 %v1920, %v2101
    %v2103 = vrot.slane %v2102, 4
    %v2104 = vmax.f32 %v2102, %v2103
    %v2105 = vrot.slane %v2104, 2
    %v2106 = vmax.f32 %v2104, %v2105
    %v2107 = vrot.slane %v2106, 1
    %v2108 = vmax.f32 %v2106, %v2107
    %v2109 = vsel %vm1988, %v1955, -inf
    %v2110 = vmax.f32 %v1921, %v2109
    %v2111 = vrot.slane %v2110, 4
    %v2112 = vmax.f32 %v2110, %v2111
    %v2113 = vrot.slane %v2112, 2
    %v2114 = vmax.f32 %v2112, %v2113
    %v2115 = vrot.slane %v2114, 1
    %v2116 = vmax.f32 %v2114, %v2115
    %v2117 = vld [vmem:[%s2] ss:$4 sm:$0xff]
    %v2119 = vlaneseq
    %v2120 = vshrl.u32 %v2119, 7
    %v2121 = vsub.s32 0, %v2120
    %v2122 = vrot.slane %v2117, %v2121
    %v2123 = vlaneseq
    %v2124 = vshrl.u32 %v2123, 7
    %v2125 = vsub.s32 1, %v2124
    %v2126 = vrot.slane %v2117, %v2125
    %v2127 = vlaneseq
    %v2128 = vshrl.u32 %v2127, 7
    %v2129 = vsub.s32 2, %v2128
    %v2130 = vrot.slane %v2117, %v2129
    %v2131 = vlaneseq
    %v2132 = vshrl.u32 %v2131, 7
    %v2133 = vsub.s32 3, %v2132
    %v2134 = vrot.slane %v2117, %v2133
    %v2135 = vlaneseq
    %v2136 = vshrl.u32 %v2135, 7
    %v2137 = vsub.s32 4, %v2136
    %v2138 = vrot.slane %v2117, %v2137
    %v2139 = vlaneseq
    %v2140 = vshrl.u32 %v2139, 7
    %v2141 = vsub.s32 5, %v2140
    %v2142 = vrot.slane %v2117, %v2141
    %v2143 = vlaneseq
    %v2144 = vshrl.u32 %v2143, 7
    %v2145 = vsub.s32 6, %v2144
    %v2146 = vrot.slane %v2117, %v2145
    %v2147 = vlaneseq
    %v2148 = vshrl.u32 %v2147, 7
    %v2149 = vsub.s32 7, %v2148
    %v2150 = vrot.slane %v2117, %v2149
    %v2159 = vadd.f32 %v1996, %v2122
    %v2160 = vadd.f32 %v2004, %v2126
    %v2161 = vadd.f32 %v2012, %v2130
    %v2162 = vadd.f32 %v2020, %v2134
    %v2163 = vadd.f32 %v2028, %v2138
    %v2164 = vadd.f32 %v2036, %v2142
    %v2165 = vadd.f32 %v2044, %v2146
    %v2166 = vadd.f32 %v2052, %v2150
    %v2167 = vadd.f32 %v2060, %v2122
    %v2168 = vadd.f32 %v2068, %v2126
    %v2169 = vadd.f32 %v2076, %v2130
    %v2170 = vadd.f32 %v2084, %v2134
    %v2171 = vadd.f32 %v2092, %v2138
    %v2172 = vadd.f32 %v2100, %v2142
    %v2173 = vadd.f32 %v2108, %v2146
    %v2174 = vadd.f32 %v2116, %v2150
    %v2175 = vmax.f32 %v2159, 0.0
    %v2176 = vmax.f32 %v2160, 0.0
    %v2177 = vmax.f32 %v2161, 0.0
    %v2178 = vmax.f32 %v2162, 0.0
    %v2179 = vmax.f32 %v2163, 0.0
    %v2180 = vmax.f32 %v2164, 0.0
    %v2181 = vmax.f32 %v2165, 0.0
    %v2182 = vmax.f32 %v2166, 0.0
    %v2183 = vmax.f32 %v2167, 0.0
    %v2184 = vmax.f32 %v2168, 0.0
    %v2185 = vmax.f32 %v2169, 0.0
    %v2186 = vmax.f32 %v2170, 0.0
    %v2187 = vmax.f32 %v2171, 0.0
    %v2188 = vmax.f32 %v2172, 0.0
    %v2189 = vmax.f32 %v2173, 0.0
    %v2190 = vmax.f32 %v2174, 0.0
    %v2191 = vld [vmem:[%s0] sm:$0xff]
    %v2192 = vld [vmem:[%s0 + $0x8] sm:$0x1]
    %v2193 = vld [vmem:[%s0 + $0x10] sm:$0xff]
    %v2194 = vld [vmem:[%s0 + $0x18] sm:$0x1]
    %v2195 = vpack.c.bf16 %v2192, %v2191
    %v2196 = vpack.c.bf16 %v2194, %v2193
    %s2197 = scalar_lea.vmem [#allocation2], 192
    %v2198 = vld [vmem:[%s2197] sm:$0xff]
    %v2199 = vld [vmem:[%s2197 + $0x8] sm:$0xff]
    %v2200 = vld [vmem:[%s2197 + $0x10] sm:$0xff]
    %v2201 = vld [vmem:[%s2197 + $0x18] sm:$0xff]
    %v2202 = vld [vmem:[%s2197 + $0x20] sm:$0xff]
    %v2203 = vld [vmem:[%s2197 + $0x28] sm:$0xff]
    %v2204 = vld [vmem:[%s2197 + $0x30] sm:$0xff]
    %v2205 = vld [vmem:[%s2197 + $0x38] sm:$0xff]
    %v2206 = vld [vmem:[%s0 + $0x1] sm:$0xff]
    %v2207 = vld [vmem:[%s0 + $0x9] sm:$0x1]
    %v2208 = vld [vmem:[%s0 + $0x11] sm:$0xff]
    %v2209 = vld [vmem:[%s0 + $0x19] sm:$0x1]
    %v2210 = vpack.c.bf16 %v2207, %v2206
    %v2211 = vpack.c.bf16 %v2209, %v2208
    %s2212 = scalar_lea.vmem [#allocation2], 256
    %v2213 = vld [vmem:[%s2212] sm:$0xff]
    %v2214 = vld [vmem:[%s2212 + $0x8] sm:$0xff]
    %v2215 = vld [vmem:[%s2212 + $0x10] sm:$0xff]
    %v2216 = vld [vmem:[%s2212 + $0x18] sm:$0xff]
    %v2217 = vld [vmem:[%s2212 + $0x20] sm:$0xff]
    %v2218 = vld [vmem:[%s2212 + $0x28] sm:$0xff]
    %v2219 = vld [vmem:[%s2212 + $0x30] sm:$0xff]
    %v2220 = vld [vmem:[%s2212 + $0x38] sm:$0xff]
    %v2223 = vcombine.high %v2210, %v2210
    %v2225 = vunpack.c.l.s4 1966171168
    %v2226 = vunpack.c.0.s8 %v2225
    %v2227 = vlaneseq
    %v2228 = vshrl.u32 %v2227, 7
    %v2229 = vsub.s32 %v2226, %v2228
    %v2230 = vrot.slane %v2210, %v2229
    %v2232 = vunpack.c.l.s4 1966171168
    %v2233 = vunpack.c.0.s8 %v2232
    %v2234 = vlaneseq
    %v2235 = vshrl.u32 %v2234, 7
    %v2236 = vsub.s32 %v2233, %v2235
    %v2237 = vrot.slane %v2223, %v2236
    %v2238 = vcombine.high %v2230, %v2230
    %v2240 = vunpack.c.l.s4 1966171168
    %v2241 = vunpack.c.0.s8 %v2240
    %v2242 = vlaneseq
    %v2243 = vshrl.u32 %v2242, 7
    %v2244 = vsub.s32 %v2241, %v2243
    %v2245 = vrot.slane %v2230, %v2244
    %v2247 = vunpack.c.l.s4 1966171168
    %v2248 = vunpack.c.0.s8 %v2247
    %v2249 = vlaneseq
    %v2250 = vshrl.u32 %v2249, 7
    %v2251 = vsub.s32 %v2248, %v2250
    %v2252 = vrot.slane %v2237, %v2251
    %v2254 = vunpack.c.l.s4 1966171168
    %v2255 = vunpack.c.0.s8 %v2254
    %v2256 = vlaneseq
    %v2257 = vshrl.u32 %v2256, 7
    %v2258 = vsub.s32 %v2255, %v2257
    %v2259 = vrot.slane %v2238, %v2258
    %v2260 = vcombine.high %v2245, %v2245
    %v2261 = vcombine.high %v2259, %v2259
    %v2262 = vcombine.high %v2211, %v2211
    %v2264 = vunpack.c.l.s4 1966171168
    %v2265 = vunpack.c.0.s8 %v2264
    %v2266 = vlaneseq
    %v2267 = vshrl.u32 %v2266, 7
    %v2268 = vsub.s32 %v2265, %v2267
    %v2269 = vrot.slane %v2211, %v2268
    %v2271 = vunpack.c.l.s4 1966171168
    %v2272 = vunpack.c.0.s8 %v2271
    %v2273 = vlaneseq
    %v2274 = vshrl.u32 %v2273, 7
    %v2275 = vsub.s32 %v2272, %v2274
    %v2276 = vrot.slane %v2262, %v2275
    %v2277 = vcombine.high %v2269, %v2269
    %v2279 = vunpack.c.l.s4 1966171168
    %v2280 = vunpack.c.0.s8 %v2279
    %v2281 = vlaneseq
    %v2282 = vshrl.u32 %v2281, 7
    %v2283 = vsub.s32 %v2280, %v2282
    %v2284 = vrot.slane %v2269, %v2283
    %v2286 = vunpack.c.l.s4 1966171168
    %v2287 = vunpack.c.0.s8 %v2286
    %v2288 = vlaneseq
    %v2289 = vshrl.u32 %v2288, 7
    %v2290 = vsub.s32 %v2287, %v2289
    %v2291 = vrot.slane %v2276, %v2290
    %v2293 = vunpack.c.l.s4 1966171168
    %v2294 = vunpack.c.0.s8 %v2293
    %v2295 = vlaneseq
    %v2296 = vshrl.u32 %v2295, 7
    %v2297 = vsub.s32 %v2294, %v2296
    %v2298 = vrot.slane %v2277, %v2297
    %v2299 = vcombine.high %v2284, %v2284
    %v2300 = vcombine.high %v2298, %v2298
    %v2301 = vunpack.i.l.s16 %v2245
    %v2302 = vunpack.i.h.s16 %v2245
    %v2303 = vunpack.i.l.s16 %v2259
    %v2304 = vunpack.i.h.s16 %v2259
    %v2305 = vunpack.i.l.s16 %v2260
    %v2306 = vunpack.i.h.s16 %v2260
    %v2307 = vunpack.i.l.s16 %v2261
    %v2308 = vunpack.i.h.s16 %v2261
    %v2309 = vunpack.i.l.s16 %v2252
    %v2310 = vunpack.i.l.s16 %v2284
    %v2311 = vunpack.i.h.s16 %v2284
    %v2312 = vunpack.i.l.s16 %v2298
    %v2313 = vunpack.i.h.s16 %v2298
    %v2314 = vunpack.i.l.s16 %v2299
    %v2315 = vunpack.i.h.s16 %v2299
    %v2316 = vunpack.i.l.s16 %v2300
    %v2317 = vunpack.i.h.s16 %v2300
    %v2318 = vunpack.i.l.s16 %v2291
    %v2319 = vpack.i.b16 %v2302, %v2301
    %v2320 = vpack.i.b16 %v2304, %v2303
    %v2321 = vpack.i.b16 %v2306, %v2305
    %v2322 = vpack.i.b16 %v2308, %v2307
    %v2323 = vpack.i.b16 %v2310, %v2309
    %v2324 = vpack.i.b16 %v2312, %v2311
    %v2325 = vpack.i.b16 %v2314, %v2313
    %v2326 = vpack.i.b16 %v2316, %v2315
    %v2327 = vpack.i.b16 %v2318, %v2317
    %v2328 = vcombine.low %v2319, %v2320
    %v2329 = vcombine.low %v2321, %v2322
    %v2330 = vcombine.low %v2323, %v2324
    %v2331 = vcombine.low %v2325, %v2326
    %v2333 = vunpack.c.l.s4 1966171168
    %v2334 = vunpack.c.0.s8 %v2333
    %v2335 = vlaneseq
    %v2336 = vshrl.u32 %v2335, 7
    %v2337 = vsub.s32 %v2334, %v2336
    %v2338 = vrot.slane %v2328, %v2337
    %v2340 = vunpack.c.l.s4 1966171168
    %v2341 = vunpack.c.0.s8 %v2340
    %v2342 = vlaneseq
    %v2343 = vshrl.u32 %v2342, 7
    %v2344 = vsub.s32 %v2341, %v2343
    %v2345 = vrot.slane %v2329, %v2344
    %v2347 = vunpack.c.l.s4 1966171168
    %v2348 = vunpack.c.0.s8 %v2347
    %v2349 = vlaneseq
    %v2350 = vshrl.u32 %v2349, 7
    %v2351 = vsub.s32 %v2348, %v2350
    %v2352 = vrot.slane %v2330, %v2351
    %v2354 = vunpack.c.l.s4 1966171168
    %v2355 = vunpack.c.0.s8 %v2354
    %v2356 = vlaneseq
    %v2357 = vshrl.u32 %v2356, 7
    %v2358 = vsub.s32 %v2355, %v2357
    %v2359 = vrot.slane %v2331, %v2358
    %v2360 = vcombine.low %v2338, %v2345
    %v2361 = vcombine.low %v2352, %v2359
    %v2363 = vunpack.c.l.s4 1966171168
    %v2364 = vunpack.c.0.s8 %v2363
    %v2365 = vlaneseq
    %v2366 = vshrl.u32 %v2365, 7
    %v2367 = vsub.s32 %v2364, %v2366
    %v2368 = vrot.slane %v2360, %v2367
    %v2370 = vunpack.c.l.s4 1966171168
    %v2371 = vunpack.c.0.s8 %v2370
    %v2372 = vlaneseq
    %v2373 = vshrl.u32 %v2372, 7
    %v2374 = vsub.s32 %v2371, %v2373
    %v2375 = vrot.slane %v2361, %v2374
    %v2376 = vcombine.low %v2368, %v2375
    %v2378 = vunpack.c.l.s4 1966171168
    %v2379 = vunpack.c.0.s8 %v2378
    %v2380 = vlaneseq
    %v2381 = vshrl.u32 %v2380, 7
    %v2382 = vsub.s32 %v2379, %v2381
    %v2383 = vrot.slane %v2327, %v2382
    %v2385 = vunpack.c.l.s4 1966171168
    %v2386 = vunpack.c.0.s8 %v2385
    %v2387 = vlaneseq
    %v2388 = vshrl.u32 %v2387, 7
    %v2389 = vsub.s32 %v2386, %v2388
    %v2390 = vrot.slane %v2383, %v2389
    %v2399 = vunpack.c.l.b16 %v2213
    %v2400 = vunpack.c.h.b16 %v2213
    %v2401 = vunpack.c.l.b16 %v2214
    %v2402 = vunpack.c.h.b16 %v2214
    %v2403 = vunpack.c.l.b16 %v2215
    %v2404 = vunpack.c.h.b16 %v2215
    %v2405 = vunpack.c.l.b16 %v2216
    %v2406 = vunpack.c.h.b16 %v2216
    %v2407 = vunpack.c.l.b16 %v2217
    %v2408 = vunpack.c.h.b16 %v2217
    %v2409 = vunpack.c.l.b16 %v2218
    %v2410 = vunpack.c.h.b16 %v2218
    %v2411 = vunpack.c.l.b16 %v2219
    %v2412 = vunpack.c.h.b16 %v2219
    %v2413 = vunpack.c.l.b16 %v2220
    %v2414 = vunpack.c.h.b16 %v2220
    %v2415 = vpack.c.b16 %v2407, %v2399
    %v2416 = vpack.c.b16 %v2408, %v2400
    %v2417 = vpack.c.b16 %v2409, %v2401
    %v2418 = vpack.c.b16 %v2410, %v2402
    %v2419 = vpack.c.b16 %v2411, %v2403
    %v2420 = vpack.c.b16 %v2412, %v2404
    %v2421 = vpack.c.b16 %v2413, %v2405
    %v2422 = vpack.c.b16 %v2414, %v2406
    %v2432 = vsel %vm242, %v2376, 0
    %v2435 = vsel %vm242, %v2390, 0
    %2437 = vmatprep.subr.bf16.mxu0 0
    %2438 = vmatpush1.bf16.msra.mxu0 0
    %2439 = vmatprep.subr.bf16.mxu0 0
    %2440 = vmatpush1.bf16.msra.mxu0 0
    %2441 = vmatprep.subr.bf16.mxu0 0
    %2442 = vmatpush1.bf16.msra.mxu0 0
    %2443 = vmatprep.subr.bf16.mxu0 0
    %2444 = vmatpush1.bf16.msra.mxu0 0
    %2445 = vmatprep.subr.bf16.mxu0 0
    %2446 = vmatpush1.bf16.msra.mxu0 0
    %2447 = vmatprep.subr.bf16.mxu0 0
    %2448 = vmatpush1.bf16.msra.mxu0 0
    %2449 = vmatprep.subr.bf16.mxu0 0
    %2450 = vmatpush1.bf16.msra.mxu0 0
    %2451 = vmatprep.subr.bf16.mxu0 %v2416
    %2452 = vmatpush1.bf16.msra.mxu0 %v2415
    %2453 = vmatprep.subr.bf16.mxu0 0
    %2454 = vmatpush2.bf16.msra.mxu0 0
    %2455 = vmatprep.subr.bf16.mxu0 0
    %2456 = vmatpush2.bf16.msra.mxu0 0
    %2457 = vmatprep.subr.bf16.mxu0 0
    %2458 = vmatpush2.bf16.msra.mxu0 0
    %2459 = vmatprep.subr.bf16.mxu0 0
    %2460 = vmatpush2.bf16.msra.mxu0 0
    %2461 = vmatprep.subr.bf16.mxu0 0
    %2462 = vmatpush2.bf16.msra.mxu0 0
    %2463 = vmatprep.subr.bf16.mxu0 0
    %2464 = vmatpush2.bf16.msra.mxu0 0
    %2465 = vmatprep.subr.bf16.mxu0 0
    %2466 = vmatpush2.bf16.msra.mxu0 0
    %2467 = vmatprep.subr.bf16.mxu0 0
    %2468 = vmatpush2.bf16.msra.mxu0 0
    %2469 = vmatprep.mubr.bf16.mxu0 0
    %2470 = vmatmul.mubr.bf16.gmra.mxu0 %v2432
    %v2471 = vpop.f32.mrf.mxu0
    %v2472 = vadd.f32 0.0, %v2471
    %v2473 = vpop.f32.mrf.mxu0
    %v2474 = vadd.f32 0.0, %v2473
    %v2475 = vpop.f32.mrf.mxu0
    %v2476 = vadd.f32 0.0, %v2475
    %v2477 = vpop.f32.mrf.mxu0
    %v2478 = vadd.f32 0.0, %v2477
    %2479 = vmatprep.mubr.bf16.mxu0 0
    %2480 = vmatmul.mubr.bf16.gmra.mxu0 %v2435
    %v2481 = vpop.f32.mrf.mxu0
    %v2482 = vadd.f32 0.0, %v2481
    %v2483 = vpop.f32.mrf.mxu0
    %v2484 = vadd.f32 0.0, %v2483
    %v2485 = vpop.f32.mrf.mxu0
    %v2486 = vpop.f32.mrf.mxu0
    %2487 = vdwg.mxu0
    %2488 = vmatprep.subr.bf16.mxu0 0
    %2489 = vmatpush1.bf16.msra.mxu0 0
    %2490 = vmatprep.subr.bf16.mxu0 0
    %2491 = vmatpush1.bf16.msra.mxu0 0
    %2492 = vmatprep.subr.bf16.mxu0 0
    %2493 = vmatpush1.bf16.msra.mxu0 0
    %2494 = vmatprep.subr.bf16.mxu0 0
    %2495 = vmatpush1.bf16.msra.mxu0 0
    %2496 = vmatprep.subr.bf16.mxu0 0
    %2497 = vmatpush1.bf16.msra.mxu0 0
    %2498 = vmatprep.subr.bf16.mxu0 0
    %2499 = vmatpush1.bf16.msra.mxu0 0
    %2500 = vmatprep.subr.bf16.mxu0 0
    %2501 = vmatpush1.bf16.msra.mxu0 0
    %2502 = vmatprep.subr.bf16.mxu0 %v2418
    %2503 = vmatpush1.bf16.msra.mxu0 %v2417
    %2504 = vmatprep.subr.bf16.mxu0 0
    %2505 = vmatpush2.bf16.msra.mxu0 0
    %2506 = vmatprep.subr.bf16.mxu0 0
    %2507 = vmatpush2.bf16.msra.mxu0 0
    %2508 = vmatprep.subr.bf16.mxu0 0
    %2509 = vmatpush2.bf16.msra.mxu0 0
    %2510 = vmatprep.subr.bf16.mxu0 0
    %2511 = vmatpush2.bf16.msra.mxu0 0
    %2512 = vmatprep.subr.bf16.mxu0 0
    %2513 = vmatpush2.bf16.msra.mxu0 0
    %2514 = vmatprep.subr.bf16.mxu0 0
    %2515 = vmatpush2.bf16.msra.mxu0 0
    %2516 = vmatprep.subr.bf16.mxu0 0
    %2517 = vmatpush2.bf16.msra.mxu0 0
    %2518 = vmatprep.subr.bf16.mxu0 0
    %2519 = vmatpush2.bf16.msra.mxu0 0
    %2520 = vmatprep.mubr.bf16.mxu0 0
    %2521 = vmatmul.mubr.bf16.gmra.mxu0 %v2432
    %v2522 = vpop.f32.mrf.mxu0
    %v2523 = vadd.f32 0.0, %v2522
    %v2524 = vpop.f32.mrf.mxu0
    %v2525 = vadd.f32 0.0, %v2524
    %v2526 = vpop.f32.mrf.mxu0
    %v2527 = vadd.f32 0.0, %v2526
    %v2528 = vpop.f32.mrf.mxu0
    %v2529 = vadd.f32 0.0, %v2528
    %2530 = vmatprep.mubr.bf16.mxu0 0
    %2531 = vmatmul.mubr.bf16.gmra.mxu0 %v2435
    %v2532 = vpop.f32.mrf.mxu0
    %v2533 = vadd.f32 0.0, %v2532
    %v2534 = vpop.f32.mrf.mxu0
    %v2535 = vadd.f32 0.0, %v2534
    %v2536 = vpop.f32.mrf.mxu0
    %v2537 = vpop.f32.mrf.mxu0
    %2538 = vdwg.mxu0
    %2539 = vmatprep.subr.bf16.mxu0 0
    %2540 = vmatpush1.bf16.msra.mxu0 0
    %2541 = vmatprep.subr.bf16.mxu0 0
    %2542 = vmatpush1.bf16.msra.mxu0 0
    %2543 = vmatprep.subr.bf16.mxu0 0
    %2544 = vmatpush1.bf16.msra.mxu0 0
    %2545 = vmatprep.subr.bf16.mxu0 0
    %2546 = vmatpush1.bf16.msra.mxu0 0
    %2547 = vmatprep.subr.bf16.mxu0 0
    %2548 = vmatpush1.bf16.msra.mxu0 0
    %2549 = vmatprep.subr.bf16.mxu0 0
    %2550 = vmatpush1.bf16.msra.mxu0 0
    %2551 = vmatprep.subr.bf16.mxu0 0
    %2552 = vmatpush1.bf16.msra.mxu0 0
    %2553 = vmatprep.subr.bf16.mxu0 %v2420
    %2554 = vmatpush1.bf16.msra.mxu0 %v2419
    %2555 = vmatprep.subr.bf16.mxu0 0
    %2556 = vmatpush2.bf16.msra.mxu0 0
    %2557 = vmatprep.subr.bf16.mxu0 0
    %2558 = vmatpush2.bf16.msra.mxu0 0
    %2559 = vmatprep.subr.bf16.mxu0 0
    %2560 = vmatpush2.bf16.msra.mxu0 0
    %2561 = vmatprep.subr.bf16.mxu0 0
    %2562 = vmatpush2.bf16.msra.mxu0 0
    %2563 = vmatprep.subr.bf16.mxu0 0
    %2564 = vmatpush2.bf16.msra.mxu0 0
    %2565 = vmatprep.subr.bf16.mxu0 0
    %2566 = vmatpush2.bf16.msra.mxu0 0
    %2567 = vmatprep.subr.bf16.mxu0 0
    %2568 = vmatpush2.bf16.msra.mxu0 0
    %2569 = vmatprep.subr.bf16.mxu0 0
    %2570 = vmatpush2.bf16.msra.mxu0 0
    %2571 = vmatprep.mubr.bf16.mxu0 0
    %2572 = vmatmul.mubr.bf16.gmra.mxu0 %v2432
    %v2573 = vpop.f32.mrf.mxu0
    %v2574 = vadd.f32 0.0, %v2573
    %v2575 = vpop.f32.mrf.mxu0
    %v2576 = vadd.f32 0.0, %v2575
    %v2577 = vpop.f32.mrf.mxu0
    %v2578 = vadd.f32 0.0, %v2577
    %v2579 = vpop.f32.mrf.mxu0
    %v2580 = vadd.f32 0.0, %v2579
    %2581 = vmatprep.mubr.bf16.mxu0 0
    %2582 = vmatmul.mubr.bf16.gmra.mxu0 %v2435
    %v2583 = vpop.f32.mrf.mxu0
    %v2584 = vadd.f32 0.0, %v2583
    %v2585 = vpop.f32.mrf.mxu0
    %v2586 = vadd.f32 0.0, %v2585
    %v2587 = vpop.f32.mrf.mxu0
    %v2588 = vpop.f32.mrf.mxu0
    %2589 = vdwg.mxu0
    %2590 = vmatprep.subr.bf16.mxu0 0
    %2591 = vmatpush1.bf16.msra.mxu0 0
    %2592 = vmatprep.subr.bf16.mxu0 0
    %2593 = vmatpush1.bf16.msra.mxu0 0
    %2594 = vmatprep.subr.bf16.mxu0 0
    %2595 = vmatpush1.bf16.msra.mxu0 0
    %2596 = vmatprep.subr.bf16.mxu0 0
    %2597 = vmatpush1.bf16.msra.mxu0 0
    %2598 = vmatprep.subr.bf16.mxu0 0
    %2599 = vmatpush1.bf16.msra.mxu0 0
    %2600 = vmatprep.subr.bf16.mxu0 0
    %2601 = vmatpush1.bf16.msra.mxu0 0
    %2602 = vmatprep.subr.bf16.mxu0 0
    %2603 = vmatpush1.bf16.msra.mxu0 0
    %2604 = vmatprep.subr.bf16.mxu0 %v2422
    %2605 = vmatpush1.bf16.msra.mxu0 %v2421
    %2606 = vmatprep.subr.bf16.mxu0 0
    %2607 = vmatpush2.bf16.msra.mxu0 0
    %2608 = vmatprep.subr.bf16.mxu0 0
    %2609 = vmatpush2.bf16.msra.mxu0 0
    %2610 = vmatprep.subr.bf16.mxu0 0
    %2611 = vmatpush2.bf16.msra.mxu0 0
    %2612 = vmatprep.subr.bf16.mxu0 0
    %2613 = vmatpush2.bf16.msra.mxu0 0
    %2614 = vmatprep.subr.bf16.mxu0 0
    %2615 = vmatpush2.bf16.msra.mxu0 0
    %2616 = vmatprep.subr.bf16.mxu0 0
    %2617 = vmatpush2.bf16.msra.mxu0 0
    %2618 = vmatprep.subr.bf16.mxu0 0
    %2619 = vmatpush2.bf16.msra.mxu0 0
    %2620 = vmatprep.subr.bf16.mxu0 0
    %2621 = vmatpush2.bf16.msra.mxu0 0
    %2622 = vmatprep.mubr.bf16.mxu0 0
    %2623 = vmatmul.mubr.bf16.gmra.mxu0 %v2432
    %v2624 = vpop.f32.mrf.mxu0
    %v2625 = vadd.f32 0.0, %v2624
    %v2626 = vpop.f32.mrf.mxu0
    %v2627 = vadd.f32 0.0, %v2626
    %v2628 = vpop.f32.mrf.mxu0
    %v2629 = vadd.f32 0.0, %v2628
    %v2630 = vpop.f32.mrf.mxu0
    %v2631 = vadd.f32 0.0, %v2630
    %2632 = vmatprep.mubr.bf16.mxu0 0
    %2633 = vmatmul.mubr.bf16.gmra.mxu0 %v2435
    %v2634 = vpop.f32.mrf.mxu0
    %v2635 = vadd.f32 0.0, %v2634
    %v2636 = vpop.f32.mrf.mxu0
    %v2637 = vadd.f32 0.0, %v2636
    %v2638 = vpop.f32.mrf.mxu0
    %v2639 = vpop.f32.mrf.mxu0
    %2640 = vdwg.mxu0
    %v2643 = vcombine.high %v2195, %v2195
    %v2645 = vunpack.c.l.s4 1966171168
    %v2646 = vunpack.c.0.s8 %v2645
    %v2647 = vlaneseq
    %v2648 = vshrl.u32 %v2647, 7
    %v2649 = vsub.s32 %v2646, %v2648
    %v2650 = vrot.slane %v2195, %v2649
    %v2652 = vunpack.c.l.s4 1966171168
    %v2653 = vunpack.c.0.s8 %v2652
    %v2654 = vlaneseq
    %v2655 = vshrl.u32 %v2654, 7
    %v2656 = vsub.s32 %v2653, %v2655
    %v2657 = vrot.slane %v2643, %v2656
    %v2658 = vcombine.high %v2650, %v2650
    %v2660 = vunpack.c.l.s4 1966171168
    %v2661 = vunpack.c.0.s8 %v2660
    %v2662 = vlaneseq
    %v2663 = vshrl.u32 %v2662, 7
    %v2664 = vsub.s32 %v2661, %v2663
    %v2665 = vrot.slane %v2650, %v2664
    %v2667 = vunpack.c.l.s4 1966171168
    %v2668 = vunpack.c.0.s8 %v2667
    %v2669 = vlaneseq
    %v2670 = vshrl.u32 %v2669, 7
    %v2671 = vsub.s32 %v2668, %v2670
    %v2672 = vrot.slane %v2657, %v2671
    %v2674 = vunpack.c.l.s4 1966171168
    %v2675 = vunpack.c.0.s8 %v2674
    %v2676 = vlaneseq
    %v2677 = vshrl.u32 %v2676, 7
    %v2678 = vsub.s32 %v2675, %v2677
    %v2679 = vrot.slane %v2658, %v2678
    %v2680 = vcombine.high %v2665, %v2665
    %v2681 = vcombine.high %v2679, %v2679
    %v2682 = vcombine.high %v2196, %v2196
    %v2684 = vunpack.c.l.s4 1966171168
    %v2685 = vunpack.c.0.s8 %v2684
    %v2686 = vlaneseq
    %v2687 = vshrl.u32 %v2686, 7
    %v2688 = vsub.s32 %v2685, %v2687
    %v2689 = vrot.slane %v2196, %v2688
    %v2691 = vunpack.c.l.s4 1966171168
    %v2692 = vunpack.c.0.s8 %v2691
    %v2693 = vlaneseq
    %v2694 = vshrl.u32 %v2693, 7
    %v2695 = vsub.s32 %v2692, %v2694
    %v2696 = vrot.slane %v2682, %v2695
    %v2697 = vcombine.high %v2689, %v2689
    %v2699 = vunpack.c.l.s4 1966171168
    %v2700 = vunpack.c.0.s8 %v2699
    %v2701 = vlaneseq
    %v2702 = vshrl.u32 %v2701, 7
    %v2703 = vsub.s32 %v2700, %v2702
    %v2704 = vrot.slane %v2689, %v2703
    %v2706 = vunpack.c.l.s4 1966171168
    %v2707 = vunpack.c.0.s8 %v2706
    %v2708 = vlaneseq
    %v2709 = vshrl.u32 %v2708, 7
    %v2710 = vsub.s32 %v2707, %v2709
    %v2711 = vrot.slane %v2696, %v2710
    %v2713 = vunpack.c.l.s4 1966171168
    %v2714 = vunpack.c.0.s8 %v2713
    %v2715 = vlaneseq
    %v2716 = vshrl.u32 %v2715, 7
    %v2717 = vsub.s32 %v2714, %v2716
    %v2718 = vrot.slane %v2697, %v2717
    %v2719 = vcombine.high %v2704, %v2704
    %v2720 = vcombine.high %v2718, %v2718
    %v2721 = vunpack.i.l.s16 %v2665
    %v2722 = vunpack.i.h.s16 %v2665
    %v2723 = vunpack.i.l.s16 %v2679
    %v2724 = vunpack.i.h.s16 %v2679
    %v2725 = vunpack.i.l.s16 %v2680
    %v2726 = vunpack.i.h.s16 %v2680
    %v2727 = vunpack.i.l.s16 %v2681
    %v2728 = vunpack.i.h.s16 %v2681
    %v2729 = vunpack.i.l.s16 %v2672
    %v2730 = vunpack.i.l.s16 %v2704
    %v2731 = vunpack.i.h.s16 %v2704
    %v2732 = vunpack.i.l.s16 %v2718
    %v2733 = vunpack.i.h.s16 %v2718
    %v2734 = vunpack.i.l.s16 %v2719
    %v2735 = vunpack.i.h.s16 %v2719
    %v2736 = vunpack.i.l.s16 %v2720
    %v2737 = vunpack.i.h.s16 %v2720
    %v2738 = vunpack.i.l.s16 %v2711
    %v2739 = vpack.i.b16 %v2722, %v2721
    %v2740 = vpack.i.b16 %v2724, %v2723
    %v2741 = vpack.i.b16 %v2726, %v2725
    %v2742 = vpack.i.b16 %v2728, %v2727
    %v2743 = vpack.i.b16 %v2730, %v2729
    %v2744 = vpack.i.b16 %v2732, %v2731
    %v2745 = vpack.i.b16 %v2734, %v2733
    %v2746 = vpack.i.b16 %v2736, %v2735
    %v2747 = vpack.i.b16 %v2738, %v2737
    %v2748 = vcombine.low %v2739, %v2740
    %v2749 = vcombine.low %v2741, %v2742
    %v2750 = vcombine.low %v2743, %v2744
    %v2751 = vcombine.low %v2745, %v2746
    %v2753 = vunpack.c.l.s4 1966171168
    %v2754 = vunpack.c.0.s8 %v2753
    %v2755 = vlaneseq
    %v2756 = vshrl.u32 %v2755, 7
    %v2757 = vsub.s32 %v2754, %v2756
    %v2758 = vrot.slane %v2748, %v2757
    %v2760 = vunpack.c.l.s4 1966171168
    %v2761 = vunpack.c.0.s8 %v2760
    %v2762 = vlaneseq
    %v2763 = vshrl.u32 %v2762, 7
    %v2764 = vsub.s32 %v2761, %v2763
    %v2765 = vrot.slane %v2749, %v2764
    %v2767 = vunpack.c.l.s4 1966171168
    %v2768 = vunpack.c.0.s8 %v2767
    %v2769 = vlaneseq
    %v2770 = vshrl.u32 %v2769, 7
    %v2771 = vsub.s32 %v2768, %v2770
    %v2772 = vrot.slane %v2750, %v2771
    %v2774 = vunpack.c.l.s4 1966171168
    %v2775 = vunpack.c.0.s8 %v2774
    %v2776 = vlaneseq
    %v2777 = vshrl.u32 %v2776, 7
    %v2778 = vsub.s32 %v2775, %v2777
    %v2779 = vrot.slane %v2751, %v2778
    %v2780 = vcombine.low %v2758, %v2765
    %v2781 = vcombine.low %v2772, %v2779
    %v2783 = vunpack.c.l.s4 1966171168
    %v2784 = vunpack.c.0.s8 %v2783
    %v2785 = vlaneseq
    %v2786 = vshrl.u32 %v2785, 7
    %v2787 = vsub.s32 %v2784, %v2786
    %v2788 = vrot.slane %v2780, %v2787
    %v2790 = vunpack.c.l.s4 1966171168
    %v2791 = vunpack.c.0.s8 %v2790
    %v2792 = vlaneseq
    %v2793 = vshrl.u32 %v2792, 7
    %v2794 = vsub.s32 %v2791, %v2793
    %v2795 = vrot.slane %v2781, %v2794
    %v2796 = vcombine.low %v2788, %v2795
    %v2798 = vunpack.c.l.s4 1966171168
    %v2799 = vunpack.c.0.s8 %v2798
    %v2800 = vlaneseq
    %v2801 = vshrl.u32 %v2800, 7
    %v2802 = vsub.s32 %v2799, %v2801
    %v2803 = vrot.slane %v2747, %v2802
    %v2805 = vunpack.c.l.s4 1966171168
    %v2806 = vunpack.c.0.s8 %v2805
    %v2807 = vlaneseq
    %v2808 = vshrl.u32 %v2807, 7
    %v2809 = vsub.s32 %v2806, %v2808
    %v2810 = vrot.slane %v2803, %v2809
    %v2819 = vunpack.c.l.b16 %v2198
    %v2820 = vunpack.c.h.b16 %v2198
    %v2821 = vunpack.c.l.b16 %v2199
    %v2822 = vunpack.c.h.b16 %v2199
    %v2823 = vunpack.c.l.b16 %v2200
    %v2824 = vunpack.c.h.b16 %v2200
    %v2825 = vunpack.c.l.b16 %v2201
    %v2826 = vunpack.c.h.b16 %v2201
    %v2827 = vunpack.c.l.b16 %v2202
    %v2828 = vunpack.c.h.b16 %v2202
    %v2829 = vunpack.c.l.b16 %v2203
    %v2830 = vunpack.c.h.b16 %v2203
    %v2831 = vunpack.c.l.b16 %v2204
    %v2832 = vunpack.c.h.b16 %v2204
    %v2833 = vunpack.c.l.b16 %v2205
    %v2834 = vunpack.c.h.b16 %v2205
    %v2835 = vpack.c.b16 %v2827, %v2819
    %v2836 = vpack.c.b16 %v2828, %v2820
    %v2837 = vpack.c.b16 %v2829, %v2821
    %v2838 = vpack.c.b16 %v2830, %v2822
    %v2839 = vpack.c.b16 %v2831, %v2823
    %v2840 = vpack.c.b16 %v2832, %v2824
    %v2841 = vpack.c.b16 %v2833, %v2825
    %v2842 = vpack.c.b16 %v2834, %v2826
    %v2852 = vsel %vm242, %v2796, 0
    %v2855 = vsel %vm242, %v2810, 0
    %2857 = vmatprep.subr.bf16.mxu0 0
    %2858 = vmatpush1.bf16.msra.mxu0 0
    %2859 = vmatprep.subr.bf16.mxu0 0
    %2860 = vmatpush1.bf16.msra.mxu0 0
    %2861 = vmatprep.subr.bf16.mxu0 0
    %2862 = vmatpush1.bf16.msra.mxu0 0
    %2863 = vmatprep.subr.bf16.mxu0 0
    %2864 = vmatpush1.bf16.msra.mxu0 0
    %2865 = vmatprep.subr.bf16.mxu0 0
    %2866 = vmatpush1.bf16.msra.mxu0 0
    %2867 = vmatprep.subr.bf16.mxu0 0
    %2868 = vmatpush1.bf16.msra.mxu0 0
    %2869 = vmatprep.subr.bf16.mxu0 0
    %2870 = vmatpush1.bf16.msra.mxu0 0
    %2871 = vmatprep.subr.bf16.mxu0 %v2836
    %2872 = vmatpush1.bf16.msra.mxu0 %v2835
    %2873 = vmatprep.subr.bf16.mxu0 0
    %2874 = vmatpush2.bf16.msra.mxu0 0
    %2875 = vmatprep.subr.bf16.mxu0 0
    %2876 = vmatpush2.bf16.msra.mxu0 0
    %2877 = vmatprep.subr.bf16.mxu0 0
    %2878 = vmatpush2.bf16.msra.mxu0 0
    %2879 = vmatprep.subr.bf16.mxu0 0
    %2880 = vmatpush2.bf16.msra.mxu0 0
    %2881 = vmatprep.subr.bf16.mxu0 0
    %2882 = vmatpush2.bf16.msra.mxu0 0
    %2883 = vmatprep.subr.bf16.mxu0 0
    %2884 = vmatpush2.bf16.msra.mxu0 0
    %2885 = vmatprep.subr.bf16.mxu0 0
    %2886 = vmatpush2.bf16.msra.mxu0 0
    %2887 = vmatprep.subr.bf16.mxu0 0
    %2888 = vmatpush2.bf16.msra.mxu0 0
    %2889 = vmatprep.mubr.bf16.mxu0 0
    %2890 = vmatmul.mubr.bf16.gmra.mxu0 %v2852
    %v2891 = vpop.f32.mrf.mxu0
    %v2892 = vadd.f32 %v2472, %v2891
    %v2893 = vpop.f32.mrf.mxu0
    %v2894 = vadd.f32 %v2474, %v2893
    %v2895 = vpop.f32.mrf.mxu0
    %v2896 = vadd.f32 %v2476, %v2895
    %v2897 = vpop.f32.mrf.mxu0
    %v2898 = vadd.f32 %v2478, %v2897
    %2899 = vmatprep.mubr.bf16.mxu0 0
    %2900 = vmatmul.mubr.bf16.gmra.mxu0 %v2855
    %v2901 = vpop.f32.mrf.mxu0
    %v2902 = vadd.f32 %v2482, %v2901
    %v2903 = vpop.f32.mrf.mxu0
    %v2904 = vadd.f32 %v2484, %v2903
    %v2905 = vpop.f32.mrf.mxu0
    %v2906 = vpop.f32.mrf.mxu0
    %2907 = vdwg.mxu0
    %2908 = vmatprep.subr.bf16.mxu0 0
    %2909 = vmatpush1.bf16.msra.mxu0 0
    %2910 = vmatprep.subr.bf16.mxu0 0
    %2911 = vmatpush1.bf16.msra.mxu0 0
    %2912 = vmatprep.subr.bf16.mxu0 0
    %2913 = vmatpush1.bf16.msra.mxu0 0
    %2914 = vmatprep.subr.bf16.mxu0 0
    %2915 = vmatpush1.bf16.msra.mxu0 0
    %2916 = vmatprep.subr.bf16.mxu0 0
    %2917 = vmatpush1.bf16.msra.mxu0 0
    %2918 = vmatprep.subr.bf16.mxu0 0
    %2919 = vmatpush1.bf16.msra.mxu0 0
    %2920 = vmatprep.subr.bf16.mxu0 0
    %2921 = vmatpush1.bf16.msra.mxu0 0
    %2922 = vmatprep.subr.bf16.mxu0 %v2838
    %2923 = vmatpush1.bf16.msra.mxu0 %v2837
    %2924 = vmatprep.subr.bf16.mxu0 0
    %2925 = vmatpush2.bf16.msra.mxu0 0
    %2926 = vmatprep.subr.bf16.mxu0 0
    %2927 = vmatpush2.bf16.msra.mxu0 0
    %2928 = vmatprep.subr.bf16.mxu0 0
    %2929 = vmatpush2.bf16.msra.mxu0 0
    %2930 = vmatprep.subr.bf16.mxu0 0
    %2931 = vmatpush2.bf16.msra.mxu0 0
    %2932 = vmatprep.subr.bf16.mxu0 0
    %2933 = vmatpush2.bf16.msra.mxu0 0
    %2934 = vmatprep.subr.bf16.mxu0 0
    %2935 = vmatpush2.bf16.msra.mxu0 0
    %2936 = vmatprep.subr.bf16.mxu0 0
    %2937 = vmatpush2.bf16.msra.mxu0 0
    %2938 = vmatprep.subr.bf16.mxu0 0
    %2939 = vmatpush2.bf16.msra.mxu0 0
    %2940 = vmatprep.mubr.bf16.mxu0 0
    %2941 = vmatmul.mubr.bf16.gmra.mxu0 %v2852
    %v2942 = vpop.f32.mrf.mxu0
    %v2943 = vadd.f32 %v2523, %v2942
    %v2944 = vpop.f32.mrf.mxu0
    %v2945 = vadd.f32 %v2525, %v2944
    %v2946 = vpop.f32.mrf.mxu0
    %v2947 = vadd.f32 %v2527, %v2946
    %v2948 = vpop.f32.mrf.mxu0
    %v2949 = vadd.f32 %v2529, %v2948
    %2950 = vmatprep.mubr.bf16.mxu0 0
    %2951 = vmatmul.mubr.bf16.gmra.mxu0 %v2855
    %v2952 = vpop.f32.mrf.mxu0
    %v2953 = vadd.f32 %v2533, %v2952
    %v2954 = vpop.f32.mrf.mxu0
    %v2955 = vadd.f32 %v2535, %v2954
    %v2956 = vpop.f32.mrf.mxu0
    %v2957 = vpop.f32.mrf.mxu0
    %2958 = vdwg.mxu0
    %2959 = vmatprep.subr.bf16.mxu0 0
    %2960 = vmatpush1.bf16.msra.mxu0 0
    %2961 = vmatprep.subr.bf16.mxu0 0
    %2962 = vmatpush1.bf16.msra.mxu0 0
    %2963 = vmatprep.subr.bf16.mxu0 0
    %2964 = vmatpush1.bf16.msra.mxu0 0
    %2965 = vmatprep.subr.bf16.mxu0 0
    %2966 = vmatpush1.bf16.msra.mxu0 0
    %2967 = vmatprep.subr.bf16.mxu0 0
    %2968 = vmatpush1.bf16.msra.mxu0 0
    %2969 = vmatprep.subr.bf16.mxu0 0
    %2970 = vmatpush1.bf16.msra.mxu0 0
    %2971 = vmatprep.subr.bf16.mxu0 0
    %2972 = vmatpush1.bf16.msra.mxu0 0
    %2973 = vmatprep.subr.bf16.mxu0 %v2840
    %2974 = vmatpush1.bf16.msra.mxu0 %v2839
    %2975 = vmatprep.subr.bf16.mxu0 0
    %2976 = vmatpush2.bf16.msra.mxu0 0
    %2977 = vmatprep.subr.bf16.mxu0 0
    %2978 = vmatpush2.bf16.msra.mxu0 0
    %2979 = vmatprep.subr.bf16.mxu0 0
    %2980 = vmatpush2.bf16.msra.mxu0 0
    %2981 = vmatprep.subr.bf16.mxu0 0
    %2982 = vmatpush2.bf16.msra.mxu0 0
    %2983 = vmatprep.subr.bf16.mxu0 0
    %2984 = vmatpush2.bf16.msra.mxu0 0
    %2985 = vmatprep.subr.bf16.mxu0 0
    %2986 = vmatpush2.bf16.msra.mxu0 0
    %2987 = vmatprep.subr.bf16.mxu0 0
    %2988 = vmatpush2.bf16.msra.mxu0 0
    %2989 = vmatprep.subr.bf16.mxu0 0
    %2990 = vmatpush2.bf16.msra.mxu0 0
    %2991 = vmatprep.mubr.bf16.mxu0 0
    %2992 = vmatmul.mubr.bf16.gmra.mxu0 %v2852
    %v2993 = vpop.f32.mrf.mxu0
    %v2994 = vadd.f32 %v2574, %v2993
    %v2995 = vpop.f32.mrf.mxu0
    %v2996 = vadd.f32 %v2576, %v2995
    %v2997 = vpop.f32.mrf.mxu0
    %v2998 = vadd.f32 %v2578, %v2997
    %v2999 = vpop.f32.mrf.mxu0
    %v3000 = vadd.f32 %v2580, %v2999
    %3001 = vmatprep.mubr.bf16.mxu0 0
    %3002 = vmatmul.mubr.bf16.gmra.mxu0 %v2855
    %v3003 = vpop.f32.mrf.mxu0
    %v3004 = vadd.f32 %v2584, %v3003
    %v3005 = vpop.f32.mrf.mxu0
    %v3006 = vadd.f32 %v2586, %v3005
    %v3007 = vpop.f32.mrf.mxu0
    %v3008 = vpop.f32.mrf.mxu0
    %3009 = vdwg.mxu0
    %3010 = vmatprep.subr.bf16.mxu0 0
    %3011 = vmatpush1.bf16.msra.mxu0 0
    %3012 = vmatprep.subr.bf16.mxu0 0
    %3013 = vmatpush1.bf16.msra.mxu0 0
    %3014 = vmatprep.subr.bf16.mxu0 0
    %3015 = vmatpush1.bf16.msra.mxu0 0
    %3016 = vmatprep.subr.bf16.mxu0 0
    %3017 = vmatpush1.bf16.msra.mxu0 0
    %3018 = vmatprep.subr.bf16.mxu0 0
    %3019 = vmatpush1.bf16.msra.mxu0 0
    %3020 = vmatprep.subr.bf16.mxu0 0
    %3021 = vmatpush1.bf16.msra.mxu0 0
    %3022 = vmatprep.subr.bf16.mxu0 0
    %3023 = vmatpush1.bf16.msra.mxu0 0
    %3024 = vmatprep.subr.bf16.mxu0 %v2842
    %3025 = vmatpush1.bf16.msra.mxu0 %v2841
    %3026 = vmatprep.subr.bf16.mxu0 0
    %3027 = vmatpush2.bf16.msra.mxu0 0
    %3028 = vmatprep.subr.bf16.mxu0 0
    %3029 = vmatpush2.bf16.msra.mxu0 0
    %3030 = vmatprep.subr.bf16.mxu0 0
    %3031 = vmatpush2.bf16.msra.mxu0 0
    %3032 = vmatprep.subr.bf16.mxu0 0
    %3033 = vmatpush2.bf16.msra.mxu0 0
    %3034 = vmatprep.subr.bf16.mxu0 0
    %3035 = vmatpush2.bf16.msra.mxu0 0
    %3036 = vmatprep.subr.bf16.mxu0 0
    %3037 = vmatpush2.bf16.msra.mxu0 0
    %3038 = vmatprep.subr.bf16.mxu0 0
    %3039 = vmatpush2.bf16.msra.mxu0 0
    %3040 = vmatprep.subr.bf16.mxu0 0
    %3041 = vmatpush2.bf16.msra.mxu0 0
    %3042 = vmatprep.mubr.bf16.mxu0 0
    %3043 = vmatmul.mubr.bf16.gmra.mxu0 %v2852
    %v3044 = vpop.f32.mrf.mxu0
    %v3045 = vadd.f32 %v2625, %v3044
    %v3046 = vpop.f32.mrf.mxu0
    %v3047 = vadd.f32 %v2627, %v3046
    %v3048 = vpop.f32.mrf.mxu0
    %v3049 = vadd.f32 %v2629, %v3048
    %v3050 = vpop.f32.mrf.mxu0
    %v3051 = vadd.f32 %v2631, %v3050
    %3052 = vmatprep.mubr.bf16.mxu0 0
    %3053 = vmatmul.mubr.bf16.gmra.mxu0 %v2855
    %v3054 = vpop.f32.mrf.mxu0
    %v3055 = vadd.f32 %v2635, %v3054
    %v3056 = vpop.f32.mrf.mxu0
    %v3057 = vadd.f32 %v2637, %v3056
    %v3058 = vpop.f32.mrf.mxu0
    %v3059 = vpop.f32.mrf.mxu0
    %3060 = vdwg.mxu0
    %v3085 = vcombine.low %v2892, %v2894
    %v3086 = vcombine.high %v2892, %v2894
    %v3087 = vcombine.low %v2943, %v2945
    %v3088 = vcombine.high %v2943, %v2945
    %v3089 = vcombine.low %v2994, %v2996
    %v3090 = vcombine.high %v2994, %v2996
    %v3091 = vcombine.low %v3045, %v3047
    %v3092 = vcombine.high %v3045, %v3047
    %v3094 = vunpack.c.l.s4 1966171168
    %v3095 = vunpack.c.0.s8 %v3094
    %v3096 = vlaneseq
    %v3097 = vshrl.u32 %v3096, 7
    %v3098 = vsub.s32 %v3095, %v3097
    %v3099 = vrot.slane %v3085, %v3098
    %v3101 = vunpack.c.l.s4 1966171168
    %v3102 = vunpack.c.0.s8 %v3101
    %v3103 = vlaneseq
    %v3104 = vshrl.u32 %v3103, 7
    %v3105 = vsub.s32 %v3102, %v3104
    %v3106 = vrot.slane %v3086, %v3105
    %v3108 = vunpack.c.l.s4 1966171168
    %v3109 = vunpack.c.0.s8 %v3108
    %v3110 = vlaneseq
    %v3111 = vshrl.u32 %v3110, 7
    %v3112 = vsub.s32 %v3109, %v3111
    %v3113 = vrot.slane %v3087, %v3112
    %v3115 = vunpack.c.l.s4 1966171168
    %v3116 = vunpack.c.0.s8 %v3115
    %v3117 = vlaneseq
    %v3118 = vshrl.u32 %v3117, 7
    %v3119 = vsub.s32 %v3116, %v3118
    %v3120 = vrot.slane %v3088, %v3119
    %v3122 = vunpack.c.l.s4 1966171168
    %v3123 = vunpack.c.0.s8 %v3122
    %v3124 = vlaneseq
    %v3125 = vshrl.u32 %v3124, 7
    %v3126 = vsub.s32 %v3123, %v3125
    %v3127 = vrot.slane %v3089, %v3126
    %v3129 = vunpack.c.l.s4 1966171168
    %v3130 = vunpack.c.0.s8 %v3129
    %v3131 = vlaneseq
    %v3132 = vshrl.u32 %v3131, 7
    %v3133 = vsub.s32 %v3130, %v3132
    %v3134 = vrot.slane %v3090, %v3133
    %v3136 = vunpack.c.l.s4 1966171168
    %v3137 = vunpack.c.0.s8 %v3136
    %v3138 = vlaneseq
    %v3139 = vshrl.u32 %v3138, 7
    %v3140 = vsub.s32 %v3137, %v3139
    %v3141 = vrot.slane %v3091, %v3140
    %v3143 = vunpack.c.l.s4 1966171168
    %v3144 = vunpack.c.0.s8 %v3143
    %v3145 = vlaneseq
    %v3146 = vshrl.u32 %v3145, 7
    %v3147 = vsub.s32 %v3144, %v3146
    %v3148 = vrot.slane %v3092, %v3147
    %v3149 = vcombine.low %v3099, %v3113
    %v3150 = vcombine.high %v3099, %v3113
    %v3151 = vcombine.low %v3106, %v3120
    %v3152 = vcombine.high %v3106, %v3120
    %v3153 = vcombine.low %v3127, %v3141
    %v3154 = vcombine.high %v3127, %v3141
    %v3155 = vcombine.low %v3134, %v3148
    %v3156 = vcombine.high %v3134, %v3148
    %v3158 = vunpack.c.l.s4 1966171168
    %v3159 = vunpack.c.0.s8 %v3158
    %v3160 = vlaneseq
    %v3161 = vshrl.u32 %v3160, 7
    %v3162 = vsub.s32 %v3159, %v3161
    %v3163 = vrot.slane %v3149, %v3162
    %v3165 = vunpack.c.l.s4 1966171168
    %v3166 = vunpack.c.0.s8 %v3165
    %v3167 = vlaneseq
    %v3168 = vshrl.u32 %v3167, 7
    %v3169 = vsub.s32 %v3166, %v3168
    %v3170 = vrot.slane %v3151, %v3169
    %v3172 = vunpack.c.l.s4 1966171168
    %v3173 = vunpack.c.0.s8 %v3172
    %v3174 = vlaneseq
    %v3175 = vshrl.u32 %v3174, 7
    %v3176 = vsub.s32 %v3173, %v3175
    %v3177 = vrot.slane %v3150, %v3176
    %v3179 = vunpack.c.l.s4 1966171168
    %v3180 = vunpack.c.0.s8 %v3179
    %v3181 = vlaneseq
    %v3182 = vshrl.u32 %v3181, 7
    %v3183 = vsub.s32 %v3180, %v3182
    %v3184 = vrot.slane %v3152, %v3183
    %v3186 = vunpack.c.l.s4 1966171168
    %v3187 = vunpack.c.0.s8 %v3186
    %v3188 = vlaneseq
    %v3189 = vshrl.u32 %v3188, 7
    %v3190 = vsub.s32 %v3187, %v3189
    %v3191 = vrot.slane %v3153, %v3190
    %v3193 = vunpack.c.l.s4 1966171168
    %v3194 = vunpack.c.0.s8 %v3193
    %v3195 = vlaneseq
    %v3196 = vshrl.u32 %v3195, 7
    %v3197 = vsub.s32 %v3194, %v3196
    %v3198 = vrot.slane %v3155, %v3197
    %v3200 = vunpack.c.l.s4 1966171168
    %v3201 = vunpack.c.0.s8 %v3200
    %v3202 = vlaneseq
    %v3203 = vshrl.u32 %v3202, 7
    %v3204 = vsub.s32 %v3201, %v3203
    %v3205 = vrot.slane %v3154, %v3204
    %v3207 = vunpack.c.l.s4 1966171168
    %v3208 = vunpack.c.0.s8 %v3207
    %v3209 = vlaneseq
    %v3210 = vshrl.u32 %v3209, 7
    %v3211 = vsub.s32 %v3208, %v3210
    %v3212 = vrot.slane %v3156, %v3211
    %v3213 = vcombine.low %v3163, %v3191
    %v3214 = vcombine.high %v3163, %v3191
    %v3215 = vcombine.low %v3170, %v3198
    %v3216 = vcombine.high %v3170, %v3198
    %v3217 = vcombine.low %v3177, %v3205
    %v3218 = vcombine.high %v3177, %v3205
    %v3219 = vcombine.low %v3184, %v3212
    %v3220 = vcombine.high %v3184, %v3212
    %v3221 = vcombine.low %v2896, %v2898
    %v3222 = vcombine.high %v2896, %v2898
    %v3223 = vcombine.low %v2947, %v2949
    %v3224 = vcombine.high %v2947, %v2949
    %v3225 = vcombine.low %v2998, %v3000
    %v3226 = vcombine.high %v2998, %v3000
    %v3227 = vcombine.low %v3049, %v3051
    %v3228 = vcombine.high %v3049, %v3051
    %v3230 = vunpack.c.l.s4 1966171168
    %v3231 = vunpack.c.0.s8 %v3230
    %v3232 = vlaneseq
    %v3233 = vshrl.u32 %v3232, 7
    %v3234 = vsub.s32 %v3231, %v3233
    %v3235 = vrot.slane %v3221, %v3234
    %v3237 = vunpack.c.l.s4 1966171168
    %v3238 = vunpack.c.0.s8 %v3237
    %v3239 = vlaneseq
    %v3240 = vshrl.u32 %v3239, 7
    %v3241 = vsub.s32 %v3238, %v3240
    %v3242 = vrot.slane %v3222, %v3241
    %v3244 = vunpack.c.l.s4 1966171168
    %v3245 = vunpack.c.0.s8 %v3244
    %v3246 = vlaneseq
    %v3247 = vshrl.u32 %v3246, 7
    %v3248 = vsub.s32 %v3245, %v3247
    %v3249 = vrot.slane %v3223, %v3248
    %v3251 = vunpack.c.l.s4 1966171168
    %v3252 = vunpack.c.0.s8 %v3251
    %v3253 = vlaneseq
    %v3254 = vshrl.u32 %v3253, 7
    %v3255 = vsub.s32 %v3252, %v3254
    %v3256 = vrot.slane %v3224, %v3255
    %v3258 = vunpack.c.l.s4 1966171168
    %v3259 = vunpack.c.0.s8 %v3258
    %v3260 = vlaneseq
    %v3261 = vshrl.u32 %v3260, 7
    %v3262 = vsub.s32 %v3259, %v3261
    %v3263 = vrot.slane %v3225, %v3262
    %v3265 = vunpack.c.l.s4 1966171168
    %v3266 = vunpack.c.0.s8 %v3265
    %v3267 = vlaneseq
    %v3268 = vshrl.u32 %v3267, 7
    %v3269 = vsub.s32 %v3266, %v3268
    %v3270 = vrot.slane %v3226, %v3269
    %v3272 = vunpack.c.l.s4 1966171168
    %v3273 = vunpack.c.0.s8 %v3272
    %v3274 = vlaneseq
    %v3275 = vshrl.u32 %v3274, 7
    %v3276 = vsub.s32 %v3273, %v3275
    %v3277 = vrot.slane %v3227, %v3276
    %v3279 = vunpack.c.l.s4 1966171168
    %v3280 = vunpack.c.0.s8 %v3279
    %v3281 = vlaneseq
    %v3282 = vshrl.u32 %v3281, 7
    %v3283 = vsub.s32 %v3280, %v3282
    %v3284 = vrot.slane %v3228, %v3283
    %v3285 = vcombine.low %v3235, %v3249
    %v3286 = vcombine.high %v3235, %v3249
    %v3287 = vcombine.low %v3242, %v3256
    %v3288 = vcombine.high %v3242, %v3256
    %v3289 = vcombine.low %v3263, %v3277
    %v3290 = vcombine.high %v3263, %v3277
    %v3291 = vcombine.low %v3270, %v3284
    %v3292 = vcombine.high %v3270, %v3284
    %v3294 = vunpack.c.l.s4 1966171168
    %v3295 = vunpack.c.0.s8 %v3294
    %v3296 = vlaneseq
    %v3297 = vshrl.u32 %v3296, 7
    %v3298 = vsub.s32 %v3295, %v3297
    %v3299 = vrot.slane %v3285, %v3298
    %v3301 = vunpack.c.l.s4 1966171168
    %v3302 = vunpack.c.0.s8 %v3301
    %v3303 = vlaneseq
    %v3304 = vshrl.u32 %v3303, 7
    %v3305 = vsub.s32 %v3302, %v3304
    %v3306 = vrot.slane %v3287, %v3305
    %v3308 = vunpack.c.l.s4 1966171168
    %v3309 = vunpack.c.0.s8 %v3308
    %v3310 = vlaneseq
    %v3311 = vshrl.u32 %v3310, 7
    %v3312 = vsub.s32 %v3309, %v3311
    %v3313 = vrot.slane %v3286, %v3312
    %v3315 = vunpack.c.l.s4 1966171168
    %v3316 = vunpack.c.0.s8 %v3315
    %v3317 = vlaneseq
    %v3318 = vshrl.u32 %v3317, 7
    %v3319 = vsub.s32 %v3316, %v3318
    %v3320 = vrot.slane %v3288, %v3319
    %v3322 = vunpack.c.l.s4 1966171168
    %v3323 = vunpack.c.0.s8 %v3322
    %v3324 = vlaneseq
    %v3325 = vshrl.u32 %v3324, 7
    %v3326 = vsub.s32 %v3323, %v3325
    %v3327 = vrot.slane %v3289, %v3326
    %v3329 = vunpack.c.l.s4 1966171168
    %v3330 = vunpack.c.0.s8 %v3329
    %v3331 = vlaneseq
    %v3332 = vshrl.u32 %v3331, 7
    %v3333 = vsub.s32 %v3330, %v3332
    %v3334 = vrot.slane %v3291, %v3333
    %v3336 = vunpack.c.l.s4 1966171168
    %v3337 = vunpack.c.0.s8 %v3336
    %v3338 = vlaneseq
    %v3339 = vshrl.u32 %v3338, 7
    %v3340 = vsub.s32 %v3337, %v3339
    %v3341 = vrot.slane %v3290, %v3340
    %v3343 = vunpack.c.l.s4 1966171168
    %v3344 = vunpack.c.0.s8 %v3343
    %v3345 = vlaneseq
    %v3346 = vshrl.u32 %v3345, 7
    %v3347 = vsub.s32 %v3344, %v3346
    %v3348 = vrot.slane %v3292, %v3347
    %v3349 = vcombine.low %v3299, %v3327
    %v3350 = vcombine.high %v3299, %v3327
    %v3351 = vcombine.low %v3306, %v3334
    %v3352 = vcombine.high %v3306, %v3334
    %v3353 = vcombine.low %v3313, %v3341
    %v3354 = vcombine.high %v3313, %v3341
    %v3355 = vcombine.low %v3320, %v3348
    %v3356 = vcombine.high %v3320, %v3348
    %v3357 = vcombine.low %v2902, %v2904
    %v3358 = vcombine.low %v2953, %v2955
    %v3359 = vcombine.low %v3004, %v3006
    %v3360 = vcombine.low %v3055, %v3057
    %v3362 = vunpack.c.l.s4 1966171168
    %v3363 = vunpack.c.0.s8 %v3362
    %v3364 = vlaneseq
    %v3365 = vshrl.u32 %v3364, 7
    %v3366 = vsub.s32 %v3363, %v3365
    %v3367 = vrot.slane %v3357, %v3366
    %v3369 = vunpack.c.l.s4 1966171168
    %v3370 = vunpack.c.0.s8 %v3369
    %v3371 = vlaneseq
    %v3372 = vshrl.u32 %v3371, 7
    %v3373 = vsub.s32 %v3370, %v3372
    %v3374 = vrot.slane %v3358, %v3373
    %v3376 = vunpack.c.l.s4 1966171168
    %v3377 = vunpack.c.0.s8 %v3376
    %v3378 = vlaneseq
    %v3379 = vshrl.u32 %v3378, 7
    %v3380 = vsub.s32 %v3377, %v3379
    %v3381 = vrot.slane %v3359, %v3380
    %v3383 = vunpack.c.l.s4 1966171168
    %v3384 = vunpack.c.0.s8 %v3383
    %v3385 = vlaneseq
    %v3386 = vshrl.u32 %v3385, 7
    %v3387 = vsub.s32 %v3384, %v3386
    %v3388 = vrot.slane %v3360, %v3387
    %v3389 = vcombine.low %v3367, %v3374
    %v3390 = vcombine.high %v3367, %v3374
    %v3391 = vcombine.low %v3381, %v3388
    %v3392 = vcombine.high %v3381, %v3388
    %v3394 = vunpack.c.l.s4 1966171168
    %v3395 = vunpack.c.0.s8 %v3394
    %v3396 = vlaneseq
    %v3397 = vshrl.u32 %v3396, 7
    %v3398 = vsub.s32 %v3395, %v3397
    %v3399 = vrot.slane %v3389, %v3398
    %v3401 = vunpack.c.l.s4 1966171168
    %v3402 = vunpack.c.0.s8 %v3401
    %v3403 = vlaneseq
    %v3404 = vshrl.u32 %v3403, 7
    %v3405 = vsub.s32 %v3402, %v3404
    %v3406 = vrot.slane %v3390, %v3405
    %v3408 = vunpack.c.l.s4 1966171168
    %v3409 = vunpack.c.0.s8 %v3408
    %v3410 = vlaneseq
    %v3411 = vshrl.u32 %v3410, 7
    %v3412 = vsub.s32 %v3409, %v3411
    %v3413 = vrot.slane %v3391, %v3412
    %v3415 = vunpack.c.l.s4 1966171168
    %v3416 = vunpack.c.0.s8 %v3415
    %v3417 = vlaneseq
    %v3418 = vshrl.u32 %v3417, 7
    %v3419 = vsub.s32 %v3416, %v3418
    %v3420 = vrot.slane %v3392, %v3419
    %v3421 = vcombine.low %v3399, %v3413
    %v3422 = vcombine.low %v3406, %v3420
    %v3441 = vld [vmem:[%s0 + $0x2] sm:$0xff]
    %v3442 = vld [vmem:[%s0 + $0xa] sm:$0x1]
    %v3443 = vld [vmem:[%s0 + $0x12] sm:$0xff]
    %v3444 = vld [vmem:[%s0 + $0x1a] sm:$0x1]
    %v3445 = vpack.c.bf16 %v3442, %v3441
    %v3446 = vpack.c.bf16 %v3444, %v3443
    %s3447 = scalar_lea.vmem [#allocation2], 320
    %v3448 = vld [vmem:[%s3447] sm:$0xff]
    %v3449 = vld [vmem:[%s3447 + $0x8] sm:$0xff]
    %v3450 = vld [vmem:[%s3447 + $0x10] sm:$0xff]
    %v3451 = vld [vmem:[%s3447 + $0x18] sm:$0xff]
    %v3452 = vld [vmem:[%s3447 + $0x20] sm:$0xff]
    %v3453 = vld [vmem:[%s3447 + $0x28] sm:$0xff]
    %v3454 = vld [vmem:[%s3447 + $0x30] sm:$0xff]
    %v3455 = vld [vmem:[%s3447 + $0x38] sm:$0xff]
    %v3458 = vcombine.high %v3445, %v3445
    %v3460 = vunpack.c.l.s4 1966171168
    %v3461 = vunpack.c.0.s8 %v3460
    %v3462 = vlaneseq
    %v3463 = vshrl.u32 %v3462, 7
    %v3464 = vsub.s32 %v3461, %v3463
    %v3465 = vrot.slane %v3445, %v3464
    %v3467 = vunpack.c.l.s4 1966171168
    %v3468 = vunpack.c.0.s8 %v3467
    %v3469 = vlaneseq
    %v3470 = vshrl.u32 %v3469, 7
    %v3471 = vsub.s32 %v3468, %v3470
    %v3472 = vrot.slane %v3458, %v3471
    %v3473 = vcombine.high %v3465, %v3465
    %v3475 = vunpack.c.l.s4 1966171168
    %v3476 = vunpack.c.0.s8 %v3475
    %v3477 = vlaneseq
    %v3478 = vshrl.u32 %v3477, 7
    %v3479 = vsub.s32 %v3476, %v3478
    %v3480 = vrot.slane %v3465, %v3479
    %v3482 = vunpack.c.l.s4 1966171168
    %v3483 = vunpack.c.0.s8 %v3482
    %v3484 = vlaneseq
    %v3485 = vshrl.u32 %v3484, 7
    %v3486 = vsub.s32 %v3483, %v3485
    %v3487 = vrot.slane %v3472, %v3486
    %v3489 = vunpack.c.l.s4 1966171168
    %v3490 = vunpack.c.0.s8 %v3489
    %v3491 = vlaneseq
    %v3492 = vshrl.u32 %v3491, 7
    %v3493 = vsub.s32 %v3490, %v3492
    %v3494 = vrot.slane %v3473, %v3493
    %v3495 = vcombine.high %v3480, %v3480
    %v3496 = vcombine.high %v3494, %v3494
    %v3497 = vcombine.high %v3446, %v3446
    %v3499 = vunpack.c.l.s4 1966171168
    %v3500 = vunpack.c.0.s8 %v3499
    %v3501 = vlaneseq
    %v3502 = vshrl.u32 %v3501, 7
    %v3503 = vsub.s32 %v3500, %v3502
    %v3504 = vrot.slane %v3446, %v3503
    %v3506 = vunpack.c.l.s4 1966171168
    %v3507 = vunpack.c.0.s8 %v3506
    %v3508 = vlaneseq
    %v3509 = vshrl.u32 %v3508, 7
    %v3510 = vsub.s32 %v3507, %v3509
    %v3511 = vrot.slane %v3497, %v3510
    %v3512 = vcombine.high %v3504, %v3504
    %v3514 = vunpack.c.l.s4 1966171168
    %v3515 = vunpack.c.0.s8 %v3514
    %v3516 = vlaneseq
    %v3517 = vshrl.u32 %v3516, 7
    %v3518 = vsub.s32 %v3515, %v3517
    %v3519 = vrot.slane %v3504, %v3518
    %v3521 = vunpack.c.l.s4 1966171168
    %v3522 = vunpack.c.0.s8 %v3521
    %v3523 = vlaneseq
    %v3524 = vshrl.u32 %v3523, 7
    %v3525 = vsub.s32 %v3522, %v3524
    %v3526 = vrot.slane %v3511, %v3525
    %v3528 = vunpack.c.l.s4 1966171168
    %v3529 = vunpack.c.0.s8 %v3528
    %v3530 = vlaneseq
    %v3531 = vshrl.u32 %v3530, 7
    %v3532 = vsub.s32 %v3529, %v3531
    %v3533 = vrot.slane %v3512, %v3532
    %v3534 = vcombine.high %v3519, %v3519
    %v3535 = vcombine.high %v3533, %v3533
    %v3536 = vunpack.i.l.s16 %v3480
    %v3537 = vunpack.i.h.s16 %v3480
    %v3538 = vunpack.i.l.s16 %v3494
    %v3539 = vunpack.i.h.s16 %v3494
    %v3540 = vunpack.i.l.s16 %v3495
    %v3541 = vunpack.i.h.s16 %v3495
    %v3542 = vunpack.i.l.s16 %v3496
    %v3543 = vunpack.i.h.s16 %v3496
    %v3544 = vunpack.i.l.s16 %v3487
    %v3545 = vunpack.i.l.s16 %v3519
    %v3546 = vunpack.i.h.s16 %v3519
    %v3547 = vunpack.i.l.s16 %v3533
    %v3548 = vunpack.i.h.s16 %v3533
    %v3549 = vunpack.i.l.s16 %v3534
    %v3550 = vunpack.i.h.s16 %v3534
    %v3551 = vunpack.i.l.s16 %v3535
    %v3552 = vunpack.i.h.s16 %v3535
    %v3553 = vunpack.i.l.s16 %v3526
    %v3554 = vpack.i.b16 %v3537, %v3536
    %v3555 = vpack.i.b16 %v3539, %v3538
    %v3556 = vpack.i.b16 %v3541, %v3540
    %v3557 = vpack.i.b16 %v3543, %v3542
    %v3558 = vpack.i.b16 %v3545, %v3544
    %v3559 = vpack.i.b16 %v3547, %v3546
    %v3560 = vpack.i.b16 %v3549, %v3548
    %v3561 = vpack.i.b16 %v3551, %v3550
    %v3562 = vpack.i.b16 %v3553, %v3552
    %v3563 = vcombine.low %v3554, %v3555
    %v3564 = vcombine.low %v3556, %v3557
    %v3565 = vcombine.low %v3558, %v3559
    %v3566 = vcombine.low %v3560, %v3561
    %v3568 = vunpack.c.l.s4 1966171168
    %v3569 = vunpack.c.0.s8 %v3568
    %v3570 = vlaneseq
    %v3571 = vshrl.u32 %v3570, 7
    %v3572 = vsub.s32 %v3569, %v3571
    %v3573 = vrot.slane %v3563, %v3572
    %v3575 = vunpack.c.l.s4 1966171168
    %v3576 = vunpack.c.0.s8 %v3575
    %v3577 = vlaneseq
    %v3578 = vshrl.u32 %v3577, 7
    %v3579 = vsub.s32 %v3576, %v3578
    %v3580 = vrot.slane %v3564, %v3579
    %v3582 = vunpack.c.l.s4 1966171168
    %v3583 = vunpack.c.0.s8 %v3582
    %v3584 = vlaneseq
    %v3585 = vshrl.u32 %v3584, 7
    %v3586 = vsub.s32 %v3583, %v3585
    %v3587 = vrot.slane %v3565, %v3586
    %v3589 = vunpack.c.l.s4 1966171168
    %v3590 = vunpack.c.0.s8 %v3589
    %v3591 = vlaneseq
    %v3592 = vshrl.u32 %v3591, 7
    %v3593 = vsub.s32 %v3590, %v3592
    %v3594 = vrot.slane %v3566, %v3593
    %v3595 = vcombine.low %v3573, %v3580
    %v3596 = vcombine.low %v3587, %v3594
    %v3598 = vunpack.c.l.s4 1966171168
    %v3599 = vunpack.c.0.s8 %v3598
    %v3600 = vlaneseq
    %v3601 = vshrl.u32 %v3600, 7
    %v3602 = vsub.s32 %v3599, %v3601
    %v3603 = vrot.slane %v3595, %v3602
    %v3605 = vunpack.c.l.s4 1966171168
    %v3606 = vunpack.c.0.s8 %v3605
    %v3607 = vlaneseq
    %v3608 = vshrl.u32 %v3607, 7
    %v3609 = vsub.s32 %v3606, %v3608
    %v3610 = vrot.slane %v3596, %v3609
    %v3611 = vcombine.low %v3603, %v3610
    %v3613 = vunpack.c.l.s4 1966171168
    %v3614 = vunpack.c.0.s8 %v3613
    %v3615 = vlaneseq
    %v3616 = vshrl.u32 %v3615, 7
    %v3617 = vsub.s32 %v3614, %v3616
    %v3618 = vrot.slane %v3562, %v3617
    %v3620 = vunpack.c.l.s4 1966171168
    %v3621 = vunpack.c.0.s8 %v3620
    %v3622 = vlaneseq
    %v3623 = vshrl.u32 %v3622, 7
    %v3624 = vsub.s32 %v3621, %v3623
    %v3625 = vrot.slane %v3618, %v3624
    %v3634 = vunpack.c.l.b16 %v3448
    %v3635 = vunpack.c.h.b16 %v3448
    %v3636 = vunpack.c.l.b16 %v3449
    %v3637 = vunpack.c.h.b16 %v3449
    %v3638 = vunpack.c.l.b16 %v3450
    %v3639 = vunpack.c.h.b16 %v3450
    %v3640 = vunpack.c.l.b16 %v3451
    %v3641 = vunpack.c.h.b16 %v3451
    %v3642 = vunpack.c.l.b16 %v3452
    %v3643 = vunpack.c.h.b16 %v3452
    %v3644 = vunpack.c.l.b16 %v3453
    %v3645 = vunpack.c.h.b16 %v3453
    %v3646 = vunpack.c.l.b16 %v3454
    %v3647 = vunpack.c.h.b16 %v3454
    %v3648 = vunpack.c.l.b16 %v3455
    %v3649 = vunpack.c.h.b16 %v3455
    %v3650 = vpack.c.b16 %v3642, %v3634
    %v3651 = vpack.c.b16 %v3643, %v3635
    %v3652 = vpack.c.b16 %v3644, %v3636
    %v3653 = vpack.c.b16 %v3645, %v3637
    %v3654 = vpack.c.b16 %v3646, %v3638
    %v3655 = vpack.c.b16 %v3647, %v3639
    %v3656 = vpack.c.b16 %v3648, %v3640
    %v3657 = vpack.c.b16 %v3649, %v3641
    %v3667 = vsel %vm242, %v3611, 0
    %v3670 = vsel %vm242, %v3625, 0
    %3672 = vmatprep.subr.bf16.mxu0 0
    %3673 = vmatpush1.bf16.msra.mxu0 0
    %3674 = vmatprep.subr.bf16.mxu0 0
    %3675 = vmatpush1.bf16.msra.mxu0 0
    %3676 = vmatprep.subr.bf16.mxu0 0
    %3677 = vmatpush1.bf16.msra.mxu0 0
    %3678 = vmatprep.subr.bf16.mxu0 0
    %3679 = vmatpush1.bf16.msra.mxu0 0
    %3680 = vmatprep.subr.bf16.mxu0 0
    %3681 = vmatpush1.bf16.msra.mxu0 0
    %3682 = vmatprep.subr.bf16.mxu0 0
    %3683 = vmatpush1.bf16.msra.mxu0 0
    %3684 = vmatprep.subr.bf16.mxu0 0
    %3685 = vmatpush1.bf16.msra.mxu0 0
    %3686 = vmatprep.subr.bf16.mxu0 %v3651
    %3687 = vmatpush1.bf16.msra.mxu0 %v3650
    %3688 = vmatprep.subr.bf16.mxu0 0
    %3689 = vmatpush2.bf16.msra.mxu0 0
    %3690 = vmatprep.subr.bf16.mxu0 0
    %3691 = vmatpush2.bf16.msra.mxu0 0
    %3692 = vmatprep.subr.bf16.mxu0 0
    %3693 = vmatpush2.bf16.msra.mxu0 0
    %3694 = vmatprep.subr.bf16.mxu0 0
    %3695 = vmatpush2.bf16.msra.mxu0 0
    %3696 = vmatprep.subr.bf16.mxu0 0
    %3697 = vmatpush2.bf16.msra.mxu0 0
    %3698 = vmatprep.subr.bf16.mxu0 0
    %3699 = vmatpush2.bf16.msra.mxu0 0
    %3700 = vmatprep.subr.bf16.mxu0 0
    %3701 = vmatpush2.bf16.msra.mxu0 0
    %3702 = vmatprep.subr.bf16.mxu0 0
    %3703 = vmatpush2.bf16.msra.mxu0 0
    %3704 = vmatprep.mubr.bf16.mxu0 0
    %3705 = vmatmul.mubr.bf16.gmra.mxu0 %v3667
    %v3706 = vpop.f32.mrf.mxu0
    %v3707 = vadd.f32 0.0, %v3706
    %v3708 = vpop.f32.mrf.mxu0
    %v3709 = vadd.f32 0.0, %v3708
    %v3710 = vpop.f32.mrf.mxu0
    %v3711 = vadd.f32 0.0, %v3710
    %v3712 = vpop.f32.mrf.mxu0
    %v3713 = vadd.f32 0.0, %v3712
    %3714 = vmatprep.mubr.bf16.mxu0 0
    %3715 = vmatmul.mubr.bf16.gmra.mxu0 %v3670
    %v3716 = vpop.f32.mrf.mxu0
    %v3717 = vadd.f32 0.0, %v3716
    %v3718 = vpop.f32.mrf.mxu0
    %v3719 = vadd.f32 0.0, %v3718
    %v3720 = vpop.f32.mrf.mxu0
    %v3721 = vpop.f32.mrf.mxu0
    %3722 = vdwg.mxu0
    %3723 = vmatprep.subr.bf16.mxu0 0
    %3724 = vmatpush1.bf16.msra.mxu0 0
    %3725 = vmatprep.subr.bf16.mxu0 0
    %3726 = vmatpush1.bf16.msra.mxu0 0
    %3727 = vmatprep.subr.bf16.mxu0 0
    %3728 = vmatpush1.bf16.msra.mxu0 0
    %3729 = vmatprep.subr.bf16.mxu0 0
    %3730 = vmatpush1.bf16.msra.mxu0 0
    %3731 = vmatprep.subr.bf16.mxu0 0
    %3732 = vmatpush1.bf16.msra.mxu0 0
    %3733 = vmatprep.subr.bf16.mxu0 0
    %3734 = vmatpush1.bf16.msra.mxu0 0
    %3735 = vmatprep.subr.bf16.mxu0 0
    %3736 = vmatpush1.bf16.msra.mxu0 0
    %3737 = vmatprep.subr.bf16.mxu0 %v3653
    %3738 = vmatpush1.bf16.msra.mxu0 %v3652
    %3739 = vmatprep.subr.bf16.mxu0 0
    %3740 = vmatpush2.bf16.msra.mxu0 0
    %3741 = vmatprep.subr.bf16.mxu0 0
    %3742 = vmatpush2.bf16.msra.mxu0 0
    %3743 = vmatprep.subr.bf16.mxu0 0
    %3744 = vmatpush2.bf16.msra.mxu0 0
    %3745 = vmatprep.subr.bf16.mxu0 0
    %3746 = vmatpush2.bf16.msra.mxu0 0
    %3747 = vmatprep.subr.bf16.mxu0 0
    %3748 = vmatpush2.bf16.msra.mxu0 0
    %3749 = vmatprep.subr.bf16.mxu0 0
    %3750 = vmatpush2.bf16.msra.mxu0 0
    %3751 = vmatprep.subr.bf16.mxu0 0
    %3752 = vmatpush2.bf16.msra.mxu0 0
    %3753 = vmatprep.subr.bf16.mxu0 0
    %3754 = vmatpush2.bf16.msra.mxu0 0
    %3755 = vmatprep.mubr.bf16.mxu0 0
    %3756 = vmatmul.mubr.bf16.gmra.mxu0 %v3667
    %v3757 = vpop.f32.mrf.mxu0
    %v3758 = vadd.f32 0.0, %v3757
    %v3759 = vpop.f32.mrf.mxu0
    %v3760 = vadd.f32 0.0, %v3759
    %v3761 = vpop.f32.mrf.mxu0
    %v3762 = vadd.f32 0.0, %v3761
    %v3763 = vpop.f32.mrf.mxu0
    %v3764 = vadd.f32 0.0, %v3763
    %3765 = vmatprep.mubr.bf16.mxu0 0
    %3766 = vmatmul.mubr.bf16.gmra.mxu0 %v3670
    %v3767 = vpop.f32.mrf.mxu0
    %v3768 = vadd.f32 0.0, %v3767
    %v3769 = vpop.f32.mrf.mxu0
    %v3770 = vadd.f32 0.0, %v3769
    %v3771 = vpop.f32.mrf.mxu0
    %v3772 = vpop.f32.mrf.mxu0
    %3773 = vdwg.mxu0
    %3774 = vmatprep.subr.bf16.mxu0 0
    %3775 = vmatpush1.bf16.msra.mxu0 0
    %3776 = vmatprep.subr.bf16.mxu0 0
    %3777 = vmatpush1.bf16.msra.mxu0 0
    %3778 = vmatprep.subr.bf16.mxu0 0
    %3779 = vmatpush1.bf16.msra.mxu0 0
    %3780 = vmatprep.subr.bf16.mxu0 0
    %3781 = vmatpush1.bf16.msra.mxu0 0
    %3782 = vmatprep.subr.bf16.mxu0 0
    %3783 = vmatpush1.bf16.msra.mxu0 0
    %3784 = vmatprep.subr.bf16.mxu0 0
    %3785 = vmatpush1.bf16.msra.mxu0 0
    %3786 = vmatprep.subr.bf16.mxu0 0
    %3787 = vmatpush1.bf16.msra.mxu0 0
    %3788 = vmatprep.subr.bf16.mxu0 %v3655
    %3789 = vmatpush1.bf16.msra.mxu0 %v3654
    %3790 = vmatprep.subr.bf16.mxu0 0
    %3791 = vmatpush2.bf16.msra.mxu0 0
    %3792 = vmatprep.subr.bf16.mxu0 0
    %3793 = vmatpush2.bf16.msra.mxu0 0
    %3794 = vmatprep.subr.bf16.mxu0 0
    %3795 = vmatpush2.bf16.msra.mxu0 0
    %3796 = vmatprep.subr.bf16.mxu0 0
    %3797 = vmatpush2.bf16.msra.mxu0 0
    %3798 = vmatprep.subr.bf16.mxu0 0
    %3799 = vmatpush2.bf16.msra.mxu0 0
    %3800 = vmatprep.subr.bf16.mxu0 0
    %3801 = vmatpush2.bf16.msra.mxu0 0
    %3802 = vmatprep.subr.bf16.mxu0 0
    %3803 = vmatpush2.bf16.msra.mxu0 0
    %3804 = vmatprep.subr.bf16.mxu0 0
    %3805 = vmatpush2.bf16.msra.mxu0 0
    %3806 = vmatprep.mubr.bf16.mxu0 0
    %3807 = vmatmul.mubr.bf16.gmra.mxu0 %v3667
    %v3808 = vpop.f32.mrf.mxu0
    %v3809 = vadd.f32 0.0, %v3808
    %v3810 = vpop.f32.mrf.mxu0
    %v3811 = vadd.f32 0.0, %v3810
    %v3812 = vpop.f32.mrf.mxu0
    %v3813 = vadd.f32 0.0, %v3812
    %v3814 = vpop.f32.mrf.mxu0
    %v3815 = vadd.f32 0.0, %v3814
    %3816 = vmatprep.mubr.bf16.mxu0 0
    %3817 = vmatmul.mubr.bf16.gmra.mxu0 %v3670
    %v3818 = vpop.f32.mrf.mxu0
    %v3819 = vadd.f32 0.0, %v3818
    %v3820 = vpop.f32.mrf.mxu0
    %v3821 = vadd.f32 0.0, %v3820
    %v3822 = vpop.f32.mrf.mxu0
    %v3823 = vpop.f32.mrf.mxu0
    %3824 = vdwg.mxu0
    %3825 = vmatprep.subr.bf16.mxu0 0
    %3826 = vmatpush1.bf16.msra.mxu0 0
    %3827 = vmatprep.subr.bf16.mxu0 0
    %3828 = vmatpush1.bf16.msra.mxu0 0
    %3829 = vmatprep.subr.bf16.mxu0 0
    %3830 = vmatpush1.bf16.msra.mxu0 0
    %3831 = vmatprep.subr.bf16.mxu0 0
    %3832 = vmatpush1.bf16.msra.mxu0 0
    %3833 = vmatprep.subr.bf16.mxu0 0
    %3834 = vmatpush1.bf16.msra.mxu0 0
    %3835 = vmatprep.subr.bf16.mxu0 0
    %3836 = vmatpush1.bf16.msra.mxu0 0
    %3837 = vmatprep.subr.bf16.mxu0 0
    %3838 = vmatpush1.bf16.msra.mxu0 0
    %3839 = vmatprep.subr.bf16.mxu0 %v3657
    %3840 = vmatpush1.bf16.msra.mxu0 %v3656
    %3841 = vmatprep.subr.bf16.mxu0 0
    %3842 = vmatpush2.bf16.msra.mxu0 0
    %3843 = vmatprep.subr.bf16.mxu0 0
    %3844 = vmatpush2.bf16.msra.mxu0 0
    %3845 = vmatprep.subr.bf16.mxu0 0
    %3846 = vmatpush2.bf16.msra.mxu0 0
    %3847 = vmatprep.subr.bf16.mxu0 0
    %3848 = vmatpush2.bf16.msra.mxu0 0
    %3849 = vmatprep.subr.bf16.mxu0 0
    %3850 = vmatpush2.bf16.msra.mxu0 0
    %3851 = vmatprep.subr.bf16.mxu0 0
    %3852 = vmatpush2.bf16.msra.mxu0 0
    %3853 = vmatprep.subr.bf16.mxu0 0
    %3854 = vmatpush2.bf16.msra.mxu0 0
    %3855 = vmatprep.subr.bf16.mxu0 0
    %3856 = vmatpush2.bf16.msra.mxu0 0
    %3857 = vmatprep.mubr.bf16.mxu0 0
    %3858 = vmatmul.mubr.bf16.gmra.mxu0 %v3667
    %v3859 = vpop.f32.mrf.mxu0
    %v3860 = vadd.f32 0.0, %v3859
    %v3861 = vpop.f32.mrf.mxu0
    %v3862 = vadd.f32 0.0, %v3861
    %v3863 = vpop.f32.mrf.mxu0
    %v3864 = vadd.f32 0.0, %v3863
    %v3865 = vpop.f32.mrf.mxu0
    %v3866 = vadd.f32 0.0, %v3865
    %3867 = vmatprep.mubr.bf16.mxu0 0
    %3868 = vmatmul.mubr.bf16.gmra.mxu0 %v3670
    %v3869 = vpop.f32.mrf.mxu0
    %v3870 = vadd.f32 0.0, %v3869
    %v3871 = vpop.f32.mrf.mxu0
    %v3872 = vadd.f32 0.0, %v3871
    %v3873 = vpop.f32.mrf.mxu0
    %v3874 = vpop.f32.mrf.mxu0
    %3875 = vdwg.mxu0
    %v3900 = vcombine.low %v3707, %v3709
    %v3901 = vcombine.high %v3707, %v3709
    %v3902 = vcombine.low %v3758, %v3760
    %v3903 = vcombine.high %v3758, %v3760
    %v3904 = vcombine.low %v3809, %v3811
    %v3905 = vcombine.high %v3809, %v3811
    %v3906 = vcombine.low %v3860, %v3862
    %v3907 = vcombine.high %v3860, %v3862
    %v3909 = vunpack.c.l.s4 1966171168
    %v3910 = vunpack.c.0.s8 %v3909
    %v3911 = vlaneseq
    %v3912 = vshrl.u32 %v3911, 7
    %v3913 = vsub.s32 %v3910, %v3912
    %v3914 = vrot.slane %v3900, %v3913
    %v3916 = vunpack.c.l.s4 1966171168
    %v3917 = vunpack.c.0.s8 %v3916
    %v3918 = vlaneseq
    %v3919 = vshrl.u32 %v3918, 7
    %v3920 = vsub.s32 %v3917, %v3919
    %v3921 = vrot.slane %v3901, %v3920
    %v3923 = vunpack.c.l.s4 1966171168
    %v3924 = vunpack.c.0.s8 %v3923
    %v3925 = vlaneseq
    %v3926 = vshrl.u32 %v3925, 7
    %v3927 = vsub.s32 %v3924, %v3926
    %v3928 = vrot.slane %v3902, %v3927
    %v3930 = vunpack.c.l.s4 1966171168
    %v3931 = vunpack.c.0.s8 %v3930
    %v3932 = vlaneseq
    %v3933 = vshrl.u32 %v3932, 7
    %v3934 = vsub.s32 %v3931, %v3933
    %v3935 = vrot.slane %v3903, %v3934
    %v3937 = vunpack.c.l.s4 1966171168
    %v3938 = vunpack.c.0.s8 %v3937
    %v3939 = vlaneseq
    %v3940 = vshrl.u32 %v3939, 7
    %v3941 = vsub.s32 %v3938, %v3940
    %v3942 = vrot.slane %v3904, %v3941
    %v3944 = vunpack.c.l.s4 1966171168
    %v3945 = vunpack.c.0.s8 %v3944
    %v3946 = vlaneseq
    %v3947 = vshrl.u32 %v3946, 7
    %v3948 = vsub.s32 %v3945, %v3947
    %v3949 = vrot.slane %v3905, %v3948
    %v3951 = vunpack.c.l.s4 1966171168
    %v3952 = vunpack.c.0.s8 %v3951
    %v3953 = vlaneseq
    %v3954 = vshrl.u32 %v3953, 7
    %v3955 = vsub.s32 %v3952, %v3954
    %v3956 = vrot.slane %v3906, %v3955
    %v3958 = vunpack.c.l.s4 1966171168
    %v3959 = vunpack.c.0.s8 %v3958
    %v3960 = vlaneseq
    %v3961 = vshrl.u32 %v3960, 7
    %v3962 = vsub.s32 %v3959, %v3961
    %v3963 = vrot.slane %v3907, %v3962
    %v3964 = vcombine.low %v3914, %v3928
    %v3965 = vcombine.high %v3914, %v3928
    %v3966 = vcombine.low %v3921, %v3935
    %v3967 = vcombine.high %v3921, %v3935
    %v3968 = vcombine.low %v3942, %v3956
    %v3969 = vcombine.high %v3942, %v3956
    %v3970 = vcombine.low %v3949, %v3963
    %v3971 = vcombine.high %v3949, %v3963
    %v3973 = vunpack.c.l.s4 1966171168
    %v3974 = vunpack.c.0.s8 %v3973
    %v3975 = vlaneseq
    %v3976 = vshrl.u32 %v3975, 7
    %v3977 = vsub.s32 %v3974, %v3976
    %v3978 = vrot.slane %v3964, %v3977
    %v3980 = vunpack.c.l.s4 1966171168
    %v3981 = vunpack.c.0.s8 %v3980
    %v3982 = vlaneseq
    %v3983 = vshrl.u32 %v3982, 7
    %v3984 = vsub.s32 %v3981, %v3983
    %v3985 = vrot.slane %v3966, %v3984
    %v3987 = vunpack.c.l.s4 1966171168
    %v3988 = vunpack.c.0.s8 %v3987
    %v3989 = vlaneseq
    %v3990 = vshrl.u32 %v3989, 7
    %v3991 = vsub.s32 %v3988, %v3990
    %v3992 = vrot.slane %v3965, %v3991
    %v3994 = vunpack.c.l.s4 1966171168
    %v3995 = vunpack.c.0.s8 %v3994
    %v3996 = vlaneseq
    %v3997 = vshrl.u32 %v3996, 7
    %v3998 = vsub.s32 %v3995, %v3997
    %v3999 = vrot.slane %v3967, %v3998
    %v4001 = vunpack.c.l.s4 1966171168
    %v4002 = vunpack.c.0.s8 %v4001
    %v4003 = vlaneseq
    %v4004 = vshrl.u32 %v4003, 7
    %v4005 = vsub.s32 %v4002, %v4004
    %v4006 = vrot.slane %v3968, %v4005
    %v4008 = vunpack.c.l.s4 1966171168
    %v4009 = vunpack.c.0.s8 %v4008
    %v4010 = vlaneseq
    %v4011 = vshrl.u32 %v4010, 7
    %v4012 = vsub.s32 %v4009, %v4011
    %v4013 = vrot.slane %v3970, %v4012
    %v4015 = vunpack.c.l.s4 1966171168
    %v4016 = vunpack.c.0.s8 %v4015
    %v4017 = vlaneseq
    %v4018 = vshrl.u32 %v4017, 7
    %v4019 = vsub.s32 %v4016, %v4018
    %v4020 = vrot.slane %v3969, %v4019
    %v4022 = vunpack.c.l.s4 1966171168
    %v4023 = vunpack.c.0.s8 %v4022
    %v4024 = vlaneseq
    %v4025 = vshrl.u32 %v4024, 7
    %v4026 = vsub.s32 %v4023, %v4025
    %v4027 = vrot.slane %v3971, %v4026
    %v4028 = vcombine.low %v3978, %v4006
    %v4029 = vcombine.high %v3978, %v4006
    %v4030 = vcombine.low %v3985, %v4013
    %v4031 = vcombine.high %v3985, %v4013
    %v4032 = vcombine.low %v3992, %v4020
    %v4033 = vcombine.high %v3992, %v4020
    %v4034 = vcombine.low %v3999, %v4027
    %v4035 = vcombine.high %v3999, %v4027
    %v4036 = vcombine.low %v3711, %v3713
    %v4037 = vcombine.high %v3711, %v3713
    %v4038 = vcombine.low %v3762, %v3764
    %v4039 = vcombine.high %v3762, %v3764
    %v4040 = vcombine.low %v3813, %v3815
    %v4041 = vcombine.high %v3813, %v3815
    %v4042 = vcombine.low %v3864, %v3866
    %v4043 = vcombine.high %v3864, %v3866
    %v4045 = vunpack.c.l.s4 1966171168
    %v4046 = vunpack.c.0.s8 %v4045
    %v4047 = vlaneseq
    %v4048 = vshrl.u32 %v4047, 7
    %v4049 = vsub.s32 %v4046, %v4048
    %v4050 = vrot.slane %v4036, %v4049
    %v4052 = vunpack.c.l.s4 1966171168
    %v4053 = vunpack.c.0.s8 %v4052
    %v4054 = vlaneseq
    %v4055 = vshrl.u32 %v4054, 7
    %v4056 = vsub.s32 %v4053, %v4055
    %v4057 = vrot.slane %v4037, %v4056
    %v4059 = vunpack.c.l.s4 1966171168
    %v4060 = vunpack.c.0.s8 %v4059
    %v4061 = vlaneseq
    %v4062 = vshrl.u32 %v4061, 7
    %v4063 = vsub.s32 %v4060, %v4062
    %v4064 = vrot.slane %v4038, %v4063
    %v4066 = vunpack.c.l.s4 1966171168
    %v4067 = vunpack.c.0.s8 %v4066
    %v4068 = vlaneseq
    %v4069 = vshrl.u32 %v4068, 7
    %v4070 = vsub.s32 %v4067, %v4069
    %v4071 = vrot.slane %v4039, %v4070
    %v4073 = vunpack.c.l.s4 1966171168
    %v4074 = vunpack.c.0.s8 %v4073
    %v4075 = vlaneseq
    %v4076 = vshrl.u32 %v4075, 7
    %v4077 = vsub.s32 %v4074, %v4076
    %v4078 = vrot.slane %v4040, %v4077
    %v4080 = vunpack.c.l.s4 1966171168
    %v4081 = vunpack.c.0.s8 %v4080
    %v4082 = vlaneseq
    %v4083 = vshrl.u32 %v4082, 7
    %v4084 = vsub.s32 %v4081, %v4083
    %v4085 = vrot.slane %v4041, %v4084
    %v4087 = vunpack.c.l.s4 1966171168
    %v4088 = vunpack.c.0.s8 %v4087
    %v4089 = vlaneseq
    %v4090 = vshrl.u32 %v4089, 7
    %v4091 = vsub.s32 %v4088, %v4090
    %v4092 = vrot.slane %v4042, %v4091
    %v4094 = vunpack.c.l.s4 1966171168
    %v4095 = vunpack.c.0.s8 %v4094
    %v4096 = vlaneseq
    %v4097 = vshrl.u32 %v4096, 7
    %v4098 = vsub.s32 %v4095, %v4097
    %v4099 = vrot.slane %v4043, %v4098
    %v4100 = vcombine.low %v4050, %v4064
    %v4101 = vcombine.high %v4050, %v4064
    %v4102 = vcombine.low %v4057, %v4071
    %v4103 = vcombine.high %v4057, %v4071
    %v4104 = vcombine.low %v4078, %v4092
    %v4105 = vcombine.high %v4078, %v4092
    %v4106 = vcombine.low %v4085, %v4099
    %v4107 = vcombine.high %v4085, %v4099
    %v4109 = vunpack.c.l.s4 1966171168
    %v4110 = vunpack.c.0.s8 %v4109
    %v4111 = vlaneseq
    %v4112 = vshrl.u32 %v4111, 7
    %v4113 = vsub.s32 %v4110, %v4112
    %v4114 = vrot.slane %v4100, %v4113
    %v4116 = vunpack.c.l.s4 1966171168
    %v4117 = vunpack.c.0.s8 %v4116
    %v4118 = vlaneseq
    %v4119 = vshrl.u32 %v4118, 7
    %v4120 = vsub.s32 %v4117, %v4119
    %v4121 = vrot.slane %v4102, %v4120
    %v4123 = vunpack.c.l.s4 1966171168
    %v4124 = vunpack.c.0.s8 %v4123
    %v4125 = vlaneseq
    %v4126 = vshrl.u32 %v4125, 7
    %v4127 = vsub.s32 %v4124, %v4126
    %v4128 = vrot.slane %v4101, %v4127
    %v4130 = vunpack.c.l.s4 1966171168
    %v4131 = vunpack.c.0.s8 %v4130
    %v4132 = vlaneseq
    %v4133 = vshrl.u32 %v4132, 7
    %v4134 = vsub.s32 %v4131, %v4133
    %v4135 = vrot.slane %v4103, %v4134
    %v4137 = vunpack.c.l.s4 1966171168
    %v4138 = vunpack.c.0.s8 %v4137
    %v4139 = vlaneseq
    %v4140 = vshrl.u32 %v4139, 7
    %v4141 = vsub.s32 %v4138, %v4140
    %v4142 = vrot.slane %v4104, %v4141
    %v4144 = vunpack.c.l.s4 1966171168
    %v4145 = vunpack.c.0.s8 %v4144
    %v4146 = vlaneseq
    %v4147 = vshrl.u32 %v4146, 7
    %v4148 = vsub.s32 %v4145, %v4147
    %v4149 = vrot.slane %v4106, %v4148
    %v4151 = vunpack.c.l.s4 1966171168
    %v4152 = vunpack.c.0.s8 %v4151
    %v4153 = vlaneseq
    %v4154 = vshrl.u32 %v4153, 7
    %v4155 = vsub.s32 %v4152, %v4154
    %v4156 = vrot.slane %v4105, %v4155
    %v4158 = vunpack.c.l.s4 1966171168
    %v4159 = vunpack.c.0.s8 %v4158
    %v4160 = vlaneseq
    %v4161 = vshrl.u32 %v4160, 7
    %v4162 = vsub.s32 %v4159, %v4161
    %v4163 = vrot.slane %v4107, %v4162
    %v4164 = vcombine.low %v4114, %v4142
    %v4165 = vcombine.high %v4114, %v4142
    %v4166 = vcombine.low %v4121, %v4149
    %v4167 = vcombine.high %v4121, %v4149
    %v4168 = vcombine.low %v4128, %v4156
    %v4169 = vcombine.high %v4128, %v4156
    %v4170 = vcombine.low %v4135, %v4163
    %v4171 = vcombine.high %v4135, %v4163
    %v4172 = vcombine.low %v3717, %v3719
    %v4173 = vcombine.low %v3768, %v3770
    %v4174 = vcombine.low %v3819, %v3821
    %v4175 = vcombine.low %v3870, %v3872
    %v4177 = vunpack.c.l.s4 1966171168
    %v4178 = vunpack.c.0.s8 %v4177
    %v4179 = vlaneseq
    %v4180 = vshrl.u32 %v4179, 7
    %v4181 = vsub.s32 %v4178, %v4180
    %v4182 = vrot.slane %v4172, %v4181
    %v4184 = vunpack.c.l.s4 1966171168
    %v4185 = vunpack.c.0.s8 %v4184
    %v4186 = vlaneseq
    %v4187 = vshrl.u32 %v4186, 7
    %v4188 = vsub.s32 %v4185, %v4187
    %v4189 = vrot.slane %v4173, %v4188
    %v4191 = vunpack.c.l.s4 1966171168
    %v4192 = vunpack.c.0.s8 %v4191
    %v4193 = vlaneseq
    %v4194 = vshrl.u32 %v4193, 7
    %v4195 = vsub.s32 %v4192, %v4194
    %v4196 = vrot.slane %v4174, %v4195
    %v4198 = vunpack.c.l.s4 1966171168
    %v4199 = vunpack.c.0.s8 %v4198
    %v4200 = vlaneseq
    %v4201 = vshrl.u32 %v4200, 7
    %v4202 = vsub.s32 %v4199, %v4201
    %v4203 = vrot.slane %v4175, %v4202
    %v4204 = vcombine.low %v4182, %v4189
    %v4205 = vcombine.high %v4182, %v4189
    %v4206 = vcombine.low %v4196, %v4203
    %v4207 = vcombine.high %v4196, %v4203
    %v4209 = vunpack.c.l.s4 1966171168
    %v4210 = vunpack.c.0.s8 %v4209
    %v4211 = vlaneseq
    %v4212 = vshrl.u32 %v4211, 7
    %v4213 = vsub.s32 %v4210, %v4212
    %v4214 = vrot.slane %v4204, %v4213
    %v4216 = vunpack.c.l.s4 1966171168
    %v4217 = vunpack.c.0.s8 %v4216
    %v4218 = vlaneseq
    %v4219 = vshrl.u32 %v4218, 7
    %v4220 = vsub.s32 %v4217, %v4219
    %v4221 = vrot.slane %v4205, %v4220
    %v4223 = vunpack.c.l.s4 1966171168
    %v4224 = vunpack.c.0.s8 %v4223
    %v4225 = vlaneseq
    %v4226 = vshrl.u32 %v4225, 7
    %v4227 = vsub.s32 %v4224, %v4226
    %v4228 = vrot.slane %v4206, %v4227
    %v4230 = vunpack.c.l.s4 1966171168
    %v4231 = vunpack.c.0.s8 %v4230
    %v4232 = vlaneseq
    %v4233 = vshrl.u32 %v4232, 7
    %v4234 = vsub.s32 %v4231, %v4233
    %v4235 = vrot.slane %v4207, %v4234
    %v4236 = vcombine.low %v4214, %v4228
    %v4237 = vcombine.low %v4221, %v4235
    %v4256 = vadd.f32 %v3213, %v4028
    %v4257 = vadd.f32 %v3217, %v4032
    %v4258 = vadd.f32 %v3214, %v4029
    %v4259 = vadd.f32 %v3218, %v4033
    %v4260 = vadd.f32 %v3215, %v4030
    %v4261 = vadd.f32 %v3219, %v4034
    %v4262 = vadd.f32 %v3216, %v4031
    %v4263 = vadd.f32 %v3220, %v4035
    %v4264 = vadd.f32 %v3349, %v4164
    %v4265 = vadd.f32 %v3353, %v4168
    %v4266 = vadd.f32 %v3350, %v4165
    %v4267 = vadd.f32 %v3354, %v4169
    %v4268 = vadd.f32 %v3351, %v4166
    %v4269 = vadd.f32 %v3355, %v4170
    %v4270 = vadd.f32 %v3352, %v4167
    %v4271 = vadd.f32 %v3356, %v4171
    %v4272 = vadd.f32 %v3421, %v4236
    %v4273 = vadd.f32 %v3422, %v4237
    %v4274 = vld [vmem:[%s0 + $0x3] sm:$0xff]
    %v4275 = vld [vmem:[%s0 + $0xb] sm:$0x1]
    %v4276 = vld [vmem:[%s0 + $0x13] sm:$0xff]
    %v4277 = vld [vmem:[%s0 + $0x1b] sm:$0x1]
    %v4278 = vpack.c.bf16 %v4275, %v4274
    %v4279 = vpack.c.bf16 %v4277, %v4276
    %s4280 = scalar_lea.vmem [#allocation2], 384
    %v4281 = vld [vmem:[%s4280] sm:$0xff]
    %v4282 = vld [vmem:[%s4280 + $0x8] sm:$0xff]
    %v4283 = vld [vmem:[%s4280 + $0x10] sm:$0xff]
    %v4284 = vld [vmem:[%s4280 + $0x18] sm:$0xff]
    %v4285 = vld [vmem:[%s4280 + $0x20] sm:$0xff]
    %v4286 = vld [vmem:[%s4280 + $0x28] sm:$0xff]
    %v4287 = vld [vmem:[%s4280 + $0x30] sm:$0xff]
    %v4288 = vld [vmem:[%s4280 + $0x38] sm:$0xff]
    %v4291 = vcombine.high %v4278, %v4278
    %v4293 = vunpack.c.l.s4 1966171168
    %v4294 = vunpack.c.0.s8 %v4293
    %v4295 = vlaneseq
    %v4296 = vshrl.u32 %v4295, 7
    %v4297 = vsub.s32 %v4294, %v4296
    %v4298 = vrot.slane %v4278, %v4297
    %v4300 = vunpack.c.l.s4 1966171168
    %v4301 = vunpack.c.0.s8 %v4300
    %v4302 = vlaneseq
    %v4303 = vshrl.u32 %v4302, 7
    %v4304 = vsub.s32 %v4301, %v4303
    %v4305 = vrot.slane %v4291, %v4304
    %v4306 = vcombine.high %v4298, %v4298
    %v4308 = vunpack.c.l.s4 1966171168
    %v4309 = vunpack.c.0.s8 %v4308
    %v4310 = vlaneseq
    %v4311 = vshrl.u32 %v4310, 7
    %v4312 = vsub.s32 %v4309, %v4311
    %v4313 = vrot.slane %v4298, %v4312
    %v4315 = vunpack.c.l.s4 1966171168
    %v4316 = vunpack.c.0.s8 %v4315
    %v4317 = vlaneseq
    %v4318 = vshrl.u32 %v4317, 7
    %v4319 = vsub.s32 %v4316, %v4318
    %v4320 = vrot.slane %v4305, %v4319
    %v4322 = vunpack.c.l.s4 1966171168
    %v4323 = vunpack.c.0.s8 %v4322
    %v4324 = vlaneseq
    %v4325 = vshrl.u32 %v4324, 7
    %v4326 = vsub.s32 %v4323, %v4325
    %v4327 = vrot.slane %v4306, %v4326
    %v4328 = vcombine.high %v4313, %v4313
    %v4329 = vcombine.high %v4327, %v4327
    %v4330 = vcombine.high %v4279, %v4279
    %v4332 = vunpack.c.l.s4 1966171168
    %v4333 = vunpack.c.0.s8 %v4332
    %v4334 = vlaneseq
    %v4335 = vshrl.u32 %v4334, 7
    %v4336 = vsub.s32 %v4333, %v4335
    %v4337 = vrot.slane %v4279, %v4336
    %v4339 = vunpack.c.l.s4 1966171168
    %v4340 = vunpack.c.0.s8 %v4339
    %v4341 = vlaneseq
    %v4342 = vshrl.u32 %v4341, 7
    %v4343 = vsub.s32 %v4340, %v4342
    %v4344 = vrot.slane %v4330, %v4343
    %v4345 = vcombine.high %v4337, %v4337
    %v4347 = vunpack.c.l.s4 1966171168
    %v4348 = vunpack.c.0.s8 %v4347
    %v4349 = vlaneseq
    %v4350 = vshrl.u32 %v4349, 7
    %v4351 = vsub.s32 %v4348, %v4350
    %v4352 = vrot.slane %v4337, %v4351
    %v4354 = vunpack.c.l.s4 1966171168
    %v4355 = vunpack.c.0.s8 %v4354
    %v4356 = vlaneseq
    %v4357 = vshrl.u32 %v4356, 7
    %v4358 = vsub.s32 %v4355, %v4357
    %v4359 = vrot.slane %v4344, %v4358
    %v4361 = vunpack.c.l.s4 1966171168
    %v4362 = vunpack.c.0.s8 %v4361
    %v4363 = vlaneseq
    %v4364 = vshrl.u32 %v4363, 7
    %v4365 = vsub.s32 %v4362, %v4364
    %v4366 = vrot.slane %v4345, %v4365
    %v4367 = vcombine.high %v4352, %v4352
    %v4368 = vcombine.high %v4366, %v4366
    %v4369 = vunpack.i.l.s16 %v4313
    %v4370 = vunpack.i.h.s16 %v4313
    %v4371 = vunpack.i.l.s16 %v4327
    %v4372 = vunpack.i.h.s16 %v4327
    %v4373 = vunpack.i.l.s16 %v4328
    %v4374 = vunpack.i.h.s16 %v4328
    %v4375 = vunpack.i.l.s16 %v4329
    %v4376 = vunpack.i.h.s16 %v4329
    %v4377 = vunpack.i.l.s16 %v4320
    %v4378 = vunpack.i.l.s16 %v4352
    %v4379 = vunpack.i.h.s16 %v4352
    %v4380 = vunpack.i.l.s16 %v4366
    %v4381 = vunpack.i.h.s16 %v4366
    %v4382 = vunpack.i.l.s16 %v4367
    %v4383 = vunpack.i.h.s16 %v4367
    %v4384 = vunpack.i.l.s16 %v4368
    %v4385 = vunpack.i.h.s16 %v4368
    %v4386 = vunpack.i.l.s16 %v4359
    %v4387 = vpack.i.b16 %v4370, %v4369
    %v4388 = vpack.i.b16 %v4372, %v4371
    %v4389 = vpack.i.b16 %v4374, %v4373
    %v4390 = vpack.i.b16 %v4376, %v4375
    %v4391 = vpack.i.b16 %v4378, %v4377
    %v4392 = vpack.i.b16 %v4380, %v4379
    %v4393 = vpack.i.b16 %v4382, %v4381
    %v4394 = vpack.i.b16 %v4384, %v4383
    %v4395 = vpack.i.b16 %v4386, %v4385
    %v4396 = vcombine.low %v4387, %v4388
    %v4397 = vcombine.low %v4389, %v4390
    %v4398 = vcombine.low %v4391, %v4392
    %v4399 = vcombine.low %v4393, %v4394
    %v4401 = vunpack.c.l.s4 1966171168
    %v4402 = vunpack.c.0.s8 %v4401
    %v4403 = vlaneseq
    %v4404 = vshrl.u32 %v4403, 7
    %v4405 = vsub.s32 %v4402, %v4404
    %v4406 = vrot.slane %v4396, %v4405
    %v4408 = vunpack.c.l.s4 1966171168
    %v4409 = vunpack.c.0.s8 %v4408
    %v4410 = vlaneseq
    %v4411 = vshrl.u32 %v4410, 7
    %v4412 = vsub.s32 %v4409, %v4411
    %v4413 = vrot.slane %v4397, %v4412
    %v4415 = vunpack.c.l.s4 1966171168
    %v4416 = vunpack.c.0.s8 %v4415
    %v4417 = vlaneseq
    %v4418 = vshrl.u32 %v4417, 7
    %v4419 = vsub.s32 %v4416, %v4418
    %v4420 = vrot.slane %v4398, %v4419
    %v4422 = vunpack.c.l.s4 1966171168
    %v4423 = vunpack.c.0.s8 %v4422
    %v4424 = vlaneseq
    %v4425 = vshrl.u32 %v4424, 7
    %v4426 = vsub.s32 %v4423, %v4425
    %v4427 = vrot.slane %v4399, %v4426
    %v4428 = vcombine.low %v4406, %v4413
    %v4429 = vcombine.low %v4420, %v4427
    %v4431 = vunpack.c.l.s4 1966171168
    %v4432 = vunpack.c.0.s8 %v4431
    %v4433 = vlaneseq
    %v4434 = vshrl.u32 %v4433, 7
    %v4435 = vsub.s32 %v4432, %v4434
    %v4436 = vrot.slane %v4428, %v4435
    %v4438 = vunpack.c.l.s4 1966171168
    %v4439 = vunpack.c.0.s8 %v4438
    %v4440 = vlaneseq
    %v4441 = vshrl.u32 %v4440, 7
    %v4442 = vsub.s32 %v4439, %v4441
    %v4443 = vrot.slane %v4429, %v4442
    %v4444 = vcombine.low %v4436, %v4443
    %v4446 = vunpack.c.l.s4 1966171168
    %v4447 = vunpack.c.0.s8 %v4446
    %v4448 = vlaneseq
    %v4449 = vshrl.u32 %v4448, 7
    %v4450 = vsub.s32 %v4447, %v4449
    %v4451 = vrot.slane %v4395, %v4450
    %v4453 = vunpack.c.l.s4 1966171168
    %v4454 = vunpack.c.0.s8 %v4453
    %v4455 = vlaneseq
    %v4456 = vshrl.u32 %v4455, 7
    %v4457 = vsub.s32 %v4454, %v4456
    %v4458 = vrot.slane %v4451, %v4457
    %v4467 = vunpack.c.l.b16 %v4281
    %v4468 = vunpack.c.h.b16 %v4281
    %v4469 = vunpack.c.l.b16 %v4282
    %v4470 = vunpack.c.h.b16 %v4282
    %v4471 = vunpack.c.l.b16 %v4283
    %v4472 = vunpack.c.h.b16 %v4283
    %v4473 = vunpack.c.l.b16 %v4284
    %v4474 = vunpack.c.h.b16 %v4284
    %v4475 = vunpack.c.l.b16 %v4285
    %v4476 = vunpack.c.h.b16 %v4285
    %v4477 = vunpack.c.l.b16 %v4286
    %v4478 = vunpack.c.h.b16 %v4286
    %v4479 = vunpack.c.l.b16 %v4287
    %v4480 = vunpack.c.h.b16 %v4287
    %v4481 = vunpack.c.l.b16 %v4288
    %v4482 = vunpack.c.h.b16 %v4288
    %v4483 = vpack.c.b16 %v4475, %v4467
    %v4484 = vpack.c.b16 %v4476, %v4468
    %v4485 = vpack.c.b16 %v4477, %v4469
    %v4486 = vpack.c.b16 %v4478, %v4470
    %v4487 = vpack.c.b16 %v4479, %v4471
    %v4488 = vpack.c.b16 %v4480, %v4472
    %v4489 = vpack.c.b16 %v4481, %v4473
    %v4490 = vpack.c.b16 %v4482, %v4474
    %v4500 = vsel %vm242, %v4444, 0
    %v4503 = vsel %vm242, %v4458, 0
    %4505 = vmatprep.subr.bf16.mxu0 0
    %4506 = vmatpush1.bf16.msra.mxu0 0
    %4507 = vmatprep.subr.bf16.mxu0 0
    %4508 = vmatpush1.bf16.msra.mxu0 0
    %4509 = vmatprep.subr.bf16.mxu0 0
    %4510 = vmatpush1.bf16.msra.mxu0 0
    %4511 = vmatprep.subr.bf16.mxu0 0
    %4512 = vmatpush1.bf16.msra.mxu0 0
    %4513 = vmatprep.subr.bf16.mxu0 0
    %4514 = vmatpush1.bf16.msra.mxu0 0
    %4515 = vmatprep.subr.bf16.mxu0 0
    %4516 = vmatpush1.bf16.msra.mxu0 0
    %4517 = vmatprep.subr.bf16.mxu0 0
    %4518 = vmatpush1.bf16.msra.mxu0 0
    %4519 = vmatprep.subr.bf16.mxu0 %v4484
    %4520 = vmatpush1.bf16.msra.mxu0 %v4483
    %4521 = vmatprep.subr.bf16.mxu0 0
    %4522 = vmatpush2.bf16.msra.mxu0 0
    %4523 = vmatprep.subr.bf16.mxu0 0
    %4524 = vmatpush2.bf16.msra.mxu0 0
    %4525 = vmatprep.subr.bf16.mxu0 0
    %4526 = vmatpush2.bf16.msra.mxu0 0
    %4527 = vmatprep.subr.bf16.mxu0 0
    %4528 = vmatpush2.bf16.msra.mxu0 0
    %4529 = vmatprep.subr.bf16.mxu0 0
    %4530 = vmatpush2.bf16.msra.mxu0 0
    %4531 = vmatprep.subr.bf16.mxu0 0
    %4532 = vmatpush2.bf16.msra.mxu0 0
    %4533 = vmatprep.subr.bf16.mxu0 0
    %4534 = vmatpush2.bf16.msra.mxu0 0
    %4535 = vmatprep.subr.bf16.mxu0 0
    %4536 = vmatpush2.bf16.msra.mxu0 0
    %4537 = vmatprep.mubr.bf16.mxu0 0
    %4538 = vmatmul.mubr.bf16.gmra.mxu0 %v4500
    %v4539 = vpop.f32.mrf.mxu0
    %v4540 = vadd.f32 0.0, %v4539
    %v4541 = vpop.f32.mrf.mxu0
    %v4542 = vadd.f32 0.0, %v4541
    %v4543 = vpop.f32.mrf.mxu0
    %v4544 = vadd.f32 0.0, %v4543
    %v4545 = vpop.f32.mrf.mxu0
    %v4546 = vadd.f32 0.0, %v4545
    %4547 = vmatprep.mubr.bf16.mxu0 0
    %4548 = vmatmul.mubr.bf16.gmra.mxu0 %v4503
    %v4549 = vpop.f32.mrf.mxu0
    %v4550 = vadd.f32 0.0, %v4549
    %v4551 = vpop.f32.mrf.mxu0
    %v4552 = vadd.f32 0.0, %v4551
    %v4553 = vpop.f32.mrf.mxu0
    %v4554 = vpop.f32.mrf.mxu0
    %4555 = vdwg.mxu0
    %4556 = vmatprep.subr.bf16.mxu0 0
    %4557 = vmatpush1.bf16.msra.mxu0 0
    %4558 = vmatprep.subr.bf16.mxu0 0
    %4559 = vmatpush1.bf16.msra.mxu0 0
    %4560 = vmatprep.subr.bf16.mxu0 0
    %4561 = vmatpush1.bf16.msra.mxu0 0
    %4562 = vmatprep.subr.bf16.mxu0 0
    %4563 = vmatpush1.bf16.msra.mxu0 0
    %4564 = vmatprep.subr.bf16.mxu0 0
    %4565 = vmatpush1.bf16.msra.mxu0 0
    %4566 = vmatprep.subr.bf16.mxu0 0
    %4567 = vmatpush1.bf16.msra.mxu0 0
    %4568 = vmatprep.subr.bf16.mxu0 0
    %4569 = vmatpush1.bf16.msra.mxu0 0
    %4570 = vmatprep.subr.bf16.mxu0 %v4486
    %4571 = vmatpush1.bf16.msra.mxu0 %v4485
    %4572 = vmatprep.subr.bf16.mxu0 0
    %4573 = vmatpush2.bf16.msra.mxu0 0
    %4574 = vmatprep.subr.bf16.mxu0 0
    %4575 = vmatpush2.bf16.msra.mxu0 0
    %4576 = vmatprep.subr.bf16.mxu0 0
    %4577 = vmatpush2.bf16.msra.mxu0 0
    %4578 = vmatprep.subr.bf16.mxu0 0
    %4579 = vmatpush2.bf16.msra.mxu0 0
    %4580 = vmatprep.subr.bf16.mxu0 0
    %4581 = vmatpush2.bf16.msra.mxu0 0
    %4582 = vmatprep.subr.bf16.mxu0 0
    %4583 = vmatpush2.bf16.msra.mxu0 0
    %4584 = vmatprep.subr.bf16.mxu0 0
    %4585 = vmatpush2.bf16.msra.mxu0 0
    %4586 = vmatprep.subr.bf16.mxu0 0
    %4587 = vmatpush2.bf16.msra.mxu0 0
    %4588 = vmatprep.mubr.bf16.mxu0 0
    %4589 = vmatmul.mubr.bf16.gmra.mxu0 %v4500
    %v4590 = vpop.f32.mrf.mxu0
    %v4591 = vadd.f32 0.0, %v4590
    %v4592 = vpop.f32.mrf.mxu0
    %v4593 = vadd.f32 0.0, %v4592
    %v4594 = vpop.f32.mrf.mxu0
    %v4595 = vadd.f32 0.0, %v4594
    %v4596 = vpop.f32.mrf.mxu0
    %v4597 = vadd.f32 0.0, %v4596
    %4598 = vmatprep.mubr.bf16.mxu0 0
    %4599 = vmatmul.mubr.bf16.gmra.mxu0 %v4503
    %v4600 = vpop.f32.mrf.mxu0
    %v4601 = vadd.f32 0.0, %v4600
    %v4602 = vpop.f32.mrf.mxu0
    %v4603 = vadd.f32 0.0, %v4602
    %v4604 = vpop.f32.mrf.mxu0
    %v4605 = vpop.f32.mrf.mxu0
    %4606 = vdwg.mxu0
    %4607 = vmatprep.subr.bf16.mxu0 0
    %4608 = vmatpush1.bf16.msra.mxu0 0
    %4609 = vmatprep.subr.bf16.mxu0 0
    %4610 = vmatpush1.bf16.msra.mxu0 0
    %4611 = vmatprep.subr.bf16.mxu0 0
    %4612 = vmatpush1.bf16.msra.mxu0 0
    %4613 = vmatprep.subr.bf16.mxu0 0
    %4614 = vmatpush1.bf16.msra.mxu0 0
    %4615 = vmatprep.subr.bf16.mxu0 0
    %4616 = vmatpush1.bf16.msra.mxu0 0
    %4617 = vmatprep.subr.bf16.mxu0 0
    %4618 = vmatpush1.bf16.msra.mxu0 0
    %4619 = vmatprep.subr.bf16.mxu0 0
    %4620 = vmatpush1.bf16.msra.mxu0 0
    %4621 = vmatprep.subr.bf16.mxu0 %v4488
    %4622 = vmatpush1.bf16.msra.mxu0 %v4487
    %4623 = vmatprep.subr.bf16.mxu0 0
    %4624 = vmatpush2.bf16.msra.mxu0 0
    %4625 = vmatprep.subr.bf16.mxu0 0
    %4626 = vmatpush2.bf16.msra.mxu0 0
    %4627 = vmatprep.subr.bf16.mxu0 0
    %4628 = vmatpush2.bf16.msra.mxu0 0
    %4629 = vmatprep.subr.bf16.mxu0 0
    %4630 = vmatpush2.bf16.msra.mxu0 0
    %4631 = vmatprep.subr.bf16.mxu0 0
    %4632 = vmatpush2.bf16.msra.mxu0 0
    %4633 = vmatprep.subr.bf16.mxu0 0
    %4634 = vmatpush2.bf16.msra.mxu0 0
    %4635 = vmatprep.subr.bf16.mxu0 0
    %4636 = vmatpush2.bf16.msra.mxu0 0
    %4637 = vmatprep.subr.bf16.mxu0 0
    %4638 = vmatpush2.bf16.msra.mxu0 0
    %4639 = vmatprep.mubr.bf16.mxu0 0
    %4640 = vmatmul.mubr.bf16.gmra.mxu0 %v4500
    %v4641 = vpop.f32.mrf.mxu0
    %v4642 = vadd.f32 0.0, %v4641
    %v4643 = vpop.f32.mrf.mxu0
    %v4644 = vadd.f32 0.0, %v4643
    %v4645 = vpop.f32.mrf.mxu0
    %v4646 = vadd.f32 0.0, %v4645
    %v4647 = vpop.f32.mrf.mxu0
    %v4648 = vadd.f32 0.0, %v4647
    %4649 = vmatprep.mubr.bf16.mxu0 0
    %4650 = vmatmul.mubr.bf16.gmra.mxu0 %v4503
    %v4651 = vpop.f32.mrf.mxu0
    %v4652 = vadd.f32 0.0, %v4651
    %v4653 = vpop.f32.mrf.mxu0
    %v4654 = vadd.f32 0.0, %v4653
    %v4655 = vpop.f32.mrf.mxu0
    %v4656 = vpop.f32.mrf.mxu0
    %4657 = vdwg.mxu0
    %4658 = vmatprep.subr.bf16.mxu0 0
    %4659 = vmatpush1.bf16.msra.mxu0 0
    %4660 = vmatprep.subr.bf16.mxu0 0
    %4661 = vmatpush1.bf16.msra.mxu0 0
    %4662 = vmatprep.subr.bf16.mxu0 0
    %4663 = vmatpush1.bf16.msra.mxu0 0
    %4664 = vmatprep.subr.bf16.mxu0 0
    %4665 = vmatpush1.bf16.msra.mxu0 0
    %4666 = vmatprep.subr.bf16.mxu0 0
    %4667 = vmatpush1.bf16.msra.mxu0 0
    %4668 = vmatprep.subr.bf16.mxu0 0
    %4669 = vmatpush1.bf16.msra.mxu0 0
    %4670 = vmatprep.subr.bf16.mxu0 0
    %4671 = vmatpush1.bf16.msra.mxu0 0
    %4672 = vmatprep.subr.bf16.mxu0 %v4490
    %4673 = vmatpush1.bf16.msra.mxu0 %v4489
    %4674 = vmatprep.subr.bf16.mxu0 0
    %4675 = vmatpush2.bf16.msra.mxu0 0
    %4676 = vmatprep.subr.bf16.mxu0 0
    %4677 = vmatpush2.bf16.msra.mxu0 0
    %4678 = vmatprep.subr.bf16.mxu0 0
    %4679 = vmatpush2.bf16.msra.mxu0 0
    %4680 = vmatprep.subr.bf16.mxu0 0
    %4681 = vmatpush2.bf16.msra.mxu0 0
    %4682 = vmatprep.subr.bf16.mxu0 0
    %4683 = vmatpush2.bf16.msra.mxu0 0
    %4684 = vmatprep.subr.bf16.mxu0 0
    %4685 = vmatpush2.bf16.msra.mxu0 0
    %4686 = vmatprep.subr.bf16.mxu0 0
    %4687 = vmatpush2.bf16.msra.mxu0 0
    %4688 = vmatprep.subr.bf16.mxu0 0
    %4689 = vmatpush2.bf16.msra.mxu0 0
    %4690 = vmatprep.mubr.bf16.mxu0 0
    %4691 = vmatmul.mubr.bf16.gmra.mxu0 %v4500
    %v4692 = vpop.f32.mrf.mxu0
    %v4693 = vadd.f32 0.0, %v4692
    %v4694 = vpop.f32.mrf.mxu0
    %v4695 = vadd.f32 0.0, %v4694
    %v4696 = vpop.f32.mrf.mxu0
    %v4697 = vadd.f32 0.0, %v4696
    %v4698 = vpop.f32.mrf.mxu0
    %v4699 = vadd.f32 0.0, %v4698
    %4700 = vmatprep.mubr.bf16.mxu0 0
    %4701 = vmatmul.mubr.bf16.gmra.mxu0 %v4503
    %v4702 = vpop.f32.mrf.mxu0
    %v4703 = vadd.f32 0.0, %v4702
    %v4704 = vpop.f32.mrf.mxu0
    %v4705 = vadd.f32 0.0, %v4704
    %v4706 = vpop.f32.mrf.mxu0
    %v4707 = vpop.f32.mrf.mxu0
    %4708 = vdwg.mxu0
    %v4733 = vcombine.low %v4540, %v4542
    %v4734 = vcombine.high %v4540, %v4542
    %v4735 = vcombine.low %v4591, %v4593
    %v4736 = vcombine.high %v4591, %v4593
    %v4737 = vcombine.low %v4642, %v4644
    %v4738 = vcombine.high %v4642, %v4644
    %v4739 = vcombine.low %v4693, %v4695
    %v4740 = vcombine.high %v4693, %v4695
    %v4742 = vunpack.c.l.s4 1966171168
    %v4743 = vunpack.c.0.s8 %v4742
    %v4744 = vlaneseq
    %v4745 = vshrl.u32 %v4744, 7
    %v4746 = vsub.s32 %v4743, %v4745
    %v4747 = vrot.slane %v4733, %v4746
    %v4749 = vunpack.c.l.s4 1966171168
    %v4750 = vunpack.c.0.s8 %v4749
    %v4751 = vlaneseq
    %v4752 = vshrl.u32 %v4751, 7
    %v4753 = vsub.s32 %v4750, %v4752
    %v4754 = vrot.slane %v4734, %v4753
    %v4756 = vunpack.c.l.s4 1966171168
    %v4757 = vunpack.c.0.s8 %v4756
    %v4758 = vlaneseq
    %v4759 = vshrl.u32 %v4758, 7
    %v4760 = vsub.s32 %v4757, %v4759
    %v4761 = vrot.slane %v4735, %v4760
    %v4763 = vunpack.c.l.s4 1966171168
    %v4764 = vunpack.c.0.s8 %v4763
    %v4765 = vlaneseq
    %v4766 = vshrl.u32 %v4765, 7
    %v4767 = vsub.s32 %v4764, %v4766
    %v4768 = vrot.slane %v4736, %v4767
    %v4770 = vunpack.c.l.s4 1966171168
    %v4771 = vunpack.c.0.s8 %v4770
    %v4772 = vlaneseq
    %v4773 = vshrl.u32 %v4772, 7
    %v4774 = vsub.s32 %v4771, %v4773
    %v4775 = vrot.slane %v4737, %v4774
    %v4777 = vunpack.c.l.s4 1966171168
    %v4778 = vunpack.c.0.s8 %v4777
    %v4779 = vlaneseq
    %v4780 = vshrl.u32 %v4779, 7
    %v4781 = vsub.s32 %v4778, %v4780
    %v4782 = vrot.slane %v4738, %v4781
    %v4784 = vunpack.c.l.s4 1966171168
    %v4785 = vunpack.c.0.s8 %v4784
    %v4786 = vlaneseq
    %v4787 = vshrl.u32 %v4786, 7
    %v4788 = vsub.s32 %v4785, %v4787
    %v4789 = vrot.slane %v4739, %v4788
    %v4791 = vunpack.c.l.s4 1966171168
    %v4792 = vunpack.c.0.s8 %v4791
    %v4793 = vlaneseq
    %v4794 = vshrl.u32 %v4793, 7
    %v4795 = vsub.s32 %v4792, %v4794
    %v4796 = vrot.slane %v4740, %v4795
    %v4797 = vcombine.low %v4747, %v4761
    %v4798 = vcombine.high %v4747, %v4761
    %v4799 = vcombine.low %v4754, %v4768
    %v4800 = vcombine.high %v4754, %v4768
    %v4801 = vcombine.low %v4775, %v4789
    %v4802 = vcombine.high %v4775, %v4789
    %v4803 = vcombine.low %v4782, %v4796
    %v4804 = vcombine.high %v4782, %v4796
    %v4806 = vunpack.c.l.s4 1966171168
    %v4807 = vunpack.c.0.s8 %v4806
    %v4808 = vlaneseq
    %v4809 = vshrl.u32 %v4808, 7
    %v4810 = vsub.s32 %v4807, %v4809
    %v4811 = vrot.slane %v4797, %v4810
    %v4813 = vunpack.c.l.s4 1966171168
    %v4814 = vunpack.c.0.s8 %v4813
    %v4815 = vlaneseq
    %v4816 = vshrl.u32 %v4815, 7
    %v4817 = vsub.s32 %v4814, %v4816
    %v4818 = vrot.slane %v4799, %v4817
    %v4820 = vunpack.c.l.s4 1966171168
    %v4821 = vunpack.c.0.s8 %v4820
    %v4822 = vlaneseq
    %v4823 = vshrl.u32 %v4822, 7
    %v4824 = vsub.s32 %v4821, %v4823
    %v4825 = vrot.slane %v4798, %v4824
    %v4827 = vunpack.c.l.s4 1966171168
    %v4828 = vunpack.c.0.s8 %v4827
    %v4829 = vlaneseq
    %v4830 = vshrl.u32 %v4829, 7
    %v4831 = vsub.s32 %v4828, %v4830
    %v4832 = vrot.slane %v4800, %v4831
    %v4834 = vunpack.c.l.s4 1966171168
    %v4835 = vunpack.c.0.s8 %v4834
    %v4836 = vlaneseq
    %v4837 = vshrl.u32 %v4836, 7
    %v4838 = vsub.s32 %v4835, %v4837
    %v4839 = vrot.slane %v4801, %v4838
    %v4841 = vunpack.c.l.s4 1966171168
    %v4842 = vunpack.c.0.s8 %v4841
    %v4843 = vlaneseq
    %v4844 = vshrl.u32 %v4843, 7
    %v4845 = vsub.s32 %v4842, %v4844
    %v4846 = vrot.slane %v4803, %v4845
    %v4848 = vunpack.c.l.s4 1966171168
    %v4849 = vunpack.c.0.s8 %v4848
    %v4850 = vlaneseq
    %v4851 = vshrl.u32 %v4850, 7
    %v4852 = vsub.s32 %v4849, %v4851
    %v4853 = vrot.slane %v4802, %v4852
    %v4855 = vunpack.c.l.s4 1966171168
    %v4856 = vunpack.c.0.s8 %v4855
    %v4857 = vlaneseq
    %v4858 = vshrl.u32 %v4857, 7
    %v4859 = vsub.s32 %v4856, %v4858
    %v4860 = vrot.slane %v4804, %v4859
    %v4861 = vcombine.low %v4811, %v4839
    %v4862 = vcombine.high %v4811, %v4839
    %v4863 = vcombine.low %v4818, %v4846
    %v4864 = vcombine.high %v4818, %v4846
    %v4865 = vcombine.low %v4825, %v4853
    %v4866 = vcombine.high %v4825, %v4853
    %v4867 = vcombine.low %v4832, %v4860
    %v4868 = vcombine.high %v4832, %v4860
    %v4869 = vcombine.low %v4544, %v4546
    %v4870 = vcombine.high %v4544, %v4546
    %v4871 = vcombine.low %v4595, %v4597
    %v4872 = vcombine.high %v4595, %v4597
    %v4873 = vcombine.low %v4646, %v4648
    %v4874 = vcombine.high %v4646, %v4648
    %v4875 = vcombine.low %v4697, %v4699
    %v4876 = vcombine.high %v4697, %v4699
    %v4878 = vunpack.c.l.s4 1966171168
    %v4879 = vunpack.c.0.s8 %v4878
    %v4880 = vlaneseq
    %v4881 = vshrl.u32 %v4880, 7
    %v4882 = vsub.s32 %v4879, %v4881
    %v4883 = vrot.slane %v4869, %v4882
    %v4885 = vunpack.c.l.s4 1966171168
    %v4886 = vunpack.c.0.s8 %v4885
    %v4887 = vlaneseq
    %v4888 = vshrl.u32 %v4887, 7
    %v4889 = vsub.s32 %v4886, %v4888
    %v4890 = vrot.slane %v4870, %v4889
    %v4892 = vunpack.c.l.s4 1966171168
    %v4893 = vunpack.c.0.s8 %v4892
    %v4894 = vlaneseq
    %v4895 = vshrl.u32 %v4894, 7
    %v4896 = vsub.s32 %v4893, %v4895
    %v4897 = vrot.slane %v4871, %v4896
    %v4899 = vunpack.c.l.s4 1966171168
    %v4900 = vunpack.c.0.s8 %v4899
    %v4901 = vlaneseq
    %v4902 = vshrl.u32 %v4901, 7
    %v4903 = vsub.s32 %v4900, %v4902
    %v4904 = vrot.slane %v4872, %v4903
    %v4906 = vunpack.c.l.s4 1966171168
    %v4907 = vunpack.c.0.s8 %v4906
    %v4908 = vlaneseq
    %v4909 = vshrl.u32 %v4908, 7
    %v4910 = vsub.s32 %v4907, %v4909
    %v4911 = vrot.slane %v4873, %v4910
    %v4913 = vunpack.c.l.s4 1966171168
    %v4914 = vunpack.c.0.s8 %v4913
    %v4915 = vlaneseq
    %v4916 = vshrl.u32 %v4915, 7
    %v4917 = vsub.s32 %v4914, %v4916
    %v4918 = vrot.slane %v4874, %v4917
    %v4920 = vunpack.c.l.s4 1966171168
    %v4921 = vunpack.c.0.s8 %v4920
    %v4922 = vlaneseq
    %v4923 = vshrl.u32 %v4922, 7
    %v4924 = vsub.s32 %v4921, %v4923
    %v4925 = vrot.slane %v4875, %v4924
    %v4927 = vunpack.c.l.s4 1966171168
    %v4928 = vunpack.c.0.s8 %v4927
    %v4929 = vlaneseq
    %v4930 = vshrl.u32 %v4929, 7
    %v4931 = vsub.s32 %v4928, %v4930
    %v4932 = vrot.slane %v4876, %v4931
    %v4933 = vcombine.low %v4883, %v4897
    %v4934 = vcombine.high %v4883, %v4897
    %v4935 = vcombine.low %v4890, %v4904
    %v4936 = vcombine.high %v4890, %v4904
    %v4937 = vcombine.low %v4911, %v4925
    %v4938 = vcombine.high %v4911, %v4925
    %v4939 = vcombine.low %v4918, %v4932
    %v4940 = vcombine.high %v4918, %v4932
    %v4942 = vunpack.c.l.s4 1966171168
    %v4943 = vunpack.c.0.s8 %v4942
    %v4944 = vlaneseq
    %v4945 = vshrl.u32 %v4944, 7
    %v4946 = vsub.s32 %v4943, %v4945
    %v4947 = vrot.slane %v4933, %v4946
    %v4949 = vunpack.c.l.s4 1966171168
    %v4950 = vunpack.c.0.s8 %v4949
    %v4951 = vlaneseq
    %v4952 = vshrl.u32 %v4951, 7
    %v4953 = vsub.s32 %v4950, %v4952
    %v4954 = vrot.slane %v4935, %v4953
    %v4956 = vunpack.c.l.s4 1966171168
    %v4957 = vunpack.c.0.s8 %v4956
    %v4958 = vlaneseq
    %v4959 = vshrl.u32 %v4958, 7
    %v4960 = vsub.s32 %v4957, %v4959
    %v4961 = vrot.slane %v4934, %v4960
    %v4963 = vunpack.c.l.s4 1966171168
    %v4964 = vunpack.c.0.s8 %v4963
    %v4965 = vlaneseq
    %v4966 = vshrl.u32 %v4965, 7
    %v4967 = vsub.s32 %v4964, %v4966
    %v4968 = vrot.slane %v4936, %v4967
    %v4970 = vunpack.c.l.s4 1966171168
    %v4971 = vunpack.c.0.s8 %v4970
    %v4972 = vlaneseq
    %v4973 = vshrl.u32 %v4972, 7
    %v4974 = vsub.s32 %v4971, %v4973
    %v4975 = vrot.slane %v4937, %v4974
    %v4977 = vunpack.c.l.s4 1966171168
    %v4978 = vunpack.c.0.s8 %v4977
    %v4979 = vlaneseq
    %v4980 = vshrl.u32 %v4979, 7
    %v4981 = vsub.s32 %v4978, %v4980
    %v4982 = vrot.slane %v4939, %v4981
    %v4984 = vunpack.c.l.s4 1966171168
    %v4985 = vunpack.c.0.s8 %v4984
    %v4986 = vlaneseq
    %v4987 = vshrl.u32 %v4986, 7
    %v4988 = vsub.s32 %v4985, %v4987
    %v4989 = vrot.slane %v4938, %v4988
    %v4991 = vunpack.c.l.s4 1966171168
    %v4992 = vunpack.c.0.s8 %v4991
    %v4993 = vlaneseq
    %v4994 = vshrl.u32 %v4993, 7
    %v4995 = vsub.s32 %v4992, %v4994
    %v4996 = vrot.slane %v4940, %v4995
    %v4997 = vcombine.low %v4947, %v4975
    %v4998 = vcombine.high %v4947, %v4975
    %v4999 = vcombine.low %v4954, %v4982
    %v5000 = vcombine.high %v4954, %v4982
    %v5001 = vcombine.low %v4961, %v4989
    %v5002 = vcombine.high %v4961, %v4989
    %v5003 = vcombine.low %v4968, %v4996
    %v5004 = vcombine.high %v4968, %v4996
    %v5005 = vcombine.low %v4550, %v4552
    %v5006 = vcombine.low %v4601, %v4603
    %v5007 = vcombine.low %v4652, %v4654
    %v5008 = vcombine.low %v4703, %v4705
    %v5010 = vunpack.c.l.s4 1966171168
    %v5011 = vunpack.c.0.s8 %v5010
    %v5012 = vlaneseq
    %v5013 = vshrl.u32 %v5012, 7
    %v5014 = vsub.s32 %v5011, %v5013
    %v5015 = vrot.slane %v5005, %v5014
    %v5017 = vunpack.c.l.s4 1966171168
    %v5018 = vunpack.c.0.s8 %v5017
    %v5019 = vlaneseq
    %v5020 = vshrl.u32 %v5019, 7
    %v5021 = vsub.s32 %v5018, %v5020
    %v5022 = vrot.slane %v5006, %v5021
    %v5024 = vunpack.c.l.s4 1966171168
    %v5025 = vunpack.c.0.s8 %v5024
    %v5026 = vlaneseq
    %v5027 = vshrl.u32 %v5026, 7
    %v5028 = vsub.s32 %v5025, %v5027
    %v5029 = vrot.slane %v5007, %v5028
    %v5031 = vunpack.c.l.s4 1966171168
    %v5032 = vunpack.c.0.s8 %v5031
    %v5033 = vlaneseq
    %v5034 = vshrl.u32 %v5033, 7
    %v5035 = vsub.s32 %v5032, %v5034
    %v5036 = vrot.slane %v5008, %v5035
    %v5037 = vcombine.low %v5015, %v5022
    %v5038 = vcombine.high %v5015, %v5022
    %v5039 = vcombine.low %v5029, %v5036
    %v5040 = vcombine.high %v5029, %v5036
    %v5042 = vunpack.c.l.s4 1966171168
    %v5043 = vunpack.c.0.s8 %v5042
    %v5044 = vlaneseq
    %v5045 = vshrl.u32 %v5044, 7
    %v5046 = vsub.s32 %v5043, %v5045
    %v5047 = vrot.slane %v5037, %v5046
    %v5049 = vunpack.c.l.s4 1966171168
    %v5050 = vunpack.c.0.s8 %v5049
    %v5051 = vlaneseq
    %v5052 = vshrl.u32 %v5051, 7
    %v5053 = vsub.s32 %v5050, %v5052
    %v5054 = vrot.slane %v5038, %v5053
    %v5056 = vunpack.c.l.s4 1966171168
    %v5057 = vunpack.c.0.s8 %v5056
    %v5058 = vlaneseq
    %v5059 = vshrl.u32 %v5058, 7
    %v5060 = vsub.s32 %v5057, %v5059
    %v5061 = vrot.slane %v5039, %v5060
    %v5063 = vunpack.c.l.s4 1966171168
    %v5064 = vunpack.c.0.s8 %v5063
    %v5065 = vlaneseq
    %v5066 = vshrl.u32 %v5065, 7
    %v5067 = vsub.s32 %v5064, %v5066
    %v5068 = vrot.slane %v5040, %v5067
    %v5069 = vcombine.low %v5047, %v5061
    %v5070 = vcombine.low %v5054, %v5068
    %v5089 = vadd.f32 %v4256, %v4861
    %v5090 = vadd.f32 %v4257, %v4865
    %v5091 = vadd.f32 %v4258, %v4862
    %v5092 = vadd.f32 %v4259, %v4866
    %v5093 = vadd.f32 %v4260, %v4863
    %v5094 = vadd.f32 %v4261, %v4867
    %v5095 = vadd.f32 %v4262, %v4864
    %v5096 = vadd.f32 %v4263, %v4868
    %v5097 = vadd.f32 %v4264, %v4997
    %v5098 = vadd.f32 %v4265, %v5001
    %v5099 = vadd.f32 %v4266, %v4998
    %v5100 = vadd.f32 %v4267, %v5002
    %v5101 = vadd.f32 %v4268, %v4999
    %v5102 = vadd.f32 %v4269, %v5003
    %v5103 = vadd.f32 %v4270, %v5000
    %v5104 = vadd.f32 %v4271, %v5004
    %v5105 = vadd.f32 %v4272, %v5069
    %v5106 = vadd.f32 %v4273, %v5070
    %v5125 = vcombine.low %v5089, %v5090
    %v5126 = vcombine.high %v5089, %v5090
    %v5127 = vcombine.low %v5091, %v5092
    %v5128 = vcombine.high %v5091, %v5092
    %v5129 = vcombine.low %v5093, %v5094
    %v5130 = vcombine.high %v5093, %v5094
    %v5131 = vcombine.low %v5095, %v5096
    %v5132 = vcombine.high %v5095, %v5096
    %v5134 = vunpack.c.l.s4 1966171168
    %v5135 = vunpack.c.0.s8 %v5134
    %v5136 = vlaneseq
    %v5137 = vshrl.u32 %v5136, 7
    %v5138 = vsub.s32 %v5135, %v5137
    %v5139 = vrot.slane %v5125, %v5138
    %v5141 = vunpack.c.l.s4 1966171168
    %v5142 = vunpack.c.0.s8 %v5141
    %v5143 = vlaneseq
    %v5144 = vshrl.u32 %v5143, 7
    %v5145 = vsub.s32 %v5142, %v5144
    %v5146 = vrot.slane %v5126, %v5145
    %v5148 = vunpack.c.l.s4 1966171168
    %v5149 = vunpack.c.0.s8 %v5148
    %v5150 = vlaneseq
    %v5151 = vshrl.u32 %v5150, 7
    %v5152 = vsub.s32 %v5149, %v5151
    %v5153 = vrot.slane %v5127, %v5152
    %v5155 = vunpack.c.l.s4 1966171168
    %v5156 = vunpack.c.0.s8 %v5155
    %v5157 = vlaneseq
    %v5158 = vshrl.u32 %v5157, 7
    %v5159 = vsub.s32 %v5156, %v5158
    %v5160 = vrot.slane %v5128, %v5159
    %v5162 = vunpack.c.l.s4 1966171168
    %v5163 = vunpack.c.0.s8 %v5162
    %v5164 = vlaneseq
    %v5165 = vshrl.u32 %v5164, 7
    %v5166 = vsub.s32 %v5163, %v5165
    %v5167 = vrot.slane %v5129, %v5166
    %v5169 = vunpack.c.l.s4 1966171168
    %v5170 = vunpack.c.0.s8 %v5169
    %v5171 = vlaneseq
    %v5172 = vshrl.u32 %v5171, 7
    %v5173 = vsub.s32 %v5170, %v5172
    %v5174 = vrot.slane %v5130, %v5173
    %v5176 = vunpack.c.l.s4 1966171168
    %v5177 = vunpack.c.0.s8 %v5176
    %v5178 = vlaneseq
    %v5179 = vshrl.u32 %v5178, 7
    %v5180 = vsub.s32 %v5177, %v5179
    %v5181 = vrot.slane %v5131, %v5180
    %v5183 = vunpack.c.l.s4 1966171168
    %v5184 = vunpack.c.0.s8 %v5183
    %v5185 = vlaneseq
    %v5186 = vshrl.u32 %v5185, 7
    %v5187 = vsub.s32 %v5184, %v5186
    %v5188 = vrot.slane %v5132, %v5187
    %v5189 = vcombine.low %v5139, %v5153
    %v5190 = vcombine.high %v5139, %v5153
    %v5191 = vcombine.low %v5146, %v5160
    %v5192 = vcombine.high %v5146, %v5160
    %v5193 = vcombine.low %v5167, %v5181
    %v5194 = vcombine.high %v5167, %v5181
    %v5195 = vcombine.low %v5174, %v5188
    %v5196 = vcombine.high %v5174, %v5188
    %v5198 = vunpack.c.l.s4 1966171168
    %v5199 = vunpack.c.0.s8 %v5198
    %v5200 = vlaneseq
    %v5201 = vshrl.u32 %v5200, 7
    %v5202 = vsub.s32 %v5199, %v5201
    %v5203 = vrot.slane %v5189, %v5202
    %v5205 = vunpack.c.l.s4 1966171168
    %v5206 = vunpack.c.0.s8 %v5205
    %v5207 = vlaneseq
    %v5208 = vshrl.u32 %v5207, 7
    %v5209 = vsub.s32 %v5206, %v5208
    %v5210 = vrot.slane %v5191, %v5209
    %v5212 = vunpack.c.l.s4 1966171168
    %v5213 = vunpack.c.0.s8 %v5212
    %v5214 = vlaneseq
    %v5215 = vshrl.u32 %v5214, 7
    %v5216 = vsub.s32 %v5213, %v5215
    %v5217 = vrot.slane %v5190, %v5216
    %v5219 = vunpack.c.l.s4 1966171168
    %v5220 = vunpack.c.0.s8 %v5219
    %v5221 = vlaneseq
    %v5222 = vshrl.u32 %v5221, 7
    %v5223 = vsub.s32 %v5220, %v5222
    %v5224 = vrot.slane %v5192, %v5223
    %v5226 = vunpack.c.l.s4 1966171168
    %v5227 = vunpack.c.0.s8 %v5226
    %v5228 = vlaneseq
    %v5229 = vshrl.u32 %v5228, 7
    %v5230 = vsub.s32 %v5227, %v5229
    %v5231 = vrot.slane %v5193, %v5230
    %v5233 = vunpack.c.l.s4 1966171168
    %v5234 = vunpack.c.0.s8 %v5233
    %v5235 = vlaneseq
    %v5236 = vshrl.u32 %v5235, 7
    %v5237 = vsub.s32 %v5234, %v5236
    %v5238 = vrot.slane %v5195, %v5237
    %v5240 = vunpack.c.l.s4 1966171168
    %v5241 = vunpack.c.0.s8 %v5240
    %v5242 = vlaneseq
    %v5243 = vshrl.u32 %v5242, 7
    %v5244 = vsub.s32 %v5241, %v5243
    %v5245 = vrot.slane %v5194, %v5244
    %v5247 = vunpack.c.l.s4 1966171168
    %v5248 = vunpack.c.0.s8 %v5247
    %v5249 = vlaneseq
    %v5250 = vshrl.u32 %v5249, 7
    %v5251 = vsub.s32 %v5248, %v5250
    %v5252 = vrot.slane %v5196, %v5251
    %v5253 = vcombine.low %v5203, %v5231
    %v5254 = vcombine.high %v5203, %v5231
    %v5255 = vcombine.low %v5210, %v5238
    %v5256 = vcombine.high %v5210, %v5238
    %v5257 = vcombine.low %v5217, %v5245
    %v5258 = vcombine.high %v5217, %v5245
    %v5259 = vcombine.low %v5224, %v5252
    %v5260 = vcombine.high %v5224, %v5252
    %v5261 = vcombine.high %v5097, %v5097
    %v5263 = vunpack.c.l.s4 1966171168
    %v5264 = vunpack.c.0.s8 %v5263
    %v5265 = vlaneseq
    %v5266 = vshrl.u32 %v5265, 7
    %v5267 = vsub.s32 %v5264, %v5266
    %v5268 = vrot.slane %v5097, %v5267
    %v5270 = vunpack.c.l.s4 1966171168
    %v5271 = vunpack.c.0.s8 %v5270
    %v5272 = vlaneseq
    %v5273 = vshrl.u32 %v5272, 7
    %v5274 = vsub.s32 %v5271, %v5273
    %v5275 = vrot.slane %v5261, %v5274
    %v5276 = vcombine.high %v5268, %v5268
    %v5277 = vcombine.high %v5275, %v5275
    %v5279 = vunpack.c.l.s4 1966171168
    %v5280 = vunpack.c.0.s8 %v5279
    %v5281 = vlaneseq
    %v5282 = vshrl.u32 %v5281, 7
    %v5283 = vsub.s32 %v5280, %v5282
    %v5284 = vrot.slane %v5268, %v5283
    %v5286 = vunpack.c.l.s4 1966171168
    %v5287 = vunpack.c.0.s8 %v5286
    %v5288 = vlaneseq
    %v5289 = vshrl.u32 %v5288, 7
    %v5290 = vsub.s32 %v5287, %v5289
    %v5291 = vrot.slane %v5275, %v5290
    %v5293 = vunpack.c.l.s4 1966171168
    %v5294 = vunpack.c.0.s8 %v5293
    %v5295 = vlaneseq
    %v5296 = vshrl.u32 %v5295, 7
    %v5297 = vsub.s32 %v5294, %v5296
    %v5298 = vrot.slane %v5276, %v5297
    %v5300 = vunpack.c.l.s4 1966171168
    %v5301 = vunpack.c.0.s8 %v5300
    %v5302 = vlaneseq
    %v5303 = vshrl.u32 %v5302, 7
    %v5304 = vsub.s32 %v5301, %v5303
    %v5305 = vrot.slane %v5277, %v5304
    %v5306 = vcombine.high %v5284, %v5284
    %v5307 = vcombine.high %v5291, %v5291
    %v5308 = vcombine.high %v5298, %v5298
    %v5309 = vcombine.high %v5305, %v5305
    %v5310 = vcombine.low %v5098, %v5099
    %v5311 = vcombine.high %v5098, %v5099
    %v5312 = vcombine.low %v5100, %v5101
    %v5313 = vcombine.high %v5100, %v5101
    %v5314 = vcombine.low %v5102, %v5103
    %v5315 = vcombine.high %v5102, %v5103
    %v5316 = vcombine.low %v5104, %v5105
    %v5317 = vcombine.high %v5104, %v5105
    %v5319 = vunpack.c.l.s4 1966171168
    %v5320 = vunpack.c.0.s8 %v5319
    %v5321 = vlaneseq
    %v5322 = vshrl.u32 %v5321, 7
    %v5323 = vsub.s32 %v5320, %v5322
    %v5324 = vrot.slane %v5310, %v5323
    %v5326 = vunpack.c.l.s4 1966171168
    %v5327 = vunpack.c.0.s8 %v5326
    %v5328 = vlaneseq
    %v5329 = vshrl.u32 %v5328, 7
    %v5330 = vsub.s32 %v5327, %v5329
    %v5331 = vrot.slane %v5311, %v5330
    %v5333 = vunpack.c.l.s4 1966171168
    %v5334 = vunpack.c.0.s8 %v5333
    %v5335 = vlaneseq
    %v5336 = vshrl.u32 %v5335, 7
    %v5337 = vsub.s32 %v5334, %v5336
    %v5338 = vrot.slane %v5312, %v5337
    %v5340 = vunpack.c.l.s4 1966171168
    %v5341 = vunpack.c.0.s8 %v5340
    %v5342 = vlaneseq
    %v5343 = vshrl.u32 %v5342, 7
    %v5344 = vsub.s32 %v5341, %v5343
    %v5345 = vrot.slane %v5313, %v5344
    %v5347 = vunpack.c.l.s4 1966171168
    %v5348 = vunpack.c.0.s8 %v5347
    %v5349 = vlaneseq
    %v5350 = vshrl.u32 %v5349, 7
    %v5351 = vsub.s32 %v5348, %v5350
    %v5352 = vrot.slane %v5314, %v5351
    %v5354 = vunpack.c.l.s4 1966171168
    %v5355 = vunpack.c.0.s8 %v5354
    %v5356 = vlaneseq
    %v5357 = vshrl.u32 %v5356, 7
    %v5358 = vsub.s32 %v5355, %v5357
    %v5359 = vrot.slane %v5315, %v5358
    %v5361 = vunpack.c.l.s4 1966171168
    %v5362 = vunpack.c.0.s8 %v5361
    %v5363 = vlaneseq
    %v5364 = vshrl.u32 %v5363, 7
    %v5365 = vsub.s32 %v5362, %v5364
    %v5366 = vrot.slane %v5316, %v5365
    %v5368 = vunpack.c.l.s4 1966171168
    %v5369 = vunpack.c.0.s8 %v5368
    %v5370 = vlaneseq
    %v5371 = vshrl.u32 %v5370, 7
    %v5372 = vsub.s32 %v5369, %v5371
    %v5373 = vrot.slane %v5317, %v5372
    %v5374 = vcombine.low %v5324, %v5338
    %v5375 = vcombine.high %v5324, %v5338
    %v5376 = vcombine.low %v5331, %v5345
    %v5377 = vcombine.high %v5331, %v5345
    %v5378 = vcombine.low %v5352, %v5366
    %v5379 = vcombine.high %v5352, %v5366
    %v5380 = vcombine.low %v5359, %v5373
    %v5381 = vcombine.high %v5359, %v5373
    %v5383 = vunpack.c.l.s4 1966171168
    %v5384 = vunpack.c.0.s8 %v5383
    %v5385 = vlaneseq
    %v5386 = vshrl.u32 %v5385, 7
    %v5387 = vsub.s32 %v5384, %v5386
    %v5388 = vrot.slane %v5374, %v5387
    %v5390 = vunpack.c.l.s4 1966171168
    %v5391 = vunpack.c.0.s8 %v5390
    %v5392 = vlaneseq
    %v5393 = vshrl.u32 %v5392, 7
    %v5394 = vsub.s32 %v5391, %v5393
    %v5395 = vrot.slane %v5376, %v5394
    %v5397 = vunpack.c.l.s4 1966171168
    %v5398 = vunpack.c.0.s8 %v5397
    %v5399 = vlaneseq
    %v5400 = vshrl.u32 %v5399, 7
    %v5401 = vsub.s32 %v5398, %v5400
    %v5402 = vrot.slane %v5375, %v5401
    %v5404 = vunpack.c.l.s4 1966171168
    %v5405 = vunpack.c.0.s8 %v5404
    %v5406 = vlaneseq
    %v5407 = vshrl.u32 %v5406, 7
    %v5408 = vsub.s32 %v5405, %v5407
    %v5409 = vrot.slane %v5377, %v5408
    %v5411 = vunpack.c.l.s4 1966171168
    %v5412 = vunpack.c.0.s8 %v5411
    %v5413 = vlaneseq
    %v5414 = vshrl.u32 %v5413, 7
    %v5415 = vsub.s32 %v5412, %v5414
    %v5416 = vrot.slane %v5378, %v5415
    %v5418 = vunpack.c.l.s4 1966171168
    %v5419 = vunpack.c.0.s8 %v5418
    %v5420 = vlaneseq
    %v5421 = vshrl.u32 %v5420, 7
    %v5422 = vsub.s32 %v5419, %v5421
    %v5423 = vrot.slane %v5380, %v5422
    %v5425 = vunpack.c.l.s4 1966171168
    %v5426 = vunpack.c.0.s8 %v5425
    %v5427 = vlaneseq
    %v5428 = vshrl.u32 %v5427, 7
    %v5429 = vsub.s32 %v5426, %v5428
    %v5430 = vrot.slane %v5379, %v5429
    %v5432 = vunpack.c.l.s4 1966171168
    %v5433 = vunpack.c.0.s8 %v5432
    %v5434 = vlaneseq
    %v5435 = vshrl.u32 %v5434, 7
    %v5436 = vsub.s32 %v5433, %v5435
    %v5437 = vrot.slane %v5381, %v5436
    %v5438 = vcombine.low %v5388, %v5416
    %v5439 = vcombine.high %v5388, %v5416
    %v5440 = vcombine.low %v5395, %v5423
    %v5441 = vcombine.high %v5395, %v5423
    %v5442 = vcombine.low %v5402, %v5430
    %v5443 = vcombine.high %v5402, %v5430
    %v5444 = vcombine.low %v5409, %v5437
    %v5445 = vcombine.high %v5409, %v5437
    %v5446 = vcombine.high %v5106, %v5106
    %v5448 = vunpack.c.l.s4 1966171168
    %v5449 = vunpack.c.0.s8 %v5448
    %v5450 = vlaneseq
    %v5451 = vshrl.u32 %v5450, 7
    %v5452 = vsub.s32 %v5449, %v5451
    %v5453 = vrot.slane %v5106, %v5452
    %v5455 = vunpack.c.l.s4 1966171168
    %v5456 = vunpack.c.0.s8 %v5455
    %v5457 = vlaneseq
    %v5458 = vshrl.u32 %v5457, 7
    %v5459 = vsub.s32 %v5456, %v5458
    %v5460 = vrot.slane %v5446, %v5459
    %v5461 = vcombine.high %v5453, %v5453
    %v5462 = vcombine.high %v5460, %v5460
    %v5464 = vunpack.c.l.s4 1966171168
    %v5465 = vunpack.c.0.s8 %v5464
    %v5466 = vlaneseq
    %v5467 = vshrl.u32 %v5466, 7
    %v5468 = vsub.s32 %v5465, %v5467
    %v5469 = vrot.slane %v5453, %v5468
    %v5471 = vunpack.c.l.s4 1966171168
    %v5472 = vunpack.c.0.s8 %v5471
    %v5473 = vlaneseq
    %v5474 = vshrl.u32 %v5473, 7
    %v5475 = vsub.s32 %v5472, %v5474
    %v5476 = vrot.slane %v5460, %v5475
    %v5478 = vunpack.c.l.s4 1966171168
    %v5479 = vunpack.c.0.s8 %v5478
    %v5480 = vlaneseq
    %v5481 = vshrl.u32 %v5480, 7
    %v5482 = vsub.s32 %v5479, %v5481
    %v5483 = vrot.slane %v5461, %v5482
    %v5485 = vunpack.c.l.s4 1966171168
    %v5486 = vunpack.c.0.s8 %v5485
    %v5487 = vlaneseq
    %v5488 = vshrl.u32 %v5487, 7
    %v5489 = vsub.s32 %v5486, %v5488
    %v5490 = vrot.slane %v5462, %v5489
    %v5491 = vcombine.high %v5469, %v5469
    %v5492 = vcombine.high %v5476, %v5476
    %v5493 = vcombine.high %v5483, %v5483
    %v5494 = vcombine.high %v5490, %v5490
    %vm5527 = vcmask 1040384
    %v5528 = vsel %vm5527, %v5284, -inf
    %v5529 = vmax.f32 %v5253, %v5528
    %v5530 = vrot.slane %v5529, 4
    %v5531 = vmax.f32 %v5529, %v5530
    %v5532 = vrot.slane %v5531, 2
    %v5533 = vmax.f32 %v5531, %v5532
    %v5534 = vrot.slane %v5533, 1
    %v5535 = vmax.f32 %v5533, %v5534
    %v5536 = vsel %vm5527, %v5298, -inf
    %v5537 = vmax.f32 %v5257, %v5536
    %v5538 = vrot.slane %v5537, 4
    %v5539 = vmax.f32 %v5537, %v5538
    %v5540 = vrot.slane %v5539, 2
    %v5541 = vmax.f32 %v5539, %v5540
    %v5542 = vrot.slane %v5541, 1
    %v5543 = vmax.f32 %v5541, %v5542
    %v5544 = vsel %vm5527, %v5306, -inf
    %v5545 = vmax.f32 %v5254, %v5544
    %v5546 = vrot.slane %v5545, 4
    %v5547 = vmax.f32 %v5545, %v5546
    %v5548 = vrot.slane %v5547, 2
    %v5549 = vmax.f32 %v5547, %v5548
    %v5550 = vrot.slane %v5549, 1
    %v5551 = vmax.f32 %v5549, %v5550
    %v5552 = vsel %vm5527, %v5308, -inf
    %v5553 = vmax.f32 %v5258, %v5552
    %v5554 = vrot.slane %v5553, 4
    %v5555 = vmax.f32 %v5553, %v5554
    %v5556 = vrot.slane %v5555, 2
    %v5557 = vmax.f32 %v5555, %v5556
    %v5558 = vrot.slane %v5557, 1
    %v5559 = vmax.f32 %v5557, %v5558
    %v5560 = vsel %vm5527, %v5291, -inf
    %v5561 = vmax.f32 %v5255, %v5560
    %v5562 = vrot.slane %v5561, 4
    %v5563 = vmax.f32 %v5561, %v5562
    %v5564 = vrot.slane %v5563, 2
    %v5565 = vmax.f32 %v5563, %v5564
    %v5566 = vrot.slane %v5565, 1
    %v5567 = vmax.f32 %v5565, %v5566
    %v5568 = vsel %vm5527, %v5305, -inf
    %v5569 = vmax.f32 %v5259, %v5568
    %v5570 = vrot.slane %v5569, 4
    %v5571 = vmax.f32 %v5569, %v5570
    %v5572 = vrot.slane %v5571, 2
    %v5573 = vmax.f32 %v5571, %v5572
    %v5574 = vrot.slane %v5573, 1
    %v5575 = vmax.f32 %v5573, %v5574
    %v5576 = vsel %vm5527, %v5307, -inf
    %v5577 = vmax.f32 %v5256, %v5576
    %v5578 = vrot.slane %v5577, 4
    %v5579 = vmax.f32 %v5577, %v5578
    %v5580 = vrot.slane %v5579, 2
    %v5581 = vmax.f32 %v5579, %v5580
    %v5582 = vrot.slane %v5581, 1
    %v5583 = vmax.f32 %v5581, %v5582
    %v5584 = vsel %vm5527, %v5309, -inf
    %v5585 = vmax.f32 %v5260, %v5584
    %v5586 = vrot.slane %v5585, 4
    %v5587 = vmax.f32 %v5585, %v5586
    %v5588 = vrot.slane %v5587, 2
    %v5589 = vmax.f32 %v5587, %v5588
    %v5590 = vrot.slane %v5589, 1
    %v5591 = vmax.f32 %v5589, %v5590
    %v5592 = vsel %vm5527, %v5469, -inf
    %v5593 = vmax.f32 %v5438, %v5592
    %v5594 = vrot.slane %v5593, 4
    %v5595 = vmax.f32 %v5593, %v5594
    %v5596 = vrot.slane %v5595, 2
    %v5597 = vmax.f32 %v5595, %v5596
    %v5598 = vrot.slane %v5597, 1
    %v5599 = vmax.f32 %v5597, %v5598
    %v5600 = vsel %vm5527, %v5483, -inf
    %v5601 = vmax.f32 %v5442, %v5600
    %v5602 = vrot.slane %v5601, 4
    %v5603 = vmax.f32 %v5601, %v5602
    %v5604 = vrot.slane %v5603, 2
    %v5605 = vmax.f32 %v5603, %v5604
    %v5606 = vrot.slane %v5605, 1
    %v5607 = vmax.f32 %v5605, %v5606
    %v5608 = vsel %vm5527, %v5491, -inf
    %v5609 = vmax.f32 %v5439, %v5608
    %v5610 = vrot.slane %v5609, 4
    %v5611 = vmax.f32 %v5609, %v5610
    %v5612 = vrot.slane %v5611, 2
    %v5613 = vmax.f32 %v5611, %v5612
    %v5614 = vrot.slane %v5613, 1
    %v5615 = vmax.f32 %v5613, %v5614
    %v5616 = vsel %vm5527, %v5493, -inf
    %v5617 = vmax.f32 %v5443, %v5616
    %v5618 = vrot.slane %v5617, 4
    %v5619 = vmax.f32 %v5617, %v5618
    %v5620 = vrot.slane %v5619, 2
    %v5621 = vmax.f32 %v5619, %v5620
    %v5622 = vrot.slane %v5621, 1
    %v5623 = vmax.f32 %v5621, %v5622
    %v5624 = vsel %vm5527, %v5476, -inf
    %v5625 = vmax.f32 %v5440, %v5624
    %v5626 = vrot.slane %v5625, 4
    %v5627 = vmax.f32 %v5625, %v5626
    %v5628 = vrot.slane %v5627, 2
    %v5629 = vmax.f32 %v5627, %v5628
    %v5630 = vrot.slane %v5629, 1
    %v5631 = vmax.f32 %v5629, %v5630
    %v5632 = vsel %vm5527, %v5490, -inf
    %v5633 = vmax.f32 %v5444, %v5632
    %v5634 = vrot.slane %v5633, 4
    %v5635 = vmax.f32 %v5633, %v5634
    %v5636 = vrot.slane %v5635, 2
    %v5637 = vmax.f32 %v5635, %v5636
    %v5638 = vrot.slane %v5637, 1
    %v5639 = vmax.f32 %v5637, %v5638
    %v5640 = vsel %vm5527, %v5492, -inf
    %v5641 = vmax.f32 %v5441, %v5640
    %v5642 = vrot.slane %v5641, 4
    %v5643 = vmax.f32 %v5641, %v5642
    %v5644 = vrot.slane %v5643, 2
    %v5645 = vmax.f32 %v5643, %v5644
    %v5646 = vrot.slane %v5645, 1
    %v5647 = vmax.f32 %v5645, %v5646
    %v5648 = vsel %vm5527, %v5494, -inf
    %v5649 = vmax.f32 %v5445, %v5648
    %v5650 = vrot.slane %v5649, 4
    %v5651 = vmax.f32 %v5649, %v5650
    %v5652 = vrot.slane %v5651, 2
    %v5653 = vmax.f32 %v5651, %v5652
    %v5654 = vrot.slane %v5653, 1
    %v5655 = vmax.f32 %v5653, %v5654
    %s5656 = scalar_lea.vmem %s2, 1
    %v5657 = vld [vmem:[%s5656] ss:$4 sm:$0xff]
    %v5659 = vlaneseq
    %v5660 = vshrl.u32 %v5659, 7
    %v5661 = vsub.s32 0, %v5660
    %v5662 = vrot.slane %v5657, %v5661
    %v5663 = vlaneseq
    %v5664 = vshrl.u32 %v5663, 7
    %v5665 = vsub.s32 1, %v5664
    %v5666 = vrot.slane %v5657, %v5665
    %v5667 = vlaneseq
    %v5668 = vshrl.u32 %v5667, 7
    %v5669 = vsub.s32 2, %v5668
    %v5670 = vrot.slane %v5657, %v5669
    %v5671 = vlaneseq
    %v5672 = vshrl.u32 %v5671, 7
    %v5673 = vsub.s32 3, %v5672
    %v5674 = vrot.slane %v5657, %v5673
    %v5675 = vlaneseq
    %v5676 = vshrl.u32 %v5675, 7
    %v5677 = vsub.s32 4, %v5676
    %v5678 = vrot.slane %v5657, %v5677
    %v5679 = vlaneseq
    %v5680 = vshrl.u32 %v5679, 7
    %v5681 = vsub.s32 5, %v5680
    %v5682 = vrot.slane %v5657, %v5681
    %v5683 = vlaneseq
    %v5684 = vshrl.u32 %v5683, 7
    %v5685 = vsub.s32 6, %v5684
    %v5686 = vrot.slane %v5657, %v5685
    %v5687 = vlaneseq
    %v5688 = vshrl.u32 %v5687, 7
    %v5689 = vsub.s32 7, %v5688
    %v5690 = vrot.slane %v5657, %v5689
    %v5699 = vadd.f32 %v5535, %v5662
    %v5700 = vadd.f32 %v5543, %v5666
    %v5701 = vadd.f32 %v5551, %v5670
    %v5702 = vadd.f32 %v5559, %v5674
    %v5703 = vadd.f32 %v5567, %v5678
    %v5704 = vadd.f32 %v5575, %v5682
    %v5705 = vadd.f32 %v5583, %v5686
    %v5706 = vadd.f32 %v5591, %v5690
    %v5707 = vadd.f32 %v5599, %v5662
    %v5708 = vadd.f32 %v5607, %v5666
    %v5709 = vadd.f32 %v5615, %v5670
    %v5710 = vadd.f32 %v5623, %v5674
    %v5711 = vadd.f32 %v5631, %v5678
    %v5712 = vadd.f32 %v5639, %v5682
    %v5713 = vadd.f32 %v5647, %v5686
    %v5714 = vadd.f32 %v5655, %v5690
    %v5715 = vmax.f32 %v5699, 0.0
    %v5716 = vmax.f32 %v5700, 0.0
    %v5717 = vmax.f32 %v5701, 0.0
    %v5718 = vmax.f32 %v5702, 0.0
    %v5719 = vmax.f32 %v5703, 0.0
    %v5720 = vmax.f32 %v5704, 0.0
    %v5721 = vmax.f32 %v5705, 0.0
    %v5722 = vmax.f32 %v5706, 0.0
    %v5723 = vmax.f32 %v5707, 0.0
    %v5724 = vmax.f32 %v5708, 0.0
    %v5725 = vmax.f32 %v5709, 0.0
    %v5726 = vmax.f32 %v5710, 0.0
    %v5727 = vmax.f32 %v5711, 0.0
    %v5728 = vmax.f32 %v5712, 0.0
    %v5729 = vmax.f32 %v5713, 0.0
    %v5730 = vmax.f32 %v5714, 0.0
    %v5731 = vld [vmem:[%s0] sm:$0xff]
    %v5732 = vld [vmem:[%s0 + $0x10] sm:$0xff]
    %v5733 = vpack.c.bf16 %v5731, %v5731
    %v5734 = vpack.c.bf16 %v5732, %v5732
    %s5735 = scalar_lea.vmem [#allocation2], 448
    %v5736 = vld [vmem:[%s5735] sm:$0xff]
    %v5737 = vld [vmem:[%s5735 + $0x8] sm:$0xff]
    %v5738 = vld [vmem:[%s5735 + $0x10] sm:$0xff]
    %v5739 = vld [vmem:[%s5735 + $0x18] sm:$0xff]
    %v5740 = vld [vmem:[%s5735 + $0x20] sm:$0xff]
    %v5741 = vld [vmem:[%s5735 + $0x28] sm:$0xff]
    %v5742 = vld [vmem:[%s5735 + $0x30] sm:$0xff]
    %v5743 = vld [vmem:[%s5735 + $0x38] sm:$0xff]
    %v5744 = vld [vmem:[%s0 + $0x1] sm:$0xff]
    %v5745 = vld [vmem:[%s0 + $0x11] sm:$0xff]
    %v5746 = vpack.c.bf16 %v5744, %v5744
    %v5747 = vpack.c.bf16 %v5745, %v5745
    %s5748 = scalar_lea.vmem [#allocation2], 512
    %v5749 = vld [vmem:[%s5748] sm:$0xff]
    %v5750 = vld [vmem:[%s5748 + $0x8] sm:$0xff]
    %v5751 = vld [vmem:[%s5748 + $0x10] sm:$0xff]
    %v5752 = vld [vmem:[%s5748 + $0x18] sm:$0xff]
    %v5753 = vld [vmem:[%s5748 + $0x20] sm:$0xff]
    %v5754 = vld [vmem:[%s5748 + $0x28] sm:$0xff]
    %v5755 = vld [vmem:[%s5748 + $0x30] sm:$0xff]
    %v5756 = vld [vmem:[%s5748 + $0x38] sm:$0xff]
    %v5759 = vunpack.c.l.b16 %v5746
    %v5760 = vunpack.c.l.b16 %v5747
    %v5761 = vpack.c.b16 %v5760, %v5759
    %v5770 = vunpack.c.l.b16 %v5749
    %v5771 = vunpack.c.h.b16 %v5749
    %v5772 = vunpack.c.l.b16 %v5750
    %v5773 = vunpack.c.h.b16 %v5750
    %v5774 = vunpack.c.l.b16 %v5751
    %v5775 = vunpack.c.h.b16 %v5751
    %v5776 = vunpack.c.l.b16 %v5752
    %v5777 = vunpack.c.h.b16 %v5752
    %v5778 = vunpack.c.l.b16 %v5753
    %v5779 = vunpack.c.h.b16 %v5753
    %v5780 = vunpack.c.l.b16 %v5754
    %v5781 = vunpack.c.h.b16 %v5754
    %v5782 = vunpack.c.l.b16 %v5755
    %v5783 = vunpack.c.h.b16 %v5755
    %v5784 = vunpack.c.l.b16 %v5756
    %v5785 = vunpack.c.h.b16 %v5756
    %v5786 = vpack.c.b16 %v5778, %v5770
    %v5787 = vpack.c.b16 %v5779, %v5771
    %v5788 = vpack.c.b16 %v5780, %v5772
    %v5789 = vpack.c.b16 %v5781, %v5773
    %v5790 = vpack.c.b16 %v5782, %v5774
    %v5791 = vpack.c.b16 %v5783, %v5775
    %v5792 = vpack.c.b16 %v5784, %v5776
    %v5793 = vpack.c.b16 %v5785, %v5777
    %v5803 = vsel %vm242, %v5761, 0
    %5805 = vmatprep.subr.bf16.mxu0 0
    %5806 = vmatpush1.bf16.msra.mxu0 0
    %5807 = vmatprep.subr.bf16.mxu0 0
    %5808 = vmatpush1.bf16.msra.mxu0 0
    %5809 = vmatprep.subr.bf16.mxu0 0
    %5810 = vmatpush1.bf16.msra.mxu0 0
    %5811 = vmatprep.subr.bf16.mxu0 0
    %5812 = vmatpush1.bf16.msra.mxu0 0
    %5813 = vmatprep.subr.bf16.mxu0 0
    %5814 = vmatpush1.bf16.msra.mxu0 0
    %5815 = vmatprep.subr.bf16.mxu0 0
    %5816 = vmatpush1.bf16.msra.mxu0 0
    %5817 = vmatprep.subr.bf16.mxu0 0
    %5818 = vmatpush1.bf16.msra.mxu0 0
    %5819 = vmatprep.subr.bf16.mxu0 %v5787
    %5820 = vmatpush1.bf16.msra.mxu0 %v5786
    %5821 = vmatprep.subr.bf16.mxu0 0
    %5822 = vmatpush2.bf16.msra.mxu0 0
    %5823 = vmatprep.subr.bf16.mxu0 0
    %5824 = vmatpush2.bf16.msra.mxu0 0
    %5825 = vmatprep.subr.bf16.mxu0 0
    %5826 = vmatpush2.bf16.msra.mxu0 0
    %5827 = vmatprep.subr.bf16.mxu0 0
    %5828 = vmatpush2.bf16.msra.mxu0 0
    %5829 = vmatprep.subr.bf16.mxu0 0
    %5830 = vmatpush2.bf16.msra.mxu0 0
    %5831 = vmatprep.subr.bf16.mxu0 0
    %5832 = vmatpush2.bf16.msra.mxu0 0
    %5833 = vmatprep.subr.bf16.mxu0 0
    %5834 = vmatpush2.bf16.msra.mxu0 0
    %5835 = vmatprep.subr.bf16.mxu0 0
    %5836 = vmatpush2.bf16.msra.mxu0 0
    %5837 = vmatprep.mubr.bf16.mxu0 0
    %5838 = vmatmul.mubr.bf16.gmra.mxu0 %v5803
    %v5839 = vpop.f32.mrf.mxu0
    %v5840 = vadd.f32 0.0, %v5839
    %v5841 = vpop.f32.mrf.mxu0
    %v5842 = vadd.f32 0.0, %v5841
    %v5843 = vpop.f32.mrf.mxu0
    %v5844 = vadd.f32 0.0, %v5843
    %v5845 = vpop.f32.mrf.mxu0
    %v5846 = vadd.f32 0.0, %v5845
    %5847 = vdwg.mxu0
    %5848 = vmatprep.subr.bf16.mxu0 0
    %5849 = vmatpush1.bf16.msra.mxu0 0
    %5850 = vmatprep.subr.bf16.mxu0 0
    %5851 = vmatpush1.bf16.msra.mxu0 0
    %5852 = vmatprep.subr.bf16.mxu0 0
    %5853 = vmatpush1.bf16.msra.mxu0 0
    %5854 = vmatprep.subr.bf16.mxu0 0
    %5855 = vmatpush1.bf16.msra.mxu0 0
    %5856 = vmatprep.subr.bf16.mxu0 0
    %5857 = vmatpush1.bf16.msra.mxu0 0
    %5858 = vmatprep.subr.bf16.mxu0 0
    %5859 = vmatpush1.bf16.msra.mxu0 0
    %5860 = vmatprep.subr.bf16.mxu0 0
    %5861 = vmatpush1.bf16.msra.mxu0 0
    %5862 = vmatprep.subr.bf16.mxu0 %v5789
    %5863 = vmatpush1.bf16.msra.mxu0 %v5788
    %5864 = vmatprep.subr.bf16.mxu0 0
    %5865 = vmatpush2.bf16.msra.mxu0 0
    %5866 = vmatprep.subr.bf16.mxu0 0
    %5867 = vmatpush2.bf16.msra.mxu0 0
    %5868 = vmatprep.subr.bf16.mxu0 0
    %5869 = vmatpush2.bf16.msra.mxu0 0
    %5870 = vmatprep.subr.bf16.mxu0 0
    %5871 = vmatpush2.bf16.msra.mxu0 0
    %5872 = vmatprep.subr.bf16.mxu0 0
    %5873 = vmatpush2.bf16.msra.mxu0 0
    %5874 = vmatprep.subr.bf16.mxu0 0
    %5875 = vmatpush2.bf16.msra.mxu0 0
    %5876 = vmatprep.subr.bf16.mxu0 0
    %5877 = vmatpush2.bf16.msra.mxu0 0
    %5878 = vmatprep.subr.bf16.mxu0 0
    %5879 = vmatpush2.bf16.msra.mxu0 0
    %5880 = vmatprep.mubr.bf16.mxu0 0
    %5881 = vmatmul.mubr.bf16.gmra.mxu0 %v5803
    %v5882 = vpop.f32.mrf.mxu0
    %v5883 = vadd.f32 0.0, %v5882
    %v5884 = vpop.f32.mrf.mxu0
    %v5885 = vadd.f32 0.0, %v5884
    %v5886 = vpop.f32.mrf.mxu0
    %v5887 = vadd.f32 0.0, %v5886
    %v5888 = vpop.f32.mrf.mxu0
    %v5889 = vadd.f32 0.0, %v5888
    %5890 = vdwg.mxu0
    %5891 = vmatprep.subr.bf16.mxu0 0
    %5892 = vmatpush1.bf16.msra.mxu0 0
    %5893 = vmatprep.subr.bf16.mxu0 0
    %5894 = vmatpush1.bf16.msra.mxu0 0
    %5895 = vmatprep.subr.bf16.mxu0 0
    %5896 = vmatpush1.bf16.msra.mxu0 0
    %5897 = vmatprep.subr.bf16.mxu0 0
    %5898 = vmatpush1.bf16.msra.mxu0 0
    %5899 = vmatprep.subr.bf16.mxu0 0
    %5900 = vmatpush1.bf16.msra.mxu0 0
    %5901 = vmatprep.subr.bf16.mxu0 0
    %5902 = vmatpush1.bf16.msra.mxu0 0
    %5903 = vmatprep.subr.bf16.mxu0 0
    %5904 = vmatpush1.bf16.msra.mxu0 0
    %5905 = vmatprep.subr.bf16.mxu0 %v5791
    %5906 = vmatpush1.bf16.msra.mxu0 %v5790
    %5907 = vmatprep.subr.bf16.mxu0 0
    %5908 = vmatpush2.bf16.msra.mxu0 0
    %5909 = vmatprep.subr.bf16.mxu0 0
    %5910 = vmatpush2.bf16.msra.mxu0 0
    %5911 = vmatprep.subr.bf16.mxu0 0
    %5912 = vmatpush2.bf16.msra.mxu0 0
    %5913 = vmatprep.subr.bf16.mxu0 0
    %5914 = vmatpush2.bf16.msra.mxu0 0
    %5915 = vmatprep.subr.bf16.mxu0 0
    %5916 = vmatpush2.bf16.msra.mxu0 0
    %5917 = vmatprep.subr.bf16.mxu0 0
    %5918 = vmatpush2.bf16.msra.mxu0 0
    %5919 = vmatprep.subr.bf16.mxu0 0
    %5920 = vmatpush2.bf16.msra.mxu0 0
    %5921 = vmatprep.subr.bf16.mxu0 0
    %5922 = vmatpush2.bf16.msra.mxu0 0
    %5923 = vmatprep.mubr.bf16.mxu0 0
    %5924 = vmatmul.mubr.bf16.gmra.mxu0 %v5803
    %v5925 = vpop.f32.mrf.mxu0
    %v5926 = vadd.f32 0.0, %v5925
    %v5927 = vpop.f32.mrf.mxu0
    %v5928 = vadd.f32 0.0, %v5927
    %v5929 = vpop.f32.mrf.mxu0
    %v5930 = vadd.f32 0.0, %v5929
    %v5931 = vpop.f32.mrf.mxu0
    %v5932 = vadd.f32 0.0, %v5931
    %5933 = vdwg.mxu0
    %5934 = vmatprep.subr.bf16.mxu0 0
    %5935 = vmatpush1.bf16.msra.mxu0 0
    %5936 = vmatprep.subr.bf16.mxu0 0
    %5937 = vmatpush1.bf16.msra.mxu0 0
    %5938 = vmatprep.subr.bf16.mxu0 0
    %5939 = vmatpush1.bf16.msra.mxu0 0
    %5940 = vmatprep.subr.bf16.mxu0 0
    %5941 = vmatpush1.bf16.msra.mxu0 0
    %5942 = vmatprep.subr.bf16.mxu0 0
    %5943 = vmatpush1.bf16.msra.mxu0 0
    %5944 = vmatprep.subr.bf16.mxu0 0
    %5945 = vmatpush1.bf16.msra.mxu0 0
    %5946 = vmatprep.subr.bf16.mxu0 0
    %5947 = vmatpush1.bf16.msra.mxu0 0
    %5948 = vmatprep.subr.bf16.mxu0 %v5793
    %5949 = vmatpush1.bf16.msra.mxu0 %v5792
    %5950 = vmatprep.subr.bf16.mxu0 0
    %5951 = vmatpush2.bf16.msra.mxu0 0
    %5952 = vmatprep.subr.bf16.mxu0 0
    %5953 = vmatpush2.bf16.msra.mxu0 0
    %5954 = vmatprep.subr.bf16.mxu0 0
    %5955 = vmatpush2.bf16.msra.mxu0 0
    %5956 = vmatprep.subr.bf16.mxu0 0
    %5957 = vmatpush2.bf16.msra.mxu0 0
    %5958 = vmatprep.subr.bf16.mxu0 0
    %5959 = vmatpush2.bf16.msra.mxu0 0
    %5960 = vmatprep.subr.bf16.mxu0 0
    %5961 = vmatpush2.bf16.msra.mxu0 0
    %5962 = vmatprep.subr.bf16.mxu0 0
    %5963 = vmatpush2.bf16.msra.mxu0 0
    %5964 = vmatprep.subr.bf16.mxu0 0
    %5965 = vmatpush2.bf16.msra.mxu0 0
    %5966 = vmatprep.mubr.bf16.mxu0 0
    %5967 = vmatmul.mubr.bf16.gmra.mxu0 %v5803
    %v5968 = vpop.f32.mrf.mxu0
    %v5969 = vadd.f32 0.0, %v5968
    %v5970 = vpop.f32.mrf.mxu0
    %v5971 = vadd.f32 0.0, %v5970
    %v5972 = vpop.f32.mrf.mxu0
    %v5973 = vadd.f32 0.0, %v5972
    %v5974 = vpop.f32.mrf.mxu0
    %v5975 = vadd.f32 0.0, %v5974
    %5976 = vdwg.mxu0
    %v5979 = vunpack.c.l.b16 %v5733
    %v5980 = vunpack.c.l.b16 %v5734
    %v5981 = vpack.c.b16 %v5980, %v5979
    %v5990 = vunpack.c.l.b16 %v5736
    %v5991 = vunpack.c.h.b16 %v5736
    %v5992 = vunpack.c.l.b16 %v5737
    %v5993 = vunpack.c.h.b16 %v5737
    %v5994 = vunpack.c.l.b16 %v5738
    %v5995 = vunpack.c.h.b16 %v5738
    %v5996 = vunpack.c.l.b16 %v5739
    %v5997 = vunpack.c.h.b16 %v5739
    %v5998 = vunpack.c.l.b16 %v5740
    %v5999 = vunpack.c.h.b16 %v5740
    %v6000 = vunpack.c.l.b16 %v5741
    %v6001 = vunpack.c.h.b16 %v5741
    %v6002 = vunpack.c.l.b16 %v5742
    %v6003 = vunpack.c.h.b16 %v5742
    %v6004 = vunpack.c.l.b16 %v5743
    %v6005 = vunpack.c.h.b16 %v5743
    %v6006 = vpack.c.b16 %v5998, %v5990
    %v6007 = vpack.c.b16 %v5999, %v5991
    %v6008 = vpack.c.b16 %v6000, %v5992
    %v6009 = vpack.c.b16 %v6001, %v5993
    %v6010 = vpack.c.b16 %v6002, %v5994
    %v6011 = vpack.c.b16 %v6003, %v5995
    %v6012 = vpack.c.b16 %v6004, %v5996
    %v6013 = vpack.c.b16 %v6005, %v5997
    %v6023 = vsel %vm242, %v5981, 0
    %6025 = vmatprep.subr.bf16.mxu0 0
    %6026 = vmatpush1.bf16.msra.mxu0 0
    %6027 = vmatprep.subr.bf16.mxu0 0
    %6028 = vmatpush1.bf16.msra.mxu0 0
    %6029 = vmatprep.subr.bf16.mxu0 0
    %6030 = vmatpush1.bf16.msra.mxu0 0
    %6031 = vmatprep.subr.bf16.mxu0 0
    %6032 = vmatpush1.bf16.msra.mxu0 0
    %6033 = vmatprep.subr.bf16.mxu0 0
    %6034 = vmatpush1.bf16.msra.mxu0 0
    %6035 = vmatprep.subr.bf16.mxu0 0
    %6036 = vmatpush1.bf16.msra.mxu0 0
    %6037 = vmatprep.subr.bf16.mxu0 0
    %6038 = vmatpush1.bf16.msra.mxu0 0
    %6039 = vmatprep.subr.bf16.mxu0 %v6007
    %6040 = vmatpush1.bf16.msra.mxu0 %v6006
    %6041 = vmatprep.subr.bf16.mxu0 0
    %6042 = vmatpush2.bf16.msra.mxu0 0
    %6043 = vmatprep.subr.bf16.mxu0 0
    %6044 = vmatpush2.bf16.msra.mxu0 0
    %6045 = vmatprep.subr.bf16.mxu0 0
    %6046 = vmatpush2.bf16.msra.mxu0 0
    %6047 = vmatprep.subr.bf16.mxu0 0
    %6048 = vmatpush2.bf16.msra.mxu0 0
    %6049 = vmatprep.subr.bf16.mxu0 0
    %6050 = vmatpush2.bf16.msra.mxu0 0
    %6051 = vmatprep.subr.bf16.mxu0 0
    %6052 = vmatpush2.bf16.msra.mxu0 0
    %6053 = vmatprep.subr.bf16.mxu0 0
    %6054 = vmatpush2.bf16.msra.mxu0 0
    %6055 = vmatprep.subr.bf16.mxu0 0
    %6056 = vmatpush2.bf16.msra.mxu0 0
    %6057 = vmatprep.mubr.bf16.mxu0 0
    %6058 = vmatmul.mubr.bf16.gmra.mxu0 %v6023
    %v6059 = vpop.f32.mrf.mxu0
    %v6060 = vadd.f32 %v5840, %v6059
    %v6061 = vpop.f32.mrf.mxu0
    %v6062 = vadd.f32 %v5842, %v6061
    %v6063 = vpop.f32.mrf.mxu0
    %v6064 = vadd.f32 %v5844, %v6063
    %v6065 = vpop.f32.mrf.mxu0
    %v6066 = vadd.f32 %v5846, %v6065
    %6067 = vdwg.mxu0
    %6068 = vmatprep.subr.bf16.mxu0 0
    %6069 = vmatpush1.bf16.msra.mxu0 0
    %6070 = vmatprep.subr.bf16.mxu0 0
    %6071 = vmatpush1.bf16.msra.mxu0 0
    %6072 = vmatprep.subr.bf16.mxu0 0
    %6073 = vmatpush1.bf16.msra.mxu0 0
    %6074 = vmatprep.subr.bf16.mxu0 0
    %6075 = vmatpush1.bf16.msra.mxu0 0
    %6076 = vmatprep.subr.bf16.mxu0 0
    %6077 = vmatpush1.bf16.msra.mxu0 0
    %6078 = vmatprep.subr.bf16.mxu0 0
    %6079 = vmatpush1.bf16.msra.mxu0 0
    %6080 = vmatprep.subr.bf16.mxu0 0
    %6081 = vmatpush1.bf16.msra.mxu0 0
    %6082 = vmatprep.subr.bf16.mxu0 %v6009
    %6083 = vmatpush1.bf16.msra.mxu0 %v6008
    %6084 = vmatprep.subr.bf16.mxu0 0
    %6085 = vmatpush2.bf16.msra.mxu0 0
    %6086 = vmatprep.subr.bf16.mxu0 0
    %6087 = vmatpush2.bf16.msra.mxu0 0
    %6088 = vmatprep.subr.bf16.mxu0 0
    %6089 = vmatpush2.bf16.msra.mxu0 0
    %6090 = vmatprep.subr.bf16.mxu0 0
    %6091 = vmatpush2.bf16.msra.mxu0 0
    %6092 = vmatprep.subr.bf16.mxu0 0
    %6093 = vmatpush2.bf16.msra.mxu0 0
    %6094 = vmatprep.subr.bf16.mxu0 0
    %6095 = vmatpush2.bf16.msra.mxu0 0
    %6096 = vmatprep.subr.bf16.mxu0 0
    %6097 = vmatpush2.bf16.msra.mxu0 0
    %6098 = vmatprep.subr.bf16.mxu0 0
    %6099 = vmatpush2.bf16.msra.mxu0 0
    %6100 = vmatprep.mubr.bf16.mxu0 0
    %6101 = vmatmul.mubr.bf16.gmra.mxu0 %v6023
    %v6102 = vpop.f32.mrf.mxu0
    %v6103 = vadd.f32 %v5883, %v6102
    %v6104 = vpop.f32.mrf.mxu0
    %v6105 = vadd.f32 %v5885, %v6104
    %v6106 = vpop.f32.mrf.mxu0
    %v6107 = vadd.f32 %v5887, %v6106
    %v6108 = vpop.f32.mrf.mxu0
    %v6109 = vadd.f32 %v5889, %v6108
    %6110 = vdwg.mxu0
    %6111 = vmatprep.subr.bf16.mxu0 0
    %6112 = vmatpush1.bf16.msra.mxu0 0
    %6113 = vmatprep.subr.bf16.mxu0 0
    %6114 = vmatpush1.bf16.msra.mxu0 0
    %6115 = vmatprep.subr.bf16.mxu0 0
    %6116 = vmatpush1.bf16.msra.mxu0 0
    %6117 = vmatprep.subr.bf16.mxu0 0
    %6118 = vmatpush1.bf16.msra.mxu0 0
    %6119 = vmatprep.subr.bf16.mxu0 0
    %6120 = vmatpush1.bf16.msra.mxu0 0
    %6121 = vmatprep.subr.bf16.mxu0 0
    %6122 = vmatpush1.bf16.msra.mxu0 0
    %6123 = vmatprep.subr.bf16.mxu0 0
    %6124 = vmatpush1.bf16.msra.mxu0 0
    %6125 = vmatprep.subr.bf16.mxu0 %v6011
    %6126 = vmatpush1.bf16.msra.mxu0 %v6010
    %6127 = vmatprep.subr.bf16.mxu0 0
    %6128 = vmatpush2.bf16.msra.mxu0 0
    %6129 = vmatprep.subr.bf16.mxu0 0
    %6130 = vmatpush2.bf16.msra.mxu0 0
    %6131 = vmatprep.subr.bf16.mxu0 0
    %6132 = vmatpush2.bf16.msra.mxu0 0
    %6133 = vmatprep.subr.bf16.mxu0 0
    %6134 = vmatpush2.bf16.msra.mxu0 0
    %6135 = vmatprep.subr.bf16.mxu0 0
    %6136 = vmatpush2.bf16.msra.mxu0 0
    %6137 = vmatprep.subr.bf16.mxu0 0
    %6138 = vmatpush2.bf16.msra.mxu0 0
    %6139 = vmatprep.subr.bf16.mxu0 0
    %6140 = vmatpush2.bf16.msra.mxu0 0
    %6141 = vmatprep.subr.bf16.mxu0 0
    %6142 = vmatpush2.bf16.msra.mxu0 0
    %6143 = vmatprep.mubr.bf16.mxu0 0
    %6144 = vmatmul.mubr.bf16.gmra.mxu0 %v6023
    %v6145 = vpop.f32.mrf.mxu0
    %v6146 = vadd.f32 %v5926, %v6145
    %v6147 = vpop.f32.mrf.mxu0
    %v6148 = vadd.f32 %v5928, %v6147
    %v6149 = vpop.f32.mrf.mxu0
    %v6150 = vadd.f32 %v5930, %v6149
    %v6151 = vpop.f32.mrf.mxu0
    %v6152 = vadd.f32 %v5932, %v6151
    %6153 = vdwg.mxu0
    %6154 = vmatprep.subr.bf16.mxu0 0
    %6155 = vmatpush1.bf16.msra.mxu0 0
    %6156 = vmatprep.subr.bf16.mxu0 0
    %6157 = vmatpush1.bf16.msra.mxu0 0
    %6158 = vmatprep.subr.bf16.mxu0 0
    %6159 = vmatpush1.bf16.msra.mxu0 0
    %6160 = vmatprep.subr.bf16.mxu0 0
    %6161 = vmatpush1.bf16.msra.mxu0 0
    %6162 = vmatprep.subr.bf16.mxu0 0
    %6163 = vmatpush1.bf16.msra.mxu0 0
    %6164 = vmatprep.subr.bf16.mxu0 0
    %6165 = vmatpush1.bf16.msra.mxu0 0
    %6166 = vmatprep.subr.bf16.mxu0 0
    %6167 = vmatpush1.bf16.msra.mxu0 0
    %6168 = vmatprep.subr.bf16.mxu0 %v6013
    %6169 = vmatpush1.bf16.msra.mxu0 %v6012
    %6170 = vmatprep.subr.bf16.mxu0 0
    %6171 = vmatpush2.bf16.msra.mxu0 0
    %6172 = vmatprep.subr.bf16.mxu0 0
    %6173 = vmatpush2.bf16.msra.mxu0 0
    %6174 = vmatprep.subr.bf16.mxu0 0
    %6175 = vmatpush2.bf16.msra.mxu0 0
    %6176 = vmatprep.subr.bf16.mxu0 0
    %6177 = vmatpush2.bf16.msra.mxu0 0
    %6178 = vmatprep.subr.bf16.mxu0 0
    %6179 = vmatpush2.bf16.msra.mxu0 0
    %6180 = vmatprep.subr.bf16.mxu0 0
    %6181 = vmatpush2.bf16.msra.mxu0 0
    %6182 = vmatprep.subr.bf16.mxu0 0
    %6183 = vmatpush2.bf16.msra.mxu0 0
    %6184 = vmatprep.subr.bf16.mxu0 0
    %6185 = vmatpush2.bf16.msra.mxu0 0
    %6186 = vmatprep.mubr.bf16.mxu0 0
    %6187 = vmatmul.mubr.bf16.gmra.mxu0 %v6023
    %v6188 = vpop.f32.mrf.mxu0
    %v6189 = vadd.f32 %v5969, %v6188
    %v6190 = vpop.f32.mrf.mxu0
    %v6191 = vadd.f32 %v5971, %v6190
    %v6192 = vpop.f32.mrf.mxu0
    %v6193 = vadd.f32 %v5973, %v6192
    %v6194 = vpop.f32.mrf.mxu0
    %v6195 = vadd.f32 %v5975, %v6194
    %6196 = vdwg.mxu0
    %v6197 = vld [vmem:[%s0 + $0x2] sm:$0xff]
    %v6198 = vld [vmem:[%s0 + $0x12] sm:$0xff]
    %v6199 = vpack.c.bf16 %v6197, %v6197
    %v6200 = vpack.c.bf16 %v6198, %v6198
    %s6201 = scalar_lea.vmem [#allocation2], 576
    %v6202 = vld [vmem:[%s6201] sm:$0xff]
    %v6203 = vld [vmem:[%s6201 + $0x8] sm:$0xff]
    %v6204 = vld [vmem:[%s6201 + $0x10] sm:$0xff]
    %v6205 = vld [vmem:[%s6201 + $0x18] sm:$0xff]
    %v6206 = vld [vmem:[%s6201 + $0x20] sm:$0xff]
    %v6207 = vld [vmem:[%s6201 + $0x28] sm:$0xff]
    %v6208 = vld [vmem:[%s6201 + $0x30] sm:$0xff]
    %v6209 = vld [vmem:[%s6201 + $0x38] sm:$0xff]
    %v6212 = vunpack.c.l.b16 %v6199
    %v6213 = vunpack.c.l.b16 %v6200
    %v6214 = vpack.c.b16 %v6213, %v6212
    %v6223 = vunpack.c.l.b16 %v6202
    %v6224 = vunpack.c.h.b16 %v6202
    %v6225 = vunpack.c.l.b16 %v6203
    %v6226 = vunpack.c.h.b16 %v6203
    %v6227 = vunpack.c.l.b16 %v6204
    %v6228 = vunpack.c.h.b16 %v6204
    %v6229 = vunpack.c.l.b16 %v6205
    %v6230 = vunpack.c.h.b16 %v6205
    %v6231 = vunpack.c.l.b16 %v6206
    %v6232 = vunpack.c.h.b16 %v6206
    %v6233 = vunpack.c.l.b16 %v6207
    %v6234 = vunpack.c.h.b16 %v6207
    %v6235 = vunpack.c.l.b16 %v6208
    %v6236 = vunpack.c.h.b16 %v6208
    %v6237 = vunpack.c.l.b16 %v6209
    %v6238 = vunpack.c.h.b16 %v6209
    %v6239 = vpack.c.b16 %v6231, %v6223
    %v6240 = vpack.c.b16 %v6232, %v6224
    %v6241 = vpack.c.b16 %v6233, %v6225
    %v6242 = vpack.c.b16 %v6234, %v6226
    %v6243 = vpack.c.b16 %v6235, %v6227
    %v6244 = vpack.c.b16 %v6236, %v6228
    %v6245 = vpack.c.b16 %v6237, %v6229
    %v6246 = vpack.c.b16 %v6238, %v6230
    %v6256 = vsel %vm242, %v6214, 0
    %6258 = vmatprep.subr.bf16.mxu0 0
    %6259 = vmatpush1.bf16.msra.mxu0 0
    %6260 = vmatprep.subr.bf16.mxu0 0
    %6261 = vmatpush1.bf16.msra.mxu0 0
    %6262 = vmatprep.subr.bf16.mxu0 0
    %6263 = vmatpush1.bf16.msra.mxu0 0
    %6264 = vmatprep.subr.bf16.mxu0 0
    %6265 = vmatpush1.bf16.msra.mxu0 0
    %6266 = vmatprep.subr.bf16.mxu0 0
    %6267 = vmatpush1.bf16.msra.mxu0 0
    %6268 = vmatprep.subr.bf16.mxu0 0
    %6269 = vmatpush1.bf16.msra.mxu0 0
    %6270 = vmatprep.subr.bf16.mxu0 0
    %6271 = vmatpush1.bf16.msra.mxu0 0
    %6272 = vmatprep.subr.bf16.mxu0 %v6240
    %6273 = vmatpush1.bf16.msra.mxu0 %v6239
    %6274 = vmatprep.subr.bf16.mxu0 0
    %6275 = vmatpush2.bf16.msra.mxu0 0
    %6276 = vmatprep.subr.bf16.mxu0 0
    %6277 = vmatpush2.bf16.msra.mxu0 0
    %6278 = vmatprep.subr.bf16.mxu0 0
    %6279 = vmatpush2.bf16.msra.mxu0 0
    %6280 = vmatprep.subr.bf16.mxu0 0
    %6281 = vmatpush2.bf16.msra.mxu0 0
    %6282 = vmatprep.subr.bf16.mxu0 0
    %6283 = vmatpush2.bf16.msra.mxu0 0
    %6284 = vmatprep.subr.bf16.mxu0 0
    %6285 = vmatpush2.bf16.msra.mxu0 0
    %6286 = vmatprep.subr.bf16.mxu0 0
    %6287 = vmatpush2.bf16.msra.mxu0 0
    %6288 = vmatprep.subr.bf16.mxu0 0
    %6289 = vmatpush2.bf16.msra.mxu0 0
    %6290 = vmatprep.mubr.bf16.mxu0 0
    %6291 = vmatmul.mubr.bf16.gmra.mxu0 %v6256
    %v6292 = vpop.f32.mrf.mxu0
    %v6293 = vadd.f32 0.0, %v6292
    %v6294 = vpop.f32.mrf.mxu0
    %v6295 = vadd.f32 0.0, %v6294
    %v6296 = vpop.f32.mrf.mxu0
    %v6297 = vadd.f32 0.0, %v6296
    %v6298 = vpop.f32.mrf.mxu0
    %v6299 = vadd.f32 0.0, %v6298
    %6300 = vdwg.mxu0
    %6301 = vmatprep.subr.bf16.mxu0 0
    %6302 = vmatpush1.bf16.msra.mxu0 0
    %6303 = vmatprep.subr.bf16.mxu0 0
    %6304 = vmatpush1.bf16.msra.mxu0 0
    %6305 = vmatprep.subr.bf16.mxu0 0
    %6306 = vmatpush1.bf16.msra.mxu0 0
    %6307 = vmatprep.subr.bf16.mxu0 0
    %6308 = vmatpush1.bf16.msra.mxu0 0
    %6309 = vmatprep.subr.bf16.mxu0 0
    %6310 = vmatpush1.bf16.msra.mxu0 0
    %6311 = vmatprep.subr.bf16.mxu0 0
    %6312 = vmatpush1.bf16.msra.mxu0 0
    %6313 = vmatprep.subr.bf16.mxu0 0
    %6314 = vmatpush1.bf16.msra.mxu0 0
    %6315 = vmatprep.subr.bf16.mxu0 %v6242
    %6316 = vmatpush1.bf16.msra.mxu0 %v6241
    %6317 = vmatprep.subr.bf16.mxu0 0
    %6318 = vmatpush2.bf16.msra.mxu0 0
    %6319 = vmatprep.subr.bf16.mxu0 0
    %6320 = vmatpush2.bf16.msra.mxu0 0
    %6321 = vmatprep.subr.bf16.mxu0 0
    %6322 = vmatpush2.bf16.msra.mxu0 0
    %6323 = vmatprep.subr.bf16.mxu0 0
    %6324 = vmatpush2.bf16.msra.mxu0 0
    %6325 = vmatprep.subr.bf16.mxu0 0
    %6326 = vmatpush2.bf16.msra.mxu0 0
    %6327 = vmatprep.subr.bf16.mxu0 0
    %6328 = vmatpush2.bf16.msra.mxu0 0
    %6329 = vmatprep.subr.bf16.mxu0 0
    %6330 = vmatpush2.bf16.msra.mxu0 0
    %6331 = vmatprep.subr.bf16.mxu0 0
    %6332 = vmatpush2.bf16.msra.mxu0 0
    %6333 = vmatprep.mubr.bf16.mxu0 0
    %6334 = vmatmul.mubr.bf16.gmra.mxu0 %v6256
    %v6335 = vpop.f32.mrf.mxu0
    %v6336 = vadd.f32 0.0, %v6335
    %v6337 = vpop.f32.mrf.mxu0
    %v6338 = vadd.f32 0.0, %v6337
    %v6339 = vpop.f32.mrf.mxu0
    %v6340 = vadd.f32 0.0, %v6339
    %v6341 = vpop.f32.mrf.mxu0
    %v6342 = vadd.f32 0.0, %v6341
    %6343 = vdwg.mxu0
    %6344 = vmatprep.subr.bf16.mxu0 0
    %6345 = vmatpush1.bf16.msra.mxu0 0
    %6346 = vmatprep.subr.bf16.mxu0 0
    %6347 = vmatpush1.bf16.msra.mxu0 0
    %6348 = vmatprep.subr.bf16.mxu0 0
    %6349 = vmatpush1.bf16.msra.mxu0 0
    %6350 = vmatprep.subr.bf16.mxu0 0
    %6351 = vmatpush1.bf16.msra.mxu0 0
    %6352 = vmatprep.subr.bf16.mxu0 0
    %6353 = vmatpush1.bf16.msra.mxu0 0
    %6354 = vmatprep.subr.bf16.mxu0 0
    %6355 = vmatpush1.bf16.msra.mxu0 0
    %6356 = vmatprep.subr.bf16.mxu0 0
    %6357 = vmatpush1.bf16.msra.mxu0 0
    %6358 = vmatprep.subr.bf16.mxu0 %v6244
    %6359 = vmatpush1.bf16.msra.mxu0 %v6243
    %6360 = vmatprep.subr.bf16.mxu0 0
    %6361 = vmatpush2.bf16.msra.mxu0 0
    %6362 = vmatprep.subr.bf16.mxu0 0
    %6363 = vmatpush2.bf16.msra.mxu0 0
    %6364 = vmatprep.subr.bf16.mxu0 0
    %6365 = vmatpush2.bf16.msra.mxu0 0
    %6366 = vmatprep.subr.bf16.mxu0 0
    %6367 = vmatpush2.bf16.msra.mxu0 0
    %6368 = vmatprep.subr.bf16.mxu0 0
    %6369 = vmatpush2.bf16.msra.mxu0 0
    %6370 = vmatprep.subr.bf16.mxu0 0
    %6371 = vmatpush2.bf16.msra.mxu0 0
    %6372 = vmatprep.subr.bf16.mxu0 0
    %6373 = vmatpush2.bf16.msra.mxu0 0
    %6374 = vmatprep.subr.bf16.mxu0 0
    %6375 = vmatpush2.bf16.msra.mxu0 0
    %6376 = vmatprep.mubr.bf16.mxu0 0
    %6377 = vmatmul.mubr.bf16.gmra.mxu0 %v6256
    %v6378 = vpop.f32.mrf.mxu0
    %v6379 = vadd.f32 0.0, %v6378
    %v6380 = vpop.f32.mrf.mxu0
    %v6381 = vadd.f32 0.0, %v6380
    %v6382 = vpop.f32.mrf.mxu0
    %v6383 = vadd.f32 0.0, %v6382
    %v6384 = vpop.f32.mrf.mxu0
    %v6385 = vadd.f32 0.0, %v6384
    %6386 = vdwg.mxu0
    %6387 = vmatprep.subr.bf16.mxu0 0
    %6388 = vmatpush1.bf16.msra.mxu0 0
    %6389 = vmatprep.subr.bf16.mxu0 0
    %6390 = vmatpush1.bf16.msra.mxu0 0
    %6391 = vmatprep.subr.bf16.mxu0 0
    %6392 = vmatpush1.bf16.msra.mxu0 0
    %6393 = vmatprep.subr.bf16.mxu0 0
    %6394 = vmatpush1.bf16.msra.mxu0 0
    %6395 = vmatprep.subr.bf16.mxu0 0
    %6396 = vmatpush1.bf16.msra.mxu0 0
    %6397 = vmatprep.subr.bf16.mxu0 0
    %6398 = vmatpush1.bf16.msra.mxu0 0
    %6399 = vmatprep.subr.bf16.mxu0 0
    %6400 = vmatpush1.bf16.msra.mxu0 0
    %6401 = vmatprep.subr.bf16.mxu0 %v6246
    %6402 = vmatpush1.bf16.msra.mxu0 %v6245
    %6403 = vmatprep.subr.bf16.mxu0 0
    %6404 = vmatpush2.bf16.msra.mxu0 0
    %6405 = vmatprep.subr.bf16.mxu0 0
    %6406 = vmatpush2.bf16.msra.mxu0 0
    %6407 = vmatprep.subr.bf16.mxu0 0
    %6408 = vmatpush2.bf16.msra.mxu0 0
    %6409 = vmatprep.subr.bf16.mxu0 0
    %6410 = vmatpush2.bf16.msra.mxu0 0
    %6411 = vmatprep.subr.bf16.mxu0 0
    %6412 = vmatpush2.bf16.msra.mxu0 0
    %6413 = vmatprep.subr.bf16.mxu0 0
    %6414 = vmatpush2.bf16.msra.mxu0 0
    %6415 = vmatprep.subr.bf16.mxu0 0
    %6416 = vmatpush2.bf16.msra.mxu0 0
    %6417 = vmatprep.subr.bf16.mxu0 0
    %6418 = vmatpush2.bf16.msra.mxu0 0
    %6419 = vmatprep.mubr.bf16.mxu0 0
    %6420 = vmatmul.mubr.bf16.gmra.mxu0 %v6256
    %v6421 = vpop.f32.mrf.mxu0
    %v6422 = vadd.f32 0.0, %v6421
    %v6423 = vpop.f32.mrf.mxu0
    %v6424 = vadd.f32 0.0, %v6423
    %v6425 = vpop.f32.mrf.mxu0
    %v6426 = vadd.f32 0.0, %v6425
    %v6427 = vpop.f32.mrf.mxu0
    %v6428 = vadd.f32 0.0, %v6427
    %6429 = vdwg.mxu0
    %v6430 = vadd.f32 %v6060, %v6293
    %v6431 = vadd.f32 %v6062, %v6295
    %v6432 = vadd.f32 %v6103, %v6336
    %v6433 = vadd.f32 %v6105, %v6338
    %v6434 = vadd.f32 %v6146, %v6379
    %v6435 = vadd.f32 %v6148, %v6381
    %v6436 = vadd.f32 %v6189, %v6422
    %v6437 = vadd.f32 %v6191, %v6424
    %v6438 = vadd.f32 %v6064, %v6297
    %v6439 = vadd.f32 %v6066, %v6299
    %v6440 = vadd.f32 %v6107, %v6340
    %v6441 = vadd.f32 %v6109, %v6342
    %v6442 = vadd.f32 %v6150, %v6383
    %v6443 = vadd.f32 %v6152, %v6385
    %v6444 = vadd.f32 %v6193, %v6426
    %v6445 = vadd.f32 %v6195, %v6428
    %v6446 = vld [vmem:[%s0 + $0x3] sm:$0xff]
    %v6447 = vld [vmem:[%s0 + $0x13] sm:$0xff]
    %v6448 = vpack.c.bf16 %v6446, %v6446
    %v6449 = vpack.c.bf16 %v6447, %v6447
    %s6450 = scalar_lea.vmem [#allocation2], 640
    %v6451 = vld [vmem:[%s6450] sm:$0xff]
    %v6452 = vld [vmem:[%s6450 + $0x8] sm:$0xff]
    %v6453 = vld [vmem:[%s6450 + $0x10] sm:$0xff]
    %v6454 = vld [vmem:[%s6450 + $0x18] sm:$0xff]
    %v6455 = vld [vmem:[%s6450 + $0x20] sm:$0xff]
    %v6456 = vld [vmem:[%s6450 + $0x28] sm:$0xff]
    %v6457 = vld [vmem:[%s6450 + $0x30] sm:$0xff]
    %v6458 = vld [vmem:[%s6450 + $0x38] sm:$0xff]
    %v6461 = vunpack.c.l.b16 %v6448
    %v6462 = vunpack.c.l.b16 %v6449
    %v6463 = vpack.c.b16 %v6462, %v6461
    %v6472 = vunpack.c.l.b16 %v6451
    %v6473 = vunpack.c.h.b16 %v6451
    %v6474 = vunpack.c.l.b16 %v6452
    %v6475 = vunpack.c.h.b16 %v6452
    %v6476 = vunpack.c.l.b16 %v6453
    %v6477 = vunpack.c.h.b16 %v6453
    %v6478 = vunpack.c.l.b16 %v6454
    %v6479 = vunpack.c.h.b16 %v6454
    %v6480 = vunpack.c.l.b16 %v6455
    %v6481 = vunpack.c.h.b16 %v6455
    %v6482 = vunpack.c.l.b16 %v6456
    %v6483 = vunpack.c.h.b16 %v6456
    %v6484 = vunpack.c.l.b16 %v6457
    %v6485 = vunpack.c.h.b16 %v6457
    %v6486 = vunpack.c.l.b16 %v6458
    %v6487 = vunpack.c.h.b16 %v6458
    %v6488 = vpack.c.b16 %v6480, %v6472
    %v6489 = vpack.c.b16 %v6481, %v6473
    %v6490 = vpack.c.b16 %v6482, %v6474
    %v6491 = vpack.c.b16 %v6483, %v6475
    %v6492 = vpack.c.b16 %v6484, %v6476
    %v6493 = vpack.c.b16 %v6485, %v6477
    %v6494 = vpack.c.b16 %v6486, %v6478
    %v6495 = vpack.c.b16 %v6487, %v6479
    %v6505 = vsel %vm242, %v6463, 0
    %6507 = vmatprep.subr.bf16.mxu0 0
    %6508 = vmatpush1.bf16.msra.mxu0 0
    %6509 = vmatprep.subr.bf16.mxu0 0
    %6510 = vmatpush1.bf16.msra.mxu0 0
    %6511 = vmatprep.subr.bf16.mxu0 0
    %6512 = vmatpush1.bf16.msra.mxu0 0
    %6513 = vmatprep.subr.bf16.mxu0 0
    %6514 = vmatpush1.bf16.msra.mxu0 0
    %6515 = vmatprep.subr.bf16.mxu0 0
    %6516 = vmatpush1.bf16.msra.mxu0 0
    %6517 = vmatprep.subr.bf16.mxu0 0
    %6518 = vmatpush1.bf16.msra.mxu0 0
    %6519 = vmatprep.subr.bf16.mxu0 0
    %6520 = vmatpush1.bf16.msra.mxu0 0
    %6521 = vmatprep.subr.bf16.mxu0 %v6489
    %6522 = vmatpush1.bf16.msra.mxu0 %v6488
    %6523 = vmatprep.subr.bf16.mxu0 0
    %6524 = vmatpush2.bf16.msra.mxu0 0
    %6525 = vmatprep.subr.bf16.mxu0 0
    %6526 = vmatpush2.bf16.msra.mxu0 0
    %6527 = vmatprep.subr.bf16.mxu0 0
    %6528 = vmatpush2.bf16.msra.mxu0 0
    %6529 = vmatprep.subr.bf16.mxu0 0
    %6530 = vmatpush2.bf16.msra.mxu0 0
    %6531 = vmatprep.subr.bf16.mxu0 0
    %6532 = vmatpush2.bf16.msra.mxu0 0
    %6533 = vmatprep.subr.bf16.mxu0 0
    %6534 = vmatpush2.bf16.msra.mxu0 0
    %6535 = vmatprep.subr.bf16.mxu0 0
    %6536 = vmatpush2.bf16.msra.mxu0 0
    %6537 = vmatprep.subr.bf16.mxu0 0
    %6538 = vmatpush2.bf16.msra.mxu0 0
    %6539 = vmatprep.mubr.bf16.mxu0 0
    %6540 = vmatmul.mubr.bf16.gmra.mxu0 %v6505
    %v6541 = vpop.f32.mrf.mxu0
    %v6542 = vadd.f32 0.0, %v6541
    %v6543 = vpop.f32.mrf.mxu0
    %v6544 = vadd.f32 0.0, %v6543
    %v6545 = vpop.f32.mrf.mxu0
    %v6546 = vadd.f32 0.0, %v6545
    %v6547 = vpop.f32.mrf.mxu0
    %v6548 = vadd.f32 0.0, %v6547
    %6549 = vdwg.mxu0
    %6550 = vmatprep.subr.bf16.mxu0 0
    %6551 = vmatpush1.bf16.msra.mxu0 0
    %6552 = vmatprep.subr.bf16.mxu0 0
    %6553 = vmatpush1.bf16.msra.mxu0 0
    %6554 = vmatprep.subr.bf16.mxu0 0
    %6555 = vmatpush1.bf16.msra.mxu0 0
    %6556 = vmatprep.subr.bf16.mxu0 0
    %6557 = vmatpush1.bf16.msra.mxu0 0
    %6558 = vmatprep.subr.bf16.mxu0 0
    %6559 = vmatpush1.bf16.msra.mxu0 0
    %6560 = vmatprep.subr.bf16.mxu0 0
    %6561 = vmatpush1.bf16.msra.mxu0 0
    %6562 = vmatprep.subr.bf16.mxu0 0
    %6563 = vmatpush1.bf16.msra.mxu0 0
    %6564 = vmatprep.subr.bf16.mxu0 %v6491
    %6565 = vmatpush1.bf16.msra.mxu0 %v6490
    %6566 = vmatprep.subr.bf16.mxu0 0
    %6567 = vmatpush2.bf16.msra.mxu0 0
    %6568 = vmatprep.subr.bf16.mxu0 0
    %6569 = vmatpush2.bf16.msra.mxu0 0
    %6570 = vmatprep.subr.bf16.mxu0 0
    %6571 = vmatpush2.bf16.msra.mxu0 0
    %6572 = vmatprep.subr.bf16.mxu0 0
    %6573 = vmatpush2.bf16.msra.mxu0 0
    %6574 = vmatprep.subr.bf16.mxu0 0
    %6575 = vmatpush2.bf16.msra.mxu0 0
    %6576 = vmatprep.subr.bf16.mxu0 0
    %6577 = vmatpush2.bf16.msra.mxu0 0
    %6578 = vmatprep.subr.bf16.mxu0 0
    %6579 = vmatpush2.bf16.msra.mxu0 0
    %6580 = vmatprep.subr.bf16.mxu0 0
    %6581 = vmatpush2.bf16.msra.mxu0 0
    %6582 = vmatprep.mubr.bf16.mxu0 0
    %6583 = vmatmul.mubr.bf16.gmra.mxu0 %v6505
    %v6584 = vpop.f32.mrf.mxu0
    %v6585 = vadd.f32 0.0, %v6584
    %v6586 = vpop.f32.mrf.mxu0
    %v6587 = vadd.f32 0.0, %v6586
    %v6588 = vpop.f32.mrf.mxu0
    %v6589 = vadd.f32 0.0, %v6588
    %v6590 = vpop.f32.mrf.mxu0
    %v6591 = vadd.f32 0.0, %v6590
    %6592 = vdwg.mxu0
    %6593 = vmatprep.subr.bf16.mxu0 0
    %6594 = vmatpush1.bf16.msra.mxu0 0
    %6595 = vmatprep.subr.bf16.mxu0 0
    %6596 = vmatpush1.bf16.msra.mxu0 0
    %6597 = vmatprep.subr.bf16.mxu0 0
    %6598 = vmatpush1.bf16.msra.mxu0 0
    %6599 = vmatprep.subr.bf16.mxu0 0
    %6600 = vmatpush1.bf16.msra.mxu0 0
    %6601 = vmatprep.subr.bf16.mxu0 0
    %6602 = vmatpush1.bf16.msra.mxu0 0
    %6603 = vmatprep.subr.bf16.mxu0 0
    %6604 = vmatpush1.bf16.msra.mxu0 0
    %6605 = vmatprep.subr.bf16.mxu0 0
    %6606 = vmatpush1.bf16.msra.mxu0 0
    %6607 = vmatprep.subr.bf16.mxu0 %v6493
    %6608 = vmatpush1.bf16.msra.mxu0 %v6492
    %6609 = vmatprep.subr.bf16.mxu0 0
    %6610 = vmatpush2.bf16.msra.mxu0 0
    %6611 = vmatprep.subr.bf16.mxu0 0
    %6612 = vmatpush2.bf16.msra.mxu0 0
    %6613 = vmatprep.subr.bf16.mxu0 0
    %6614 = vmatpush2.bf16.msra.mxu0 0
    %6615 = vmatprep.subr.bf16.mxu0 0
    %6616 = vmatpush2.bf16.msra.mxu0 0
    %6617 = vmatprep.subr.bf16.mxu0 0
    %6618 = vmatpush2.bf16.msra.mxu0 0
    %6619 = vmatprep.subr.bf16.mxu0 0
    %6620 = vmatpush2.bf16.msra.mxu0 0
    %6621 = vmatprep.subr.bf16.mxu0 0
    %6622 = vmatpush2.bf16.msra.mxu0 0
    %6623 = vmatprep.subr.bf16.mxu0 0
    %6624 = vmatpush2.bf16.msra.mxu0 0
    %6625 = vmatprep.mubr.bf16.mxu0 0
    %6626 = vmatmul.mubr.bf16.gmra.mxu0 %v6505
    %v6627 = vpop.f32.mrf.mxu0
    %v6628 = vadd.f32 0.0, %v6627
    %v6629 = vpop.f32.mrf.mxu0
    %v6630 = vadd.f32 0.0, %v6629
    %v6631 = vpop.f32.mrf.mxu0
    %v6632 = vadd.f32 0.0, %v6631
    %v6633 = vpop.f32.mrf.mxu0
    %v6634 = vadd.f32 0.0, %v6633
    %6635 = vdwg.mxu0
    %6636 = vmatprep.subr.bf16.mxu0 0
    %6637 = vmatpush1.bf16.msra.mxu0 0
    %6638 = vmatprep.subr.bf16.mxu0 0
    %6639 = vmatpush1.bf16.msra.mxu0 0
    %6640 = vmatprep.subr.bf16.mxu0 0
    %6641 = vmatpush1.bf16.msra.mxu0 0
    %6642 = vmatprep.subr.bf16.mxu0 0
    %6643 = vmatpush1.bf16.msra.mxu0 0
    %6644 = vmatprep.subr.bf16.mxu0 0
    %6645 = vmatpush1.bf16.msra.mxu0 0
    %6646 = vmatprep.subr.bf16.mxu0 0
    %6647 = vmatpush1.bf16.msra.mxu0 0
    %6648 = vmatprep.subr.bf16.mxu0 0
    %6649 = vmatpush1.bf16.msra.mxu0 0
    %6650 = vmatprep.subr.bf16.mxu0 %v6495
    %6651 = vmatpush1.bf16.msra.mxu0 %v6494
    %6652 = vmatprep.subr.bf16.mxu0 0
    %6653 = vmatpush2.bf16.msra.mxu0 0
    %6654 = vmatprep.subr.bf16.mxu0 0
    %6655 = vmatpush2.bf16.msra.mxu0 0
    %6656 = vmatprep.subr.bf16.mxu0 0
    %6657 = vmatpush2.bf16.msra.mxu0 0
    %6658 = vmatprep.subr.bf16.mxu0 0
    %6659 = vmatpush2.bf16.msra.mxu0 0
    %6660 = vmatprep.subr.bf16.mxu0 0
    %6661 = vmatpush2.bf16.msra.mxu0 0
    %6662 = vmatprep.subr.bf16.mxu0 0
    %6663 = vmatpush2.bf16.msra.mxu0 0
    %6664 = vmatprep.subr.bf16.mxu0 0
    %6665 = vmatpush2.bf16.msra.mxu0 0
    %6666 = vmatprep.subr.bf16.mxu0 0
    %6667 = vmatpush2.bf16.msra.mxu0 0
    %6668 = vmatprep.mubr.bf16.mxu0 0
    %6669 = vmatmul.mubr.bf16.gmra.mxu0 %v6505
    %v6670 = vpop.f32.mrf.mxu0
    %v6671 = vadd.f32 0.0, %v6670
    %v6672 = vpop.f32.mrf.mxu0
    %v6673 = vadd.f32 0.0, %v6672
    %v6674 = vpop.f32.mrf.mxu0
    %v6675 = vadd.f32 0.0, %v6674
    %v6676 = vpop.f32.mrf.mxu0
    %v6677 = vadd.f32 0.0, %v6676
    %6678 = vdwg.mxu0
    %v6679 = vadd.f32 %v6430, %v6542
    %v6680 = vadd.f32 %v6431, %v6544
    %v6681 = vadd.f32 %v6432, %v6585
    %v6682 = vadd.f32 %v6433, %v6587
    %v6683 = vadd.f32 %v6434, %v6628
    %v6684 = vadd.f32 %v6435, %v6630
    %v6685 = vadd.f32 %v6436, %v6671
    %v6686 = vadd.f32 %v6437, %v6673
    %v6687 = vadd.f32 %v6438, %v6546
    %v6688 = vadd.f32 %v6439, %v6548
    %v6689 = vadd.f32 %v6440, %v6589
    %v6690 = vadd.f32 %v6441, %v6591
    %v6691 = vadd.f32 %v6442, %v6632
    %v6692 = vadd.f32 %v6443, %v6634
    %v6693 = vadd.f32 %v6444, %v6675
    %v6694 = vadd.f32 %v6445, %v6677
    %v6695 = vld [vmem:[%s0 + $0x4] sm:$0xff]
    %v6696 = vld [vmem:[%s0 + $0x14] sm:$0xff]
    %v6697 = vpack.c.bf16 %v6695, %v6695
    %v6698 = vpack.c.bf16 %v6696, %v6696
    %s6699 = scalar_lea.vmem [#allocation2], 704
    %v6700 = vld [vmem:[%s6699] sm:$0xff]
    %v6701 = vld [vmem:[%s6699 + $0x8] sm:$0xff]
    %v6702 = vld [vmem:[%s6699 + $0x10] sm:$0xff]
    %v6703 = vld [vmem:[%s6699 + $0x18] sm:$0xff]
    %v6704 = vld [vmem:[%s6699 + $0x20] sm:$0xff]
    %v6705 = vld [vmem:[%s6699 + $0x28] sm:$0xff]
    %v6706 = vld [vmem:[%s6699 + $0x30] sm:$0xff]
    %v6707 = vld [vmem:[%s6699 + $0x38] sm:$0xff]
    %v6710 = vunpack.c.l.b16 %v6697
    %v6711 = vunpack.c.l.b16 %v6698
    %v6712 = vpack.c.b16 %v6711, %v6710
    %v6721 = vunpack.c.l.b16 %v6700
    %v6722 = vunpack.c.h.b16 %v6700
    %v6723 = vunpack.c.l.b16 %v6701
    %v6724 = vunpack.c.h.b16 %v6701
    %v6725 = vunpack.c.l.b16 %v6702
    %v6726 = vunpack.c.h.b16 %v6702
    %v6727 = vunpack.c.l.b16 %v6703
    %v6728 = vunpack.c.h.b16 %v6703
    %v6729 = vunpack.c.l.b16 %v6704
    %v6730 = vunpack.c.h.b16 %v6704
    %v6731 = vunpack.c.l.b16 %v6705
    %v6732 = vunpack.c.h.b16 %v6705
    %v6733 = vunpack.c.l.b16 %v6706
    %v6734 = vunpack.c.h.b16 %v6706
    %v6735 = vunpack.c.l.b16 %v6707
    %v6736 = vunpack.c.h.b16 %v6707
    %v6737 = vpack.c.b16 %v6729, %v6721
    %v6738 = vpack.c.b16 %v6730, %v6722
    %v6739 = vpack.c.b16 %v6731, %v6723
    %v6740 = vpack.c.b16 %v6732, %v6724
    %v6741 = vpack.c.b16 %v6733, %v6725
    %v6742 = vpack.c.b16 %v6734, %v6726
    %v6743 = vpack.c.b16 %v6735, %v6727
    %v6744 = vpack.c.b16 %v6736, %v6728
    %v6754 = vsel %vm242, %v6712, 0
    %6756 = vmatprep.subr.bf16.mxu0 0
    %6757 = vmatpush1.bf16.msra.mxu0 0
    %6758 = vmatprep.subr.bf16.mxu0 0
    %6759 = vmatpush1.bf16.msra.mxu0 0
    %6760 = vmatprep.subr.bf16.mxu0 0
    %6761 = vmatpush1.bf16.msra.mxu0 0
    %6762 = vmatprep.subr.bf16.mxu0 0
    %6763 = vmatpush1.bf16.msra.mxu0 0
    %6764 = vmatprep.subr.bf16.mxu0 0
    %6765 = vmatpush1.bf16.msra.mxu0 0
    %6766 = vmatprep.subr.bf16.mxu0 0
    %6767 = vmatpush1.bf16.msra.mxu0 0
    %6768 = vmatprep.subr.bf16.mxu0 0
    %6769 = vmatpush1.bf16.msra.mxu0 0
    %6770 = vmatprep.subr.bf16.mxu0 %v6738
    %6771 = vmatpush1.bf16.msra.mxu0 %v6737
    %6772 = vmatprep.subr.bf16.mxu0 0
    %6773 = vmatpush2.bf16.msra.mxu0 0
    %6774 = vmatprep.subr.bf16.mxu0 0
    %6775 = vmatpush2.bf16.msra.mxu0 0
    %6776 = vmatprep.subr.bf16.mxu0 0
    %6777 = vmatpush2.bf16.msra.mxu0 0
    %6778 = vmatprep.subr.bf16.mxu0 0
    %6779 = vmatpush2.bf16.msra.mxu0 0
    %6780 = vmatprep.subr.bf16.mxu0 0
    %6781 = vmatpush2.bf16.msra.mxu0 0
    %6782 = vmatprep.subr.bf16.mxu0 0
    %6783 = vmatpush2.bf16.msra.mxu0 0
    %6784 = vmatprep.subr.bf16.mxu0 0
    %6785 = vmatpush2.bf16.msra.mxu0 0
    %6786 = vmatprep.subr.bf16.mxu0 0
    %6787 = vmatpush2.bf16.msra.mxu0 0
    %6788 = vmatprep.mubr.bf16.mxu0 0
    %6789 = vmatmul.mubr.bf16.gmra.mxu0 %v6754
    %v6790 = vpop.f32.mrf.mxu0
    %v6791 = vadd.f32 0.0, %v6790
    %v6792 = vpop.f32.mrf.mxu0
    %v6793 = vadd.f32 0.0, %v6792
    %v6794 = vpop.f32.mrf.mxu0
    %v6795 = vadd.f32 0.0, %v6794
    %v6796 = vpop.f32.mrf.mxu0
    %v6797 = vadd.f32 0.0, %v6796
    %6798 = vdwg.mxu0
    %6799 = vmatprep.subr.bf16.mxu0 0
    %6800 = vmatpush1.bf16.msra.mxu0 0
    %6801 = vmatprep.subr.bf16.mxu0 0
    %6802 = vmatpush1.bf16.msra.mxu0 0
    %6803 = vmatprep.subr.bf16.mxu0 0
    %6804 = vmatpush1.bf16.msra.mxu0 0
    %6805 = vmatprep.subr.bf16.mxu0 0
    %6806 = vmatpush1.bf16.msra.mxu0 0
    %6807 = vmatprep.subr.bf16.mxu0 0
    %6808 = vmatpush1.bf16.msra.mxu0 0
    %6809 = vmatprep.subr.bf16.mxu0 0
    %6810 = vmatpush1.bf16.msra.mxu0 0
    %6811 = vmatprep.subr.bf16.mxu0 0
    %6812 = vmatpush1.bf16.msra.mxu0 0
    %6813 = vmatprep.subr.bf16.mxu0 %v6740
    %6814 = vmatpush1.bf16.msra.mxu0 %v6739
    %6815 = vmatprep.subr.bf16.mxu0 0
    %6816 = vmatpush2.bf16.msra.mxu0 0
    %6817 = vmatprep.subr.bf16.mxu0 0
    %6818 = vmatpush2.bf16.msra.mxu0 0
    %6819 = vmatprep.subr.bf16.mxu0 0
    %6820 = vmatpush2.bf16.msra.mxu0 0
    %6821 = vmatprep.subr.bf16.mxu0 0
    %6822 = vmatpush2.bf16.msra.mxu0 0
    %6823 = vmatprep.subr.bf16.mxu0 0
    %6824 = vmatpush2.bf16.msra.mxu0 0
    %6825 = vmatprep.subr.bf16.mxu0 0
    %6826 = vmatpush2.bf16.msra.mxu0 0
    %6827 = vmatprep.subr.bf16.mxu0 0
    %6828 = vmatpush2.bf16.msra.mxu0 0
    %6829 = vmatprep.subr.bf16.mxu0 0
    %6830 = vmatpush2.bf16.msra.mxu0 0
    %6831 = vmatprep.mubr.bf16.mxu0 0
    %6832 = vmatmul.mubr.bf16.gmra.mxu0 %v6754
    %v6833 = vpop.f32.mrf.mxu0
    %v6834 = vadd.f32 0.0, %v6833
    %v6835 = vpop.f32.mrf.mxu0
    %v6836 = vadd.f32 0.0, %v6835
    %v6837 = vpop.f32.mrf.mxu0
    %v6838 = vadd.f32 0.0, %v6837
    %v6839 = vpop.f32.mrf.mxu0
    %v6840 = vadd.f32 0.0, %v6839
    %6841 = vdwg.mxu0
    %6842 = vmatprep.subr.bf16.mxu0 0
    %6843 = vmatpush1.bf16.msra.mxu0 0
    %6844 = vmatprep.subr.bf16.mxu0 0
    %6845 = vmatpush1.bf16.msra.mxu0 0
    %6846 = vmatprep.subr.bf16.mxu0 0
    %6847 = vmatpush1.bf16.msra.mxu0 0
    %6848 = vmatprep.subr.bf16.mxu0 0
    %6849 = vmatpush1.bf16.msra.mxu0 0
    %6850 = vmatprep.subr.bf16.mxu0 0
    %6851 = vmatpush1.bf16.msra.mxu0 0
    %6852 = vmatprep.subr.bf16.mxu0 0
    %6853 = vmatpush1.bf16.msra.mxu0 0
    %6854 = vmatprep.subr.bf16.mxu0 0
    %6855 = vmatpush1.bf16.msra.mxu0 0
    %6856 = vmatprep.subr.bf16.mxu0 %v6742
    %6857 = vmatpush1.bf16.msra.mxu0 %v6741
    %6858 = vmatprep.subr.bf16.mxu0 0
    %6859 = vmatpush2.bf16.msra.mxu0 0
    %6860 = vmatprep.subr.bf16.mxu0 0
    %6861 = vmatpush2.bf16.msra.mxu0 0
    %6862 = vmatprep.subr.bf16.mxu0 0
    %6863 = vmatpush2.bf16.msra.mxu0 0
    %6864 = vmatprep.subr.bf16.mxu0 0
    %6865 = vmatpush2.bf16.msra.mxu0 0
    %6866 = vmatprep.subr.bf16.mxu0 0
    %6867 = vmatpush2.bf16.msra.mxu0 0
    %6868 = vmatprep.subr.bf16.mxu0 0
    %6869 = vmatpush2.bf16.msra.mxu0 0
    %6870 = vmatprep.subr.bf16.mxu0 0
    %6871 = vmatpush2.bf16.msra.mxu0 0
    %6872 = vmatprep.subr.bf16.mxu0 0
    %6873 = vmatpush2.bf16.msra.mxu0 0
    %6874 = vmatprep.mubr.bf16.mxu0 0
    %6875 = vmatmul.mubr.bf16.gmra.mxu0 %v6754
    %v6876 = vpop.f32.mrf.mxu0
    %v6877 = vadd.f32 0.0, %v6876
    %v6878 = vpop.f32.mrf.mxu0
    %v6879 = vadd.f32 0.0, %v6878
    %v6880 = vpop.f32.mrf.mxu0
    %v6881 = vadd.f32 0.0, %v6880
    %v6882 = vpop.f32.mrf.mxu0
    %v6883 = vadd.f32 0.0, %v6882
    %6884 = vdwg.mxu0
    %6885 = vmatprep.subr.bf16.mxu0 0
    %6886 = vmatpush1.bf16.msra.mxu0 0
    %6887 = vmatprep.subr.bf16.mxu0 0
    %6888 = vmatpush1.bf16.msra.mxu0 0
    %6889 = vmatprep.subr.bf16.mxu0 0
    %6890 = vmatpush1.bf16.msra.mxu0 0
    %6891 = vmatprep.subr.bf16.mxu0 0
    %6892 = vmatpush1.bf16.msra.mxu0 0
    %6893 = vmatprep.subr.bf16.mxu0 0
    %6894 = vmatpush1.bf16.msra.mxu0 0
    %6895 = vmatprep.subr.bf16.mxu0 0
    %6896 = vmatpush1.bf16.msra.mxu0 0
    %6897 = vmatprep.subr.bf16.mxu0 0
    %6898 = vmatpush1.bf16.msra.mxu0 0
    %6899 = vmatprep.subr.bf16.mxu0 %v6744
    %6900 = vmatpush1.bf16.msra.mxu0 %v6743
    %6901 = vmatprep.subr.bf16.mxu0 0
    %6902 = vmatpush2.bf16.msra.mxu0 0
    %6903 = vmatprep.subr.bf16.mxu0 0
    %6904 = vmatpush2.bf16.msra.mxu0 0
    %6905 = vmatprep.subr.bf16.mxu0 0
    %6906 = vmatpush2.bf16.msra.mxu0 0
    %6907 = vmatprep.subr.bf16.mxu0 0
    %6908 = vmatpush2.bf16.msra.mxu0 0
    %6909 = vmatprep.subr.bf16.mxu0 0
    %6910 = vmatpush2.bf16.msra.mxu0 0
    %6911 = vmatprep.subr.bf16.mxu0 0
    %6912 = vmatpush2.bf16.msra.mxu0 0
    %6913 = vmatprep.subr.bf16.mxu0 0
    %6914 = vmatpush2.bf16.msra.mxu0 0
    %6915 = vmatprep.subr.bf16.mxu0 0
    %6916 = vmatpush2.bf16.msra.mxu0 0
    %6917 = vmatprep.mubr.bf16.mxu0 0
    %6918 = vmatmul.mubr.bf16.gmra.mxu0 %v6754
    %v6919 = vpop.f32.mrf.mxu0
    %v6920 = vadd.f32 0.0, %v6919
    %v6921 = vpop.f32.mrf.mxu0
    %v6922 = vadd.f32 0.0, %v6921
    %v6923 = vpop.f32.mrf.mxu0
    %v6924 = vadd.f32 0.0, %v6923
    %v6925 = vpop.f32.mrf.mxu0
    %v6926 = vadd.f32 0.0, %v6925
    %6927 = vdwg.mxu0
    %v6928 = vadd.f32 %v6679, %v6791
    %v6929 = vadd.f32 %v6680, %v6793
    %v6930 = vadd.f32 %v6681, %v6834
    %v6931 = vadd.f32 %v6682, %v6836
    %v6932 = vadd.f32 %v6683, %v6877
    %v6933 = vadd.f32 %v6684, %v6879
    %v6934 = vadd.f32 %v6685, %v6920
    %v6935 = vadd.f32 %v6686, %v6922
    %v6936 = vadd.f32 %v6687, %v6795
    %v6937 = vadd.f32 %v6688, %v6797
    %v6938 = vadd.f32 %v6689, %v6838
    %v6939 = vadd.f32 %v6690, %v6840
    %v6940 = vadd.f32 %v6691, %v6881
    %v6941 = vadd.f32 %v6692, %v6883
    %v6942 = vadd.f32 %v6693, %v6924
    %v6943 = vadd.f32 %v6694, %v6926
    %v6944 = vrot.slane %v6928, 4
    %v6945 = vmax.f32 %v6928, %v6944
    %v6946 = vrot.slane %v6945, 2
    %v6947 = vmax.f32 %v6945, %v6946
    %v6948 = vrot.slane %v6947, 1
    %v6949 = vmax.f32 %v6947, %v6948
    %v6950 = vrot.slane %v6929, 4
    %v6951 = vmax.f32 %v6929, %v6950
    %v6952 = vrot.slane %v6951, 2
    %v6953 = vmax.f32 %v6951, %v6952
    %v6954 = vrot.slane %v6953, 1
    %v6955 = vmax.f32 %v6953, %v6954
    %v6956 = vrot.slane %v6930, 4
    %v6957 = vmax.f32 %v6930, %v6956
    %v6958 = vrot.slane %v6957, 2
    %v6959 = vmax.f32 %v6957, %v6958
    %v6960 = vrot.slane %v6959, 1
    %v6961 = vmax.f32 %v6959, %v6960
    %v6962 = vrot.slane %v6931, 4
    %v6963 = vmax.f32 %v6931, %v6962
    %v6964 = vrot.slane %v6963, 2
    %v6965 = vmax.f32 %v6963, %v6964
    %v6966 = vrot.slane %v6965, 1
    %v6967 = vmax.f32 %v6965, %v6966
    %v6968 = vrot.slane %v6932, 4
    %v6969 = vmax.f32 %v6932, %v6968
    %v6970 = vrot.slane %v6969, 2
    %v6971 = vmax.f32 %v6969, %v6970
    %v6972 = vrot.slane %v6971, 1
    %v6973 = vmax.f32 %v6971, %v6972
    %v6974 = vrot.slane %v6933, 4
    %v6975 = vmax.f32 %v6933, %v6974
    %v6976 = vrot.slane %v6975, 2
    %v6977 = vmax.f32 %v6975, %v6976
    %v6978 = vrot.slane %v6977, 1
    %v6979 = vmax.f32 %v6977, %v6978
    %v6980 = vrot.slane %v6934, 4
    %v6981 = vmax.f32 %v6934, %v6980
    %v6982 = vrot.slane %v6981, 2
    %v6983 = vmax.f32 %v6981, %v6982
    %v6984 = vrot.slane %v6983, 1
    %v6985 = vmax.f32 %v6983, %v6984
    %v6986 = vrot.slane %v6935, 4
    %v6987 = vmax.f32 %v6935, %v6986
    %v6988 = vrot.slane %v6987, 2
    %v6989 = vmax.f32 %v6987, %v6988
    %v6990 = vrot.slane %v6989, 1
    %v6991 = vmax.f32 %v6989, %v6990
    %v6992 = vrot.slane %v6936, 4
    %v6993 = vmax.f32 %v6936, %v6992
    %v6994 = vrot.slane %v6993, 2
    %v6995 = vmax.f32 %v6993, %v6994
    %v6996 = vrot.slane %v6995, 1
    %v6997 = vmax.f32 %v6995, %v6996
    %v6998 = vrot.slane %v6937, 4
    %v6999 = vmax.f32 %v6937, %v6998
    %v7000 = vrot.slane %v6999, 2
    %v7001 = vmax.f32 %v6999, %v7000
    %v7002 = vrot.slane %v7001, 1
    %v7003 = vmax.f32 %v7001, %v7002
    %v7004 = vrot.slane %v6938, 4
    %v7005 = vmax.f32 %v6938, %v7004
    %v7006 = vrot.slane %v7005, 2
    %v7007 = vmax.f32 %v7005, %v7006
    %v7008 = vrot.slane %v7007, 1
    %v7009 = vmax.f32 %v7007, %v7008
    %v7010 = vrot.slane %v6939, 4
    %v7011 = vmax.f32 %v6939, %v7010
    %v7012 = vrot.slane %v7011, 2
    %v7013 = vmax.f32 %v7011, %v7012
    %v7014 = vrot.slane %v7013, 1
    %v7015 = vmax.f32 %v7013, %v7014
    %v7016 = vrot.slane %v6940, 4
    %v7017 = vmax.f32 %v6940, %v7016
    %v7018 = vrot.slane %v7017, 2
    %v7019 = vmax.f32 %v7017, %v7018
    %v7020 = vrot.slane %v7019, 1
    %v7021 = vmax.f32 %v7019, %v7020
    %v7022 = vrot.slane %v6941, 4
    %v7023 = vmax.f32 %v6941, %v7022
    %v7024 = vrot.slane %v7023, 2
    %v7025 = vmax.f32 %v7023, %v7024
    %v7026 = vrot.slane %v7025, 1
    %v7027 = vmax.f32 %v7025, %v7026
    %v7028 = vrot.slane %v6942, 4
    %v7029 = vmax.f32 %v6942, %v7028
    %v7030 = vrot.slane %v7029, 2
    %v7031 = vmax.f32 %v7029, %v7030
    %v7032 = vrot.slane %v7031, 1
    %v7033 = vmax.f32 %v7031, %v7032
    %v7034 = vrot.slane %v6943, 4
    %v7035 = vmax.f32 %v6943, %v7034
    %v7036 = vrot.slane %v7035, 2
    %v7037 = vmax.f32 %v7035, %v7036
    %v7038 = vrot.slane %v7037, 1
    %v7039 = vmax.f32 %v7037, %v7038
    %s7040 = scalar_lea.vmem %s2, 2
    %v7041 = vld [vmem:[%s7040] ss:$4 sm:$0xff]
    %v7043 = vlaneseq
    %v7044 = vshrl.u32 %v7043, 7
    %v7045 = vsub.s32 0, %v7044
    %v7046 = vrot.slane %v7041, %v7045
    %v7047 = vlaneseq
    %v7048 = vshrl.u32 %v7047, 7
    %v7049 = vsub.s32 1, %v7048
    %v7050 = vrot.slane %v7041, %v7049
    %v7051 = vlaneseq
    %v7052 = vshrl.u32 %v7051, 7
    %v7053 = vsub.s32 2, %v7052
    %v7054 = vrot.slane %v7041, %v7053
    %v7055 = vlaneseq
    %v7056 = vshrl.u32 %v7055, 7
    %v7057 = vsub.s32 3, %v7056
    %v7058 = vrot.slane %v7041, %v7057
    %v7059 = vlaneseq
    %v7060 = vshrl.u32 %v7059, 7
    %v7061 = vsub.s32 4, %v7060
    %v7062 = vrot.slane %v7041, %v7061
    %v7063 = vlaneseq
    %v7064 = vshrl.u32 %v7063, 7
    %v7065 = vsub.s32 5, %v7064
    %v7066 = vrot.slane %v7041, %v7065
    %v7067 = vlaneseq
    %v7068 = vshrl.u32 %v7067, 7
    %v7069 = vsub.s32 6, %v7068
    %v7070 = vrot.slane %v7041, %v7069
    %v7071 = vlaneseq
    %v7072 = vshrl.u32 %v7071, 7
    %v7073 = vsub.s32 7, %v7072
    %v7074 = vrot.slane %v7041, %v7073
    %v7083 = vadd.f32 %v6949, %v7046
    %v7084 = vadd.f32 %v6955, %v7050
    %v7085 = vadd.f32 %v6961, %v7054
    %v7086 = vadd.f32 %v6967, %v7058
    %v7087 = vadd.f32 %v6973, %v7062
    %v7088 = vadd.f32 %v6979, %v7066
    %v7089 = vadd.f32 %v6985, %v7070
    %v7090 = vadd.f32 %v6991, %v7074
    %v7091 = vadd.f32 %v6997, %v7046
    %v7092 = vadd.f32 %v7003, %v7050
    %v7093 = vadd.f32 %v7009, %v7054
    %v7094 = vadd.f32 %v7015, %v7058
    %v7095 = vadd.f32 %v7021, %v7062
    %v7096 = vadd.f32 %v7027, %v7066
    %v7097 = vadd.f32 %v7033, %v7070
    %v7098 = vadd.f32 %v7039, %v7074
    %v7099 = vmax.f32 %v7083, 0.0
    %v7100 = vmax.f32 %v7084, 0.0
    %v7101 = vmax.f32 %v7085, 0.0
    %v7102 = vmax.f32 %v7086, 0.0
    %v7103 = vmax.f32 %v7087, 0.0
    %v7104 = vmax.f32 %v7088, 0.0
    %v7105 = vmax.f32 %v7089, 0.0
    %v7106 = vmax.f32 %v7090, 0.0
    %v7107 = vmax.f32 %v7091, 0.0
    %v7108 = vmax.f32 %v7092, 0.0
    %v7109 = vmax.f32 %v7093, 0.0
    %v7110 = vmax.f32 %v7094, 0.0
    %v7111 = vmax.f32 %v7095, 0.0
    %v7112 = vmax.f32 %v7096, 0.0
    %v7113 = vmax.f32 %v7097, 0.0
    %v7114 = vmax.f32 %v7098, 0.0
    %v7131 = vcombine.low %v2175, %v2176
    %v7132 = vcombine.low %v2177, %v2178
    %v7134 = vunpack.c.l.s4 1983009808
    %v7135 = vunpack.c.0.s8 %v7134
    %v7136 = vlaneseq
    %v7137 = vshrl.u32 %v7136, 7
    %v7138 = vsub.s32 %v7135, %v7137
    %v7139 = vrot.slane %v7131, %v7138
    %v7141 = vunpack.c.l.s4 1983009808
    %v7142 = vunpack.c.0.s8 %v7141
    %v7143 = vlaneseq
    %v7144 = vshrl.u32 %v7143, 7
    %v7145 = vsub.s32 %v7142, %v7144
    %v7146 = vrot.slane %v7132, %v7145
    %v7147 = vcombine.low %v7139, %v7146
    %v7148 = vcombine.low %v2179, %v2180
    %v7149 = vcombine.low %v2181, %v2182
    %v7151 = vunpack.c.l.s4 1983009808
    %v7152 = vunpack.c.0.s8 %v7151
    %v7153 = vlaneseq
    %v7154 = vshrl.u32 %v7153, 7
    %v7155 = vsub.s32 %v7152, %v7154
    %v7156 = vrot.slane %v7148, %v7155
    %v7158 = vunpack.c.l.s4 1983009808
    %v7159 = vunpack.c.0.s8 %v7158
    %v7160 = vlaneseq
    %v7161 = vshrl.u32 %v7160, 7
    %v7162 = vsub.s32 %v7159, %v7161
    %v7163 = vrot.slane %v7149, %v7162
    %v7164 = vcombine.low %v7156, %v7163
    %v7165 = vcombine.low %v2183, %v2184
    %v7166 = vcombine.low %v2185, %v2186
    %v7168 = vunpack.c.l.s4 1983009808
    %v7169 = vunpack.c.0.s8 %v7168
    %v7170 = vlaneseq
    %v7171 = vshrl.u32 %v7170, 7
    %v7172 = vsub.s32 %v7169, %v7171
    %v7173 = vrot.slane %v7165, %v7172
    %v7175 = vunpack.c.l.s4 1983009808
    %v7176 = vunpack.c.0.s8 %v7175
    %v7177 = vlaneseq
    %v7178 = vshrl.u32 %v7177, 7
    %v7179 = vsub.s32 %v7176, %v7178
    %v7180 = vrot.slane %v7166, %v7179
    %v7181 = vcombine.low %v7173, %v7180
    %v7182 = vcombine.low %v2187, %v2188
    %v7183 = vcombine.low %v2189, %v2190
    %v7185 = vunpack.c.l.s4 1983009808
    %v7186 = vunpack.c.0.s8 %v7185
    %v7187 = vlaneseq
    %v7188 = vshrl.u32 %v7187, 7
    %v7189 = vsub.s32 %v7186, %v7188
    %v7190 = vrot.slane %v7182, %v7189
    %v7192 = vunpack.c.l.s4 1983009808
    %v7193 = vunpack.c.0.s8 %v7192
    %v7194 = vlaneseq
    %v7195 = vshrl.u32 %v7194, 7
    %v7196 = vsub.s32 %v7193, %v7195
    %v7197 = vrot.slane %v7183, %v7196
    %v7198 = vcombine.low %v7190, %v7197
    %vm7199 = vcmask 1044484
    %v7200 = vsel %vm7199, %v7147, %v7147
    %vm7201 = vcmask 1046534
    %v7202 = vsel %vm7201, %v7147, %v7200
    %v7203 = vrot.slane %v7181, 7
    %vm7204 = vcmask 1041409
    %v7205 = vsel %vm7204, %v7203, %v7202
    %vm7206 = vcmask 1043459
    %v7207 = vsel %vm7206, %v7203, %v7205
    %vm7208 = vcmask 1045509
    %v7209 = vsel %vm7208, %v7203, %v7207
    %vm7210 = vcmask 1047559
    %v7211 = vsel %vm7210, %v7203, %v7209
    %v7212 = vsel %vm7199, %v7164, %v7164
    %v7213 = vsel %vm7201, %v7164, %v7212
    %v7214 = vrot.slane %v7198, 7
    %v7215 = vsel %vm7204, %v7214, %v7213
    %v7216 = vsel %vm7206, %v7214, %v7215
    %v7217 = vsel %vm7208, %v7214, %v7216
    %v7218 = vsel %vm7210, %v7214, %v7217
    %7221 = vst [vmem:[%s3] sm:$0xff] %v7211
    %7222 = vst [vmem:[%s3 + $0x8] sm:$0xff] %v7218
    %v7239 = vcombine.low %v5715, %v5716
    %v7240 = vcombine.low %v5717, %v5718
    %v7242 = vunpack.c.l.s4 1983009808
    %v7243 = vunpack.c.0.s8 %v7242
    %v7244 = vlaneseq
    %v7245 = vshrl.u32 %v7244, 7
    %v7246 = vsub.s32 %v7243, %v7245
    %v7247 = vrot.slane %v7239, %v7246
    %v7249 = vunpack.c.l.s4 1983009808
    %v7250 = vunpack.c.0.s8 %v7249
    %v7251 = vlaneseq
    %v7252 = vshrl.u32 %v7251, 7
    %v7253 = vsub.s32 %v7250, %v7252
    %v7254 = vrot.slane %v7240, %v7253
    %v7255 = vcombine.low %v7247, %v7254
    %v7256 = vcombine.low %v5719, %v5720
    %v7257 = vcombine.low %v5721, %v5722
    %v7259 = vunpack.c.l.s4 1983009808
    %v7260 = vunpack.c.0.s8 %v7259
    %v7261 = vlaneseq
    %v7262 = vshrl.u32 %v7261, 7
    %v7263 = vsub.s32 %v7260, %v7262
    %v7264 = vrot.slane %v7256, %v7263
    %v7266 = vunpack.c.l.s4 1983009808
    %v7267 = vunpack.c.0.s8 %v7266
    %v7268 = vlaneseq
    %v7269 = vshrl.u32 %v7268, 7
    %v7270 = vsub.s32 %v7267, %v7269
    %v7271 = vrot.slane %v7257, %v7270
    %v7272 = vcombine.low %v7264, %v7271
    %v7273 = vcombine.low %v5723, %v5724
    %v7274 = vcombine.low %v5725, %v5726
    %v7276 = vunpack.c.l.s4 1983009808
    %v7277 = vunpack.c.0.s8 %v7276
    %v7278 = vlaneseq
    %v7279 = vshrl.u32 %v7278, 7
    %v7280 = vsub.s32 %v7277, %v7279
    %v7281 = vrot.slane %v7273, %v7280
    %v7283 = vunpack.c.l.s4 1983009808
    %v7284 = vunpack.c.0.s8 %v7283
    %v7285 = vlaneseq
    %v7286 = vshrl.u32 %v7285, 7
    %v7287 = vsub.s32 %v7284, %v7286
    %v7288 = vrot.slane %v7274, %v7287
    %v7289 = vcombine.low %v7281, %v7288
    %v7290 = vcombine.low %v5727, %v5728
    %v7291 = vcombine.low %v5729, %v5730
    %v7293 = vunpack.c.l.s4 1983009808
    %v7294 = vunpack.c.0.s8 %v7293
    %v7295 = vlaneseq
    %v7296 = vshrl.u32 %v7295, 7
    %v7297 = vsub.s32 %v7294, %v7296
    %v7298 = vrot.slane %v7290, %v7297
    %v7300 = vunpack.c.l.s4 1983009808
    %v7301 = vunpack.c.0.s8 %v7300
    %v7302 = vlaneseq
    %v7303 = vshrl.u32 %v7302, 7
    %v7304 = vsub.s32 %v7301, %v7303
    %v7305 = vrot.slane %v7291, %v7304
    %v7306 = vcombine.low %v7298, %v7305
    %v7307 = vsel %vm7199, %v7255, %v7255
    %v7308 = vsel %vm7201, %v7255, %v7307
    %v7309 = vrot.slane %v7289, 7
    %v7310 = vsel %vm7204, %v7309, %v7308
    %v7311 = vsel %vm7206, %v7309, %v7310
    %v7312 = vsel %vm7208, %v7309, %v7311
    %v7313 = vsel %vm7210, %v7309, %v7312
    %v7314 = vsel %vm7199, %v7272, %v7272
    %v7315 = vsel %vm7201, %v7272, %v7314
    %v7316 = vrot.slane %v7306, 7
    %v7317 = vsel %vm7204, %v7316, %v7315
    %v7318 = vsel %vm7206, %v7316, %v7317
    %v7319 = vsel %vm7208, %v7316, %v7318
    %v7320 = vsel %vm7210, %v7316, %v7319
    %7323 = vst [vmem:[%s3 + $0x10] sm:$0xff] %v7313
    %7324 = vst [vmem:[%s3 + $0x18] sm:$0xff] %v7320
    %v7341 = vcombine.low %v7099, %v7100
    %v7342 = vcombine.low %v7101, %v7102
    %v7344 = vunpack.c.l.s4 1983009808
    %v7345 = vunpack.c.0.s8 %v7344
    %v7346 = vlaneseq
    %v7347 = vshrl.u32 %v7346, 7
    %v7348 = vsub.s32 %v7345, %v7347
    %v7349 = vrot.slane %v7341, %v7348
    %v7351 = vunpack.c.l.s4 1983009808
    %v7352 = vunpack.c.0.s8 %v7351
    %v7353 = vlaneseq
    %v7354 = vshrl.u32 %v7353, 7
    %v7355 = vsub.s32 %v7352, %v7354
    %v7356 = vrot.slane %v7342, %v7355
    %v7357 = vcombine.low %v7349, %v7356
    %v7358 = vcombine.low %v7103, %v7104
    %v7359 = vcombine.low %v7105, %v7106
    %v7361 = vunpack.c.l.s4 1983009808
    %v7362 = vunpack.c.0.s8 %v7361
    %v7363 = vlaneseq
    %v7364 = vshrl.u32 %v7363, 7
    %v7365 = vsub.s32 %v7362, %v7364
    %v7366 = vrot.slane %v7358, %v7365
    %v7368 = vunpack.c.l.s4 1983009808
    %v7369 = vunpack.c.0.s8 %v7368
    %v7370 = vlaneseq
    %v7371 = vshrl.u32 %v7370, 7
    %v7372 = vsub.s32 %v7369, %v7371
    %v7373 = vrot.slane %v7359, %v7372
    %v7374 = vcombine.low %v7366, %v7373
    %v7375 = vcombine.low %v7107, %v7108
    %v7376 = vcombine.low %v7109, %v7110
    %v7378 = vunpack.c.l.s4 1983009808
    %v7379 = vunpack.c.0.s8 %v7378
    %v7380 = vlaneseq
    %v7381 = vshrl.u32 %v7380, 7
    %v7382 = vsub.s32 %v7379, %v7381
    %v7383 = vrot.slane %v7375, %v7382
    %v7385 = vunpack.c.l.s4 1983009808
    %v7386 = vunpack.c.0.s8 %v7385
    %v7387 = vlaneseq
    %v7388 = vshrl.u32 %v7387, 7
    %v7389 = vsub.s32 %v7386, %v7388
    %v7390 = vrot.slane %v7376, %v7389
    %v7391 = vcombine.low %v7383, %v7390
    %v7392 = vcombine.low %v7111, %v7112
    %v7393 = vcombine.low %v7113, %v7114
    %v7395 = vunpack.c.l.s4 1983009808
    %v7396 = vunpack.c.0.s8 %v7395
    %v7397 = vlaneseq
    %v7398 = vshrl.u32 %v7397, 7
    %v7399 = vsub.s32 %v7396, %v7398
    %v7400 = vrot.slane %v7392, %v7399
    %v7402 = vunpack.c.l.s4 1983009808
    %v7403 = vunpack.c.0.s8 %v7402
    %v7404 = vlaneseq
    %v7405 = vshrl.u32 %v7404, 7
    %v7406 = vsub.s32 %v7403, %v7405
    %v7407 = vrot.slane %v7393, %v7406
    %v7408 = vcombine.low %v7400, %v7407
    %v7409 = vsel %vm7199, %v7357, %v7357
    %v7410 = vsel %vm7201, %v7357, %v7409
    %v7411 = vrot.slane %v7391, 7
    %v7412 = vsel %vm7204, %v7411, %v7410
    %v7413 = vsel %vm7206, %v7411, %v7412
    %v7414 = vsel %vm7208, %v7411, %v7413
    %v7415 = vsel %vm7210, %v7411, %v7414
    %v7416 = vsel %vm7199, %v7374, %v7374
    %v7417 = vsel %vm7201, %v7374, %v7416
    %v7418 = vrot.slane %v7408, 7
    %v7419 = vsel %vm7204, %v7418, %v7417
    %v7420 = vsel %vm7206, %v7418, %v7419
    %v7421 = vsel %vm7208, %v7418, %v7420
    %v7422 = vsel %vm7210, %v7418, %v7421
    %7425 = vst [vmem:[%s3 + $0x20] sm:$0xff] %v7415
    %7426 = vst [vmem:[%s3 + $0x28] sm:$0xff] %v7422
    // Predicated region
    $region18: #{textcnn_forward.1} parent=1 // pred_check
      _
    $region19: #{textcnn_forward.1} parent=1 // pred_check_branch
      %7428 = sbr.rel (0) target = $region21
    $region20: #{textcnn_forward.1} parent=1 // pred_region
      _
    $region21: #{textcnn_forward.1} parent=1 // pred_fallthru
      _
    // Predicated region
    $region22: #{textcnn_forward.1} parent=1 // pred_check
      _
    $region23: #{textcnn_forward.1} parent=1 // pred_check_branch
      %7430 = sbr.rel (0) target = $region25
    $region24: #{textcnn_forward.1} parent=1 // pred_region
      _
    $region25: #{textcnn_forward.1} parent=1 // pred_fallthru
      _
    %7431 = vsyncpa [#allocation3], 1

</llo_original>
